<compile_context>
chip_gen: v7x
topology: tpu7x:2x2x1
jax: 0.10.0
libtpu: 0.0.40
codegen_flags: <defaults>
</compile_context>

<pallas_src>
import functools
import math

import numpy as np
import jax
import jax.numpy as jnp
from jax.experimental import pallas as pl
from jax.experimental.pallas import tpu as pltpu


# ---------------------------------------------------------------------------
# Fused MHA kernel: one grid step == block_b batch elements.
# ---------------------------------------------------------------------------
def _mha_kernel(block_b, len_q, len_k, n_head, d_k, d_v, mxu_dtype, approx_recip,
                emit_attn,
                mask_ref,                          # (block_b, 1, Lk)        f32
                q_ref, k_ref, v_ref,               # (block_b, L, d_model)   f32
                wq_ref, bq_ref,                    # (dm, H*dk), (1, H*dk)
                wk_ref, bk_ref,
                wv_ref, bv_ref,
                wfc_ref, bfc_ref,                  # (H*dv, dm), (1, dm)
                gamma_ref, beta_ref,               # (1, dm)
                out_ref,                           # (block_b, Lq, dm)
                *attn_refs):                       # optional (block_b, H, Lq, Lk)
    f32 = jnp.float32
    d_model = q_ref.shape[-1]

    def mx(x):                                     # cast MXU operands only
        return x.astype(mxu_dtype)

    # Flatten (block_b, L, dm) -> (block_b*L, dm): large MXU M dimension.
    xq = q_ref[...].reshape(block_b * len_q, d_model)   # f32; also the residual
    xk = k_ref[...].reshape(block_b * len_k, d_model)
    xv = v_ref[...].reshape(block_b * len_k, d_model)

    # Fused projections (1/temperature already folded into wq/bq by the wrapper).
    qp = jnp.dot(mx(xq), wq_ref[...], preferred_element_type=f32) + bq_ref[...]
    kp = jnp.dot(mx(xk), wk_ref[...], preferred_element_type=f32) + bk_ref[...]
    vp = jnp.dot(mx(xv), wv_ref[...], preferred_element_type=f32) + bv_ref[...]

    neg = 1e30 * (1.0 - mask_ref[...])             # (block_b, 1, Lk), f32

    y = None                                       # fc accumulator (Bt*Lq, dm) f32
    for h in range(n_head):
        qh = qp[:, h * d_k:(h + 1) * d_k]          # (Bt*Lq, dk)
        kh = kp[:, h * d_k:(h + 1) * d_k]          # (Bt*Lk, dk)
        vh = vp[:, h * d_v:(h + 1) * d_v]          # (Bt*Lk, dv)
        pv = []
        for b in range(block_b):
            qb = qh[b * len_q:(b + 1) * len_q]
            kb = kh[b * len_k:(b + 1) * len_k]
            vb = vh[b * len_k:(b + 1) * len_k]
            # q @ k^T without materializing the transpose (NT dot_general).
            s = jax.lax.dot_general(mx(qb), mx(kb), (((1,), (1,)), ((), ())),
                                    preferred_element_type=f32)
            s = s - neg[b]                         # additive -1e30 padding mask
            m = jnp.max(s, axis=-1, keepdims=True)
            e = jnp.exp(s - m)
            denom = jnp.sum(e, axis=-1, keepdims=True)
            if approx_recip:
                p = e * pl.reciprocal(denom, approx=True)   # EUP slot
            else:
                p = e / denom
            if emit_attn:
                attn_refs[0][b, h] = p.astype(attn_refs[0].dtype)
            pv.append(jnp.dot(mx(p), mx(vb), preferred_element_type=f32))
        head_out = pv[0] if block_b == 1 else jnp.concatenate(pv, axis=0)
        # Output fc fused per head: row slice of wfc is sublane-aligned.
        contrib = jnp.dot(mx(head_out), wfc_ref[h * d_v:(h + 1) * d_v, :],
                          preferred_element_type=f32)
        y = contrib if y is None else y + contrib

    # fc bias + residual (pre-projection q) + LayerNorm, all in f32.
    y = y + bfc_ref[...] + xq
    mu = jnp.mean(y, axis=-1, keepdims=True)
    var = jnp.mean(jnp.square(y - mu), axis=-1, keepdims=True)
    y = (y - mu) * jax.lax.rsqrt(var + 1e-5)
    y = y * gamma_ref[...] + beta_ref[...]
    out_ref[...] = y.reshape(block_b, len_q, d_model).astype(out_ref.dtype)


# ---------------------------------------------------------------------------
# Wrapper
# ---------------------------------------------------------------------------
def mha_pallas(q, k, v, mask, params, *, n_head, d_k, d_v, block_b=None,
               mxu_dtype=jnp.bfloat16, approx_softmax=True, return_attn=True):
    """q:(B,Lq,dm) k/v:(B,Lk,dm) mask:(B,Lk) (1=keep, 0=pad) -> (out, attn|None)."""
    B, Lq, dm = q.shape
    _, Lk, _ = k.shape
    f32 = jnp.float32
    inv_temp = 1.0 / (float(d_k) ** 0.5)
    mxu_np = np.dtype(mxu_dtype)

    # Batch elements per grid step: fill the MXU M dimension (~128 rows) while
    # keeping the tile an exact divisor of B (no ragged step handling needed).
    if block_b is None:
        block_b = max(1, 128 // max(Lq, 1))
    block_b = max(1, min(block_b, B))
    while B % block_b:
        block_b -= 1
    n_steps = B // block_b

    mask3 = mask.reshape(B, 1, Lk).astype(f32)

    # 1/temperature folded into the q projection; matmul operands cast to the
    # MXU dtype, biases / LN params stay f32 (added after f32 accumulation).
    wq = (params["wq"] * inv_temp).astype(mxu_dtype)
    bq = (params["bq"] * inv_temp).astype(f32)
    wk = params["wk"].astype(mxu_dtype)
    wv = params["wv"].astype(mxu_dtype)
    wfc = params["wfc"].astype(mxu_dtype)
    bk = params["bk"].astype(f32)
    bv = params["bv"].astype(f32)
    bfc = params["bfc"].astype(f32)
    gamma = params["gamma"].astype(f32)
    beta = params["beta"].astype(f32)

    def inv(shape):                       # grid-invariant block (DMA'd once)
        nd = len(shape)
        return pl.BlockSpec(shape, lambda i: (0,) * nd)

    in_specs = [
        pl.BlockSpec((block_b, 1, Lk), lambda i: (i, 0, 0)),     # mask
        pl.BlockSpec((block_b, Lq, dm), lambda i: (i, 0, 0)),    # q
        pl.BlockSpec((block_b, Lk, dm), lambda i: (i, 0, 0)),    # k
        pl.BlockSpec((block_b, Lk, dm), lambda i: (i, 0, 0)),    # v
        inv((dm, n_head * d_k)), inv((1, n_head * d_k)),         # wq, bq
        inv((dm, n_head * d_k)), inv((1, n_head * d_k)),         # wk, bk
        inv((dm, n_head * d_v)), inv((1, n_head * d_v)),         # wv, bv
        inv((n_head * d_v, dm)), inv((1, dm)),                   # wfc, bfc
        inv((1, dm)), inv((1, dm)),                              # gamma, beta
    ]

    out_sds = jax.ShapeDtypeStruct((B, Lq, dm), q.dtype)
    out_spec = pl.BlockSpec((block_b, Lq, dm), lambda i: (i, 0, 0))
    if return_attn:
        out_shape = (out_sds, jax.ShapeDtypeStruct((B, n_head, Lq, Lk), f32))
        out_specs = (out_spec,
                     pl.BlockSpec((block_b, n_head, Lq, Lk),
                                  lambda i: (i, 0, 0, 0)))
    else:
        out_shape = out_sds
        out_specs = out_spec

    # Explicit scoped-VMEM budget: blocks are double-buffered by default.
    wb = mxu_np.itemsize
    est = (2 * (block_b * Lk * 4                                  # mask
                + block_b * (Lq + 2 * Lk) * dm * 4                # q, k, v
                + block_b * Lq * dm * 4)                          # out
           + (2 * block_b * n_head * Lq * Lk * 4 if return_attn else 0)
           + 2 * (2 * dm * n_head * d_k + dm * n_head * d_v
                  + n_head * d_v * dm) * wb                       # weights
           + 2 * (2 * n_head * d_k + n_head * d_v + 3 * dm) * 4   # biases / LN
           + 2 * block_b * (Lq + 2 * Lk) * n_head * d_k * 4       # qp/kp/vp
           + 8 * (Lq * Lk + Lq * max(d_k, d_v)) * 4)              # per-head tiles
    vmem_limit = int(min(max(2 * est, 32 * 2 ** 20), 64 * 2 ** 20))

    kernel = functools.partial(_mha_kernel, block_b, Lq, Lk, n_head, d_k, d_v,
                               mxu_dtype, approx_softmax, return_attn)

    res = pl.pallas_call(
        kernel,
        out_shape=out_shape,
        grid_spec=pl.GridSpec(grid=(n_steps,), in_specs=in_specs,
                              out_specs=out_specs),
        compiler_params=pltpu.CompilerParams(
            dimension_semantics=("parallel",),
            vmem_limit_bytes=vmem_limit),
    )(mask3, q, k, v, wq, bq, wk, bk, wv, bv, wfc, bfc, gamma, beta)

    if return_attn:
        out, attn = res
        # torch ordering: attn index = head * sz_b + batch.
        attn = jnp.transpose(attn, (1, 0, 2, 3)).reshape(n_head * B, Lq, Lk)
        return out, attn
    return res, None


# ---------------------------------------------------------------------------
# Parameters (deterministic; mirrors the module's init distributions).
# Weights stored pre-transposed: x @ W (+ b) == torch's x @ W^T + b.
# ---------------------------------------------------------------------------
def make_mha_params(key, d_model, n_head, d_k, d_v):
    ks = jax.random.split(key, 4)
    std_qk = (2.0 / (d_model + d_k)) ** 0.5
    std_v = (2.0 / (d_model + d_v)) ** 0.5
    std_fc = (2.0 / (n_head * d_v + d_model)) ** 0.5       # xavier_normal
    return dict(
        wq=jax.random.normal(ks[0], (d_model, n_head * d_k), jnp.float32) * std_qk,
        wk=jax.random.normal(ks[1], (d_model, n_head * d_k), jnp.float32) * std_qk,
        wv=jax.random.normal(ks[2], (d_model, n_head * d_v), jnp.float32) * std_v,
        wfc=jax.random.normal(ks[3], (n_head * d_v, d_model), jnp.float32) * std_fc,
        bq=jnp.zeros((1, n_head * d_k), jnp.float32),
        bk=jnp.zeros((1, n_head * d_k), jnp.float32),
        bv=jnp.zeros((1, n_head * d_v), jnp.float32),
        bfc=jnp.zeros((1, d_model), jnp.float32),
        gamma=jnp.ones((1, d_model), jnp.float32),
        beta=jnp.zeros((1, d_model), jnp.float32),
    )


# ---------------------------------------------------------------------------
# Pure-JAX reference reproducing the PyTorch forward (eval mode).
# ---------------------------------------------------------------------------
def mha_ref(q, k, v, mask, params, n_head, d_k, d_v):
    B, Lq, dm = q.shape
    _, Lk, _ = k.shape
    temperature = float(d_k) ** 0.5
    residual = q

    qp = q @ params["wq"] + params["bq"]
    kp = k @ params["wk"] + params["bk"]
    vp = v @ params["wv"] + params["bv"]

    qh = qp.reshape(B, Lq, n_head, d_k).transpose(2, 0, 1, 3).reshape(n_head * B, Lq, d_k)
    kh = kp.reshape(B, Lk, n_head, d_k).transpose(2, 0, 1, 3).reshape(n_head * B, Lk, d_k)
    vh = vp.reshape(B, Lk, n_head, d_v).transpose(2, 0, 1, 3).reshape(n_head * B, Lk, d_v)

    attn = jnp.einsum('bqd,bkd->bqk', qh, kh) / temperature
    mask_rep = jnp.tile(mask, (n_head, 1))                 # (H*B, Lk)
    attn = attn - 1e30 * (1.0 - mask_rep[:, None, :])
    attn = jax.nn.softmax(attn, axis=2)

    out = jnp.einsum('bqk,bkd->bqd', attn, vh)             # (H*B, Lq, dv)
    out = out.reshape(n_head, B, Lq, d_v).transpose(1, 2, 0, 3).reshape(B, Lq, n_head * d_v)
    out = out @ params["wfc"] + params["bfc"]
    out = out + residual
    mu = out.mean(-1, keepdims=True)
    var = ((out - mu) ** 2).mean(-1, keepdims=True)
    out = (out - mu) / jnp.sqrt(var + 1e-5) * params["gamma"] + params["beta"]
    return out, attn


if __name__ == "__main__":
    # Module defaults: n_head=8, d_k=d_v=64; small batch/seq for the test.
    d_model, n_head, d_k, d_v = 64, 8, 64, 64
    B, Lq, Lk = 2, 8, 8

    key = jax.random.PRNGKey(0)
    kq, kk, kv, kp = jax.random.split(key, 4)
    q = jax.random.normal(kq, (B, Lq, d_model), jnp.float32)
    k = jax.random.normal(kk, (B, Lk, d_model), jnp.float32)
    v = jax.random.normal(kv, (B, Lk, d_model), jnp.float32)
    mask = jnp.ones((B, Lk), jnp.float32).at[1, 5:].set(0.0)   # pad last 3 of batch 1
    params = make_mha_params(kp, d_model, n_head, d_k, d_v)

    out_ref, attn_ref = mha_ref(q, k, v, mask, params, n_head, d_k, d_v)

    # 1) Numerics-matched configuration: f32 MXU inputs, exact softmax division,
    #    attention probabilities emitted.  Tight check vs. the torch-equivalent
    #    reference (validates module semantics).
    f_exact = jax.jit(functools.partial(
        mha_pallas, n_head=n_head, d_k=d_k, d_v=d_v,
        mxu_dtype=jnp.float32, approx_softmax=False, return_attn=True))
    out, attn = jax.block_until_ready(f_exact(q, k, v, mask, params))
    assert out.shape == (B, Lq, d_model), out.shape
    assert attn.shape == (n_head * B, Lq, Lk), attn.shape
    assert jnp.allclose(out, out_ref, atol=1e-4, rtol=1e-4), \
        float(jnp.max(jnp.abs(out - out_ref)))
    assert jnp.allclose(attn, attn_ref, atol=2e-5, rtol=2e-5), \
        float(jnp.max(jnp.abs(attn - attn_ref)))

    # 2) Performance configuration (defaults): bf16 MXU inputs with f32
    #    accumulation, EUP approximate-reciprocal softmax, no attention
    #    writeback.  Loose sanity check only (reduced precision by design).
    f_perf = jax.jit(functools.partial(
        mha_pallas, n_head=n_head, d_k=d_k, d_v=d_v, return_attn=False))
    out_p, _ = jax.block_until_ready(f_perf(q, k, v, mask, params))
    assert out_p.shape == (B, Lq, d_model), out_p.shape
    assert jnp.allclose(out_p, out_ref, atol=2.5e-1, rtol=1e-2), \
        float(jnp.max(jnp.abs(out_p - out_ref)))

    print("KERNEL_OK")
</pallas_src>

<mosaic_0001>
module attributes {stable_mosaic.version = 11 : i64} {
  func.func @_mha_kernel(%arg0: i32, %arg1: memref<2x1x8xf32, #tpu.memory_space<vmem>>, %arg2: memref<2x8x64xf32, #tpu.memory_space<vmem>>, %arg3: memref<2x8x64xf32, #tpu.memory_space<vmem>>, %arg4: memref<2x8x64xf32, #tpu.memory_space<vmem>>, %arg5: memref<64x512xf32, #tpu.memory_space<vmem>>, %arg6: memref<1x512xf32, #tpu.memory_space<vmem>>, %arg7: memref<64x512xf32, #tpu.memory_space<vmem>>, %arg8: memref<1x512xf32, #tpu.memory_space<vmem>>, %arg9: memref<64x512xf32, #tpu.memory_space<vmem>>, %arg10: memref<1x512xf32, #tpu.memory_space<vmem>>, %arg11: memref<512x64xf32, #tpu.memory_space<vmem>>, %arg12: memref<1x64xf32, #tpu.memory_space<vmem>>, %arg13: memref<1x64xf32, #tpu.memory_space<vmem>>, %arg14: memref<1x64xf32, #tpu.memory_space<vmem>>, %arg15: memref<2x8x64xf32, #tpu.memory_space<vmem>>, %arg16: memref<2x8x8x8xf32, #tpu.memory_space<vmem>>) attributes {dimension_semantics = [#tpu.dimension_semantics<parallel>], iteration_bounds = array<i64: 1>, scalar_prefetch = 0 : i64, scratch_operands = 0 : i64, tpu.core_type = #tpu.core_type<tc>, window_params = [{transform_indices = @transform_0, window_bounds = array<i64: 2, 1, 8>}, {transform_indices = @transform_1, window_bounds = array<i64: 2, 8, 64>}, {transform_indices = @transform_2, window_bounds = array<i64: 2, 8, 64>}, {transform_indices = @transform_3, window_bounds = array<i64: 2, 8, 64>}, {pipeline_mode = #tpu.pipeline_mode<synchronous>, transform_indices = @transform_4, window_bounds = array<i64: 64, 512>}, {pipeline_mode = #tpu.pipeline_mode<synchronous>, transform_indices = @transform_5, window_bounds = array<i64: 1, 512>}, {pipeline_mode = #tpu.pipeline_mode<synchronous>, transform_indices = @transform_6, window_bounds = array<i64: 64, 512>}, {pipeline_mode = #tpu.pipeline_mode<synchronous>, transform_indices = @transform_7, window_bounds = array<i64: 1, 512>}, {pipeline_mode = #tpu.pipeline_mode<synchronous>, transform_indices = @transform_8, window_bounds = array<i64: 64, 512>}, {pipeline_mode = #tpu.pipeline_mode<synchronous>, transform_indices = @transform_9, window_bounds = array<i64: 1, 512>}, {pipeline_mode = #tpu.pipeline_mode<synchronous>, transform_indices = @transform_10, window_bounds = array<i64: 512, 64>}, {pipeline_mode = #tpu.pipeline_mode<synchronous>, transform_indices = @transform_11, window_bounds = array<i64: 1, 64>}, {pipeline_mode = #tpu.pipeline_mode<synchronous>, transform_indices = @transform_12, window_bounds = array<i64: 1, 64>}, {pipeline_mode = #tpu.pipeline_mode<synchronous>, transform_indices = @transform_13, window_bounds = array<i64: 1, 64>}, {transform_indices = @transform_14, window_bounds = array<i64: 2, 8, 64>}, {transform_indices = @transform_15, window_bounds = array<i64: 2, 8, 8, 8>}]} {
    %c0 = arith.constant 0 : index
    %c0_0 = arith.constant 0 : index
    %c0_1 = arith.constant 0 : index
    %0 = vector.load %arg2[%c0, %c0_0, %c0_1] : memref<2x8x64xf32, #tpu.memory_space<vmem>>, vector<2x8x64xf32>
    %1 = vector.shape_cast %0 : vector<2x8x64xf32> to vector<16x64xf32>
    %c0_2 = arith.constant 0 : index
    %c0_3 = arith.constant 0 : index
    %c0_4 = arith.constant 0 : index
    %2 = vector.load %arg3[%c0_2, %c0_3, %c0_4] : memref<2x8x64xf32, #tpu.memory_space<vmem>>, vector<2x8x64xf32>
    %3 = vector.shape_cast %2 : vector<2x8x64xf32> to vector<16x64xf32>
    %c0_5 = arith.constant 0 : index
    %c0_6 = arith.constant 0 : index
    %c0_7 = arith.constant 0 : index
    %4 = vector.load %arg4[%c0_5, %c0_6, %c0_7] : memref<2x8x64xf32, #tpu.memory_space<vmem>>, vector<2x8x64xf32>
    %5 = vector.shape_cast %4 : vector<2x8x64xf32> to vector<16x64xf32>
    %c0_8 = arith.constant 0 : index
    %c0_9 = arith.constant 0 : index
    %6 = vector.load %arg5[%c0_8, %c0_9] : memref<64x512xf32, #tpu.memory_space<vmem>>, vector<64x512xf32>
    %cst = arith.constant dense<0.000000e+00> : vector<16x512xf32>
    %7 = tpu.matmul %1, %6, %cst {dimension_numbers = #tpu.dot_dimension_numbers<[1], [0], [0], [1], [0, 0, 1, 1], [], []>} : vector<16x64xf32>, vector<64x512xf32>, vector<16x512xf32> -> vector<16x512xf32>
    %c0_10 = arith.constant 0 : index
    %c0_11 = arith.constant 0 : index
    %8 = vector.load %arg6[%c0_10, %c0_11] : memref<1x512xf32, #tpu.memory_space<vmem>>, vector<1x512xf32>
    %9 = vector.broadcast %8 : vector<1x512xf32> to vector<16x512xf32>
    %10 = arith.addf %7, %9 : vector<16x512xf32>
    %c0_12 = arith.constant 0 : index
    %c0_13 = arith.constant 0 : index
    %11 = vector.load %arg7[%c0_12, %c0_13] : memref<64x512xf32, #tpu.memory_space<vmem>>, vector<64x512xf32>
    %cst_14 = arith.constant dense<0.000000e+00> : vector<16x512xf32>
    %12 = tpu.matmul %3, %11, %cst_14 {dimension_numbers = #tpu.dot_dimension_numbers<[1], [0], [0], [1], [0, 0, 1, 1], [], []>} : vector<16x64xf32>, vector<64x512xf32>, vector<16x512xf32> -> vector<16x512xf32>
    %c0_15 = arith.constant 0 : index
    %c0_16 = arith.constant 0 : index
    %13 = vector.load %arg8[%c0_15, %c0_16] : memref<1x512xf32, #tpu.memory_space<vmem>>, vector<1x512xf32>
    %14 = vector.broadcast %13 : vector<1x512xf32> to vector<16x512xf32>
    %15 = arith.addf %12, %14 : vector<16x512xf32>
    %c0_17 = arith.constant 0 : index
    %c0_18 = arith.constant 0 : index
    %16 = vector.load %arg9[%c0_17, %c0_18] : memref<64x512xf32, #tpu.memory_space<vmem>>, vector<64x512xf32>
    %cst_19 = arith.constant dense<0.000000e+00> : vector<16x512xf32>
    %17 = tpu.matmul %5, %16, %cst_19 {dimension_numbers = #tpu.dot_dimension_numbers<[1], [0], [0], [1], [0, 0, 1, 1], [], []>} : vector<16x64xf32>, vector<64x512xf32>, vector<16x512xf32> -> vector<16x512xf32>
    %c0_20 = arith.constant 0 : index
    %c0_21 = arith.constant 0 : index
    %18 = vector.load %arg10[%c0_20, %c0_21] : memref<1x512xf32, #tpu.memory_space<vmem>>, vector<1x512xf32>
    %19 = vector.broadcast %18 : vector<1x512xf32> to vector<16x512xf32>
    %20 = arith.addf %17, %19 : vector<16x512xf32>
    %c0_22 = arith.constant 0 : index
    %c0_23 = arith.constant 0 : index
    %c0_24 = arith.constant 0 : index
    %21 = vector.load %arg1[%c0_22, %c0_23, %c0_24] : memref<2x1x8xf32, #tpu.memory_space<vmem>>, vector<2x1x8xf32>
    %cst_25 = arith.constant 1.000000e+00 : f32
    %22 = vector.broadcast %cst_25 : f32 to vector<2x1x8xf32>
    %23 = arith.subf %22, %21 : vector<2x1x8xf32>
    %cst_26 = arith.constant 1.000000e+30 : f32
    %24 = vector.broadcast %cst_26 : f32 to vector<2x1x8xf32>
    %25 = arith.mulf %24, %23 : vector<2x1x8xf32>
    %26 = vector.extract_strided_slice %10 {offsets = [0, 0], sizes = [16, 64], strides = [1, 1]} : vector<16x512xf32> to vector<16x64xf32>
    %27 = vector.extract_strided_slice %15 {offsets = [0, 0], sizes = [16, 64], strides = [1, 1]} : vector<16x512xf32> to vector<16x64xf32>
    %28 = vector.extract_strided_slice %20 {offsets = [0, 0], sizes = [16, 64], strides = [1, 1]} : vector<16x512xf32> to vector<16x64xf32>
    %29 = vector.extract_strided_slice %26 {offsets = [0, 0], sizes = [8, 64], strides = [1, 1]} : vector<16x64xf32> to vector<8x64xf32>
    %30 = vector.extract_strided_slice %27 {offsets = [0, 0], sizes = [8, 64], strides = [1, 1]} : vector<16x64xf32> to vector<8x64xf32>
    %31 = vector.extract_strided_slice %28 {offsets = [0, 0], sizes = [8, 64], strides = [1, 1]} : vector<16x64xf32> to vector<8x64xf32>
    %cst_27 = arith.constant dense<0.000000e+00> : vector<8x8xf32>
    %32 = tpu.matmul %29, %30, %cst_27 {dimension_numbers = #tpu.dot_dimension_numbers<[1], [1], [0], [0], [0, 0, 1, 0], [], []>} : vector<8x64xf32>, vector<8x64xf32>, vector<8x8xf32> -> vector<8x8xf32>
    %33 = vector.extract_strided_slice %25 {offsets = [0, 0, 0], sizes = [1, 1, 8], strides = [1, 1, 1]} : vector<2x1x8xf32> to vector<1x1x8xf32>
    %34 = vector.shape_cast %33 : vector<1x1x8xf32> to vector<1x8xf32>
    %35 = vector.broadcast %34 : vector<1x8xf32> to vector<8x8xf32>
    %36 = arith.subf %32, %35 : vector<8x8xf32>
    %cst_28 = arith.constant dense<0xFF800000> : vector<8xf32>
    %37 = vector.multi_reduction <maximumf>, %36, %cst_28 [1] : vector<8x8xf32> to vector<8xf32>
    %38 = vector.shape_cast %37 : vector<8xf32> to vector<8x1xf32>
    %39 = vector.broadcast %38 : vector<8x1xf32> to vector<8x8xf32>
    %40 = arith.subf %36, %39 : vector<8x8xf32>
    %41 = math.exp %40 : vector<8x8xf32>
    %cst_29 = arith.constant dense<0.000000e+00> : vector<8xf32>
    %42 = vector.multi_reduction <add>, %41, %cst_29 [1] : vector<8x8xf32> to vector<8xf32>
    %43 = vector.shape_cast %42 : vector<8xf32> to vector<8x1xf32>
    %44 = vector.broadcast %43 : vector<8x1xf32> to vector<8x8xf32>
    %45 = arith.divf %41, %44 : vector<8x8xf32>
    %c0_30 = arith.constant 0 : index
    %c0_31 = arith.constant 0 : index
    %c0_32 = arith.constant 0 : index
    %c0_33 = arith.constant 0 : index
    %46 = vector.load %arg16[%c0_30, %c0_31, %c0_32, %c0_33] : memref<2x8x8x8xf32, #tpu.memory_space<vmem>>, vector<1x1x8x8xf32>
    %47 = vector.shape_cast %46 : vector<1x1x8x8xf32> to vector<8x8xf32>
    %48 = vector.shape_cast %45 : vector<8x8xf32> to vector<1x1x8x8xf32>
    tpu.vector_store %arg16[%c0_30, %c0_31, %c0_32, %c0_33], %48 {strides = array<i32>} : memref<2x8x8x8xf32, #tpu.memory_space<vmem>>, vector<1x1x8x8xf32>,
    %cst_34 = arith.constant dense<0.000000e+00> : vector<8x64xf32>
    %49 = tpu.matmul %45, %31, %cst_34 {dimension_numbers = #tpu.dot_dimension_numbers<[1], [0], [0], [1], [0, 0, 1, 1], [], []>} : vector<8x8xf32>, vector<8x64xf32>, vector<8x64xf32> -> vector<8x64xf32>
    %50 = vector.extract_strided_slice %26 {offsets = [8, 0], sizes = [8, 64], strides = [1, 1]} : vector<16x64xf32> to vector<8x64xf32>
    %51 = vector.extract_strided_slice %27 {offsets = [8, 0], sizes = [8, 64], strides = [1, 1]} : vector<16x64xf32> to vector<8x64xf32>
    %52 = vector.extract_strided_slice %28 {offsets = [8, 0], sizes = [8, 64], strides = [1, 1]} : vector<16x64xf32> to vector<8x64xf32>
    %cst_35 = arith.constant dense<0.000000e+00> : vector<8x8xf32>
    %53 = tpu.matmul %50, %51, %cst_35 {dimension_numbers = #tpu.dot_dimension_numbers<[1], [1], [0], [0], [0, 0, 1, 0], [], []>} : vector<8x64xf32>, vector<8x64xf32>, vector<8x8xf32> -> vector<8x8xf32>
    %54 = vector.extract_strided_slice %25 {offsets = [1, 0, 0], sizes = [1, 1, 8], strides = [1, 1, 1]} : vector<2x1x8xf32> to vector<1x1x8xf32>
    %55 = vector.shape_cast %54 : vector<1x1x8xf32> to vector<1x8xf32>
    %56 = vector.broadcast %55 : vector<1x8xf32> to vector<8x8xf32>
    %57 = arith.subf %53, %56 : vector<8x8xf32>
    %cst_36 = arith.constant dense<0xFF800000> : vector<8xf32>
    %58 = vector.multi_reduction <maximumf>, %57, %cst_36 [1] : vector<8x8xf32> to vector<8xf32>
    %59 = vector.shape_cast %58 : vector<8xf32> to vector<8x1xf32>
    %60 = vector.broadcast %59 : vector<8x1xf32> to vector<8x8xf32>
    %61 = arith.subf %57, %60 : vector<8x8xf32>
    %62 = math.exp %61 : vector<8x8xf32>
    %cst_37 = arith.constant dense<0.000000e+00> : vector<8xf32>
    %63 = vector.multi_reduction <add>, %62, %cst_37 [1] : vector<8x8xf32> to vector<8xf32>
    %64 = vector.shape_cast %63 : vector<8xf32> to vector<8x1xf32>
    %65 = vector.broadcast %64 : vector<8x1xf32> to vector<8x8xf32>
    %66 = arith.divf %62, %65 : vector<8x8xf32>
    %c1 = arith.constant 1 : index
    %c0_38 = arith.constant 0 : index
    %c0_39 = arith.constant 0 : index
    %c0_40 = arith.constant 0 : index
    %67 = vector.load %arg16[%c1, %c0_38, %c0_39, %c0_40] : memref<2x8x8x8xf32, #tpu.memory_space<vmem>>, vector<1x1x8x8xf32>
    %68 = vector.shape_cast %67 : vector<1x1x8x8xf32> to vector<8x8xf32>
    %69 = vector.shape_cast %66 : vector<8x8xf32> to vector<1x1x8x8xf32>
    tpu.vector_store %arg16[%c1, %c0_38, %c0_39, %c0_40], %69 {strides = array<i32>} : memref<2x8x8x8xf32, #tpu.memory_space<vmem>>, vector<1x1x8x8xf32>,
    %cst_41 = arith.constant dense<0.000000e+00> : vector<8x64xf32>
    %70 = tpu.matmul %66, %52, %cst_41 {dimension_numbers = #tpu.dot_dimension_numbers<[1], [0], [0], [1], [0, 0, 1, 1], [], []>} : vector<8x8xf32>, vector<8x64xf32>, vector<8x64xf32> -> vector<8x64xf32>
    %71 = tpu.concatenate %49, %70 in 0 : vector<8x64xf32>, vector<8x64xf32> -> vector<16x64xf32>
    %c0_42 = arith.constant 0 : index
    %c0_43 = arith.constant 0 : index
    %72 = vector.load %arg11[%c0_42, %c0_43] : memref<512x64xf32, #tpu.memory_space<vmem>>, vector<64x64xf32>
    %cst_44 = arith.constant dense<0.000000e+00> : vector<16x64xf32>
    %73 = tpu.matmul %71, %72, %cst_44 {dimension_numbers = #tpu.dot_dimension_numbers<[1], [0], [0], [1], [0, 0, 1, 1], [], []>} : vector<16x64xf32>, vector<64x64xf32>, vector<16x64xf32> -> vector<16x64xf32>
    %74 = vector.extract_strided_slice %10 {offsets = [0, 64], sizes = [16, 64], strides = [1, 1]} : vector<16x512xf32> to vector<16x64xf32>
    %75 = vector.extract_strided_slice %15 {offsets = [0, 64], sizes = [16, 64], strides = [1, 1]} : vector<16x512xf32> to vector<16x64xf32>
    %76 = vector.extract_strided_slice %20 {offsets = [0, 64], sizes = [16, 64], strides = [1, 1]} : vector<16x512xf32> to vector<16x64xf32>
    %77 = vector.extract_strided_slice %74 {offsets = [0, 0], sizes = [8, 64], strides = [1, 1]} : vector<16x64xf32> to vector<8x64xf32>
    %78 = vector.extract_strided_slice %75 {offsets = [0, 0], sizes = [8, 64], strides = [1, 1]} : vector<16x64xf32> to vector<8x64xf32>
    %79 = vector.extract_strided_slice %76 {offsets = [0, 0], sizes = [8, 64], strides = [1, 1]} : vector<16x64xf32> to vector<8x64xf32>
    %cst_45 = arith.constant dense<0.000000e+00> : vector<8x8xf32>
    %80 = tpu.matmul %77, %78, %cst_45 {dimension_numbers = #tpu.dot_dimension_numbers<[1], [1], [0], [0], [0, 0, 1, 0], [], []>} : vector<8x64xf32>, vector<8x64xf32>, vector<8x8xf32> -> vector<8x8xf32>
    %81 = vector.extract_strided_slice %25 {offsets = [0, 0, 0], sizes = [1, 1, 8], strides = [1, 1, 1]} : vector<2x1x8xf32> to vector<1x1x8xf32>
    %82 = vector.shape_cast %81 : vector<1x1x8xf32> to vector<1x8xf32>
    %83 = vector.broadcast %82 : vector<1x8xf32> to vector<8x8xf32>
    %84 = arith.subf %80, %83 : vector<8x8xf32>
    %cst_46 = arith.constant dense<0xFF800000> : vector<8xf32>
    %85 = vector.multi_reduction <maximumf>, %84, %cst_46 [1] : vector<8x8xf32> to vector<8xf32>
    %86 = vector.shape_cast %85 : vector<8xf32> to vector<8x1xf32>
    %87 = vector.broadcast %86 : vector<8x1xf32> to vector<8x8xf32>
    %88 = arith.subf %84, %87 : vector<8x8xf32>
    %89 = math.exp %88 : vector<8x8xf32>
    %cst_47 = arith.constant dense<0.000000e+00> : vector<8xf32>
    %90 = vector.multi_reduction <add>, %89, %cst_47 [1] : vector<8x8xf32> to vector<8xf32>
    %91 = vector.shape_cast %90 : vector<8xf32> to vector<8x1xf32>
    %92 = vector.broadcast %91 : vector<8x1xf32> to vector<8x8xf32>
    %93 = arith.divf %89, %92 : vector<8x8xf32>
    %c0_48 = arith.constant 0 : index
    %c1_49 = arith.constant 1 : index
    %c0_50 = arith.constant 0 : index
    %c0_51 = arith.constant 0 : index
    %94 = vector.load %arg16[%c0_48, %c1_49, %c0_50, %c0_51] : memref<2x8x8x8xf32, #tpu.memory_space<vmem>>, vector<1x1x8x8xf32>
    %95 = vector.shape_cast %94 : vector<1x1x8x8xf32> to vector<8x8xf32>
    %96 = vector.shape_cast %93 : vector<8x8xf32> to vector<1x1x8x8xf32>
    tpu.vector_store %arg16[%c0_48, %c1_49, %c0_50, %c0_51], %96 {strides = array<i32>} : memref<2x8x8x8xf32, #tpu.memory_space<vmem>>, vector<1x1x8x8xf32>,
    %cst_52 = arith.constant dense<0.000000e+00> : vector<8x64xf32>
    %97 = tpu.matmul %93, %79, %cst_52 {dimension_numbers = #tpu.dot_dimension_numbers<[1], [0], [0], [1], [0, 0, 1, 1], [], []>} : vector<8x8xf32>, vector<8x64xf32>, vector<8x64xf32> -> vector<8x64xf32>
    %98 = vector.extract_strided_slice %74 {offsets = [8, 0], sizes = [8, 64], strides = [1, 1]} : vector<16x64xf32> to vector<8x64xf32>
    %99 = vector.extract_strided_slice %75 {offsets = [8, 0], sizes = [8, 64], strides = [1, 1]} : vector<16x64xf32> to vector<8x64xf32>
    %100 = vector.extract_strided_slice %76 {offsets = [8, 0], sizes = [8, 64], strides = [1, 1]} : vector<16x64xf32> to vector<8x64xf32>
    %cst_53 = arith.constant dense<0.000000e+00> : vector<8x8xf32>
    %101 = tpu.matmul %98, %99, %cst_53 {dimension_numbers = #tpu.dot_dimension_numbers<[1], [1], [0], [0], [0, 0, 1, 0], [], []>} : vector<8x64xf32>, vector<8x64xf32>, vector<8x8xf32> -> vector<8x8xf32>
    %102 = vector.extract_strided_slice %25 {offsets = [1, 0, 0], sizes = [1, 1, 8], strides = [1, 1, 1]} : vector<2x1x8xf32> to vector<1x1x8xf32>
    %103 = vector.shape_cast %102 : vector<1x1x8xf32> to vector<1x8xf32>
    %104 = vector.broadcast %103 : vector<1x8xf32> to vector<8x8xf32>
    %105 = arith.subf %101, %104 : vector<8x8xf32>
    %cst_54 = arith.constant dense<0xFF800000> : vector<8xf32>
    %106 = vector.multi_reduction <maximumf>, %105, %cst_54 [1] : vector<8x8xf32> to vector<8xf32>
    %107 = vector.shape_cast %106 : vector<8xf32> to vector<8x1xf32>
    %108 = vector.broadcast %107 : vector<8x1xf32> to vector<8x8xf32>
    %109 = arith.subf %105, %108 : vector<8x8xf32>
    %110 = math.exp %109 : vector<8x8xf32>
    %cst_55 = arith.constant dense<0.000000e+00> : vector<8xf32>
    %111 = vector.multi_reduction <add>, %110, %cst_55 [1] : vector<8x8xf32> to vector<8xf32>
    %112 = vector.shape_cast %111 : vector<8xf32> to vector<8x1xf32>
    %113 = vector.broadcast %112 : vector<8x1xf32> to vector<8x8xf32>
    %114 = arith.divf %110, %113 : vector<8x8xf32>
    %c1_56 = arith.constant 1 : index
    %c1_57 = arith.constant 1 : index
    %c0_58 = arith.constant 0 : index
    %c0_59 = arith.constant 0 : index
    %115 = vector.load %arg16[%c1_56, %c1_57, %c0_58, %c0_59] : memref<2x8x8x8xf32, #tpu.memory_space<vmem>>, vector<1x1x8x8xf32>
    %116 = vector.shape_cast %115 : vector<1x1x8x8xf32> to vector<8x8xf32>
    %117 = vector.shape_cast %114 : vector<8x8xf32> to vector<1x1x8x8xf32>
    tpu.vector_store %arg16[%c1_56, %c1_57, %c0_58, %c0_59], %117 {strides = array<i32>} : memref<2x8x8x8xf32, #tpu.memory_space<vmem>>, vector<1x1x8x8xf32>,
    %cst_60 = arith.constant dense<0.000000e+00> : vector<8x64xf32>
    %118 = tpu.matmul %114, %100, %cst_60 {dimension_numbers = #tpu.dot_dimension_numbers<[1], [0], [0], [1], [0, 0, 1, 1], [], []>} : vector<8x8xf32>, vector<8x64xf32>, vector<8x64xf32> -> vector<8x64xf32>
    %119 = tpu.concatenate %97, %118 in 0 : vector<8x64xf32>, vector<8x64xf32> -> vector<16x64xf32>
    %c64 = arith.constant 64 : index
    %c0_61 = arith.constant 0 : index
    %120 = vector.load %arg11[%c64, %c0_61] : memref<512x64xf32, #tpu.memory_space<vmem>>, vector<64x64xf32>
    %cst_62 = arith.constant dense<0.000000e+00> : vector<16x64xf32>
    %121 = tpu.matmul %119, %120, %cst_62 {dimension_numbers = #tpu.dot_dimension_numbers<[1], [0], [0], [1], [0, 0, 1, 1], [], []>} : vector<16x64xf32>, vector<64x64xf32>, vector<16x64xf32> -> vector<16x64xf32>
    %122 = arith.addf %73, %121 : vector<16x64xf32>
    %123 = vector.extract_strided_slice %10 {offsets = [0, 128], sizes = [16, 64], strides = [1, 1]} : vector<16x512xf32> to vector<16x64xf32>
    %124 = vector.extract_strided_slice %15 {offsets = [0, 128], sizes = [16, 64], strides = [1, 1]} : vector<16x512xf32> to vector<16x64xf32>
    %125 = vector.extract_strided_slice %20 {offsets = [0, 128], sizes = [16, 64], strides = [1, 1]} : vector<16x512xf32> to vector<16x64xf32>
    %126 = vector.extract_strided_slice %123 {offsets = [0, 0], sizes = [8, 64], strides = [1, 1]} : vector<16x64xf32> to vector<8x64xf32>
    %127 = vector.extract_strided_slice %124 {offsets = [0, 0], sizes = [8, 64], strides = [1, 1]} : vector<16x64xf32> to vector<8x64xf32>
    %128 = vector.extract_strided_slice %125 {offsets = [0, 0], sizes = [8, 64], strides = [1, 1]} : vector<16x64xf32> to vector<8x64xf32>
    %cst_63 = arith.constant dense<0.000000e+00> : vector<8x8xf32>
    %129 = tpu.matmul %126, %127, %cst_63 {dimension_numbers = #tpu.dot_dimension_numbers<[1], [1], [0], [0], [0, 0, 1, 0], [], []>} : vector<8x64xf32>, vector<8x64xf32>, vector<8x8xf32> -> vector<8x8xf32>
    %130 = vector.extract_strided_slice %25 {offsets = [0, 0, 0], sizes = [1, 1, 8], strides = [1, 1, 1]} : vector<2x1x8xf32> to vector<1x1x8xf32>
    %131 = vector.shape_cast %130 : vector<1x1x8xf32> to vector<1x8xf32>
    %132 = vector.broadcast %131 : vector<1x8xf32> to vector<8x8xf32>
    %133 = arith.subf %129, %132 : vector<8x8xf32>
    %cst_64 = arith.constant dense<0xFF800000> : vector<8xf32>
    %134 = vector.multi_reduction <maximumf>, %133, %cst_64 [1] : vector<8x8xf32> to vector<8xf32>
    %135 = vector.shape_cast %134 : vector<8xf32> to vector<8x1xf32>
    %136 = vector.broadcast %135 : vector<8x1xf32> to vector<8x8xf32>
    %137 = arith.subf %133, %136 : vector<8x8xf32>
    %138 = math.exp %137 : vector<8x8xf32>
    %cst_65 = arith.constant dense<0.000000e+00> : vector<8xf32>
    %139 = vector.multi_reduction <add>, %138, %cst_65 [1] : vector<8x8xf32> to vector<8xf32>
    %140 = vector.shape_cast %139 : vector<8xf32> to vector<8x1xf32>
    %141 = vector.broadcast %140 : vector<8x1xf32> to vector<8x8xf32>
    %142 = arith.divf %138, %141 : vector<8x8xf32>
    %c0_66 = arith.constant 0 : index
    %c2 = arith.constant 2 : index
    %c0_67 = arith.constant 0 : index
    %c0_68 = arith.constant 0 : index
    %143 = vector.load %arg16[%c0_66, %c2, %c0_67, %c0_68] : memref<2x8x8x8xf32, #tpu.memory_space<vmem>>, vector<1x1x8x8xf32>
    %144 = vector.shape_cast %143 : vector<1x1x8x8xf32> to vector<8x8xf32>
    %145 = vector.shape_cast %142 : vector<8x8xf32> to vector<1x1x8x8xf32>
    tpu.vector_store %arg16[%c0_66, %c2, %c0_67, %c0_68], %145 {strides = array<i32>} : memref<2x8x8x8xf32, #tpu.memory_space<vmem>>, vector<1x1x8x8xf32>,
    %cst_69 = arith.constant dense<0.000000e+00> : vector<8x64xf32>
    %146 = tpu.matmul %142, %128, %cst_69 {dimension_numbers = #tpu.dot_dimension_numbers<[1], [0], [0], [1], [0, 0, 1, 1], [], []>} : vector<8x8xf32>, vector<8x64xf32>, vector<8x64xf32> -> vector<8x64xf32>
    %147 = vector.extract_strided_slice %123 {offsets = [8, 0], sizes = [8, 64], strides = [1, 1]} : vector<16x64xf32> to vector<8x64xf32>
    %148 = vector.extract_strided_slice %124 {offsets = [8, 0], sizes = [8, 64], strides = [1, 1]} : vector<16x64xf32> to vector<8x64xf32>
    %149 = vector.extract_strided_slice %125 {offsets = [8, 0], sizes = [8, 64], strides = [1, 1]} : vector<16x64xf32> to vector<8x64xf32>
    %cst_70 = arith.constant dense<0.000000e+00> : vector<8x8xf32>
    %150 = tpu.matmul %147, %148, %cst_70 {dimension_numbers = #tpu.dot_dimension_numbers<[1], [1], [0], [0], [0, 0, 1, 0], [], []>} : vector<8x64xf32>, vector<8x64xf32>, vector<8x8xf32> -> vector<8x8xf32>
    %151 = vector.extract_strided_slice %25 {offsets = [1, 0, 0], sizes = [1, 1, 8], strides = [1, 1, 1]} : vector<2x1x8xf32> to vector<1x1x8xf32>
    %152 = vector.shape_cast %151 : vector<1x1x8xf32> to vector<1x8xf32>
    %153 = vector.broadcast %152 : vector<1x8xf32> to vector<8x8xf32>
    %154 = arith.subf %150, %153 : vector<8x8xf32>
    %cst_71 = arith.constant dense<0xFF800000> : vector<8xf32>
    %155 = vector.multi_reduction <maximumf>, %154, %cst_71 [1] : vector<8x8xf32> to vector<8xf32>
    %156 = vector.shape_cast %155 : vector<8xf32> to vector<8x1xf32>
    %157 = vector.broadcast %156 : vector<8x1xf32> to vector<8x8xf32>
    %158 = arith.subf %154, %157 : vector<8x8xf32>
    %159 = math.exp %158 : vector<8x8xf32>
    %cst_72 = arith.constant dense<0.000000e+00> : vector<8xf32>
    %160 = vector.multi_reduction <add>, %159, %cst_72 [1] : vector<8x8xf32> to vector<8xf32>
    %161 = vector.shape_cast %160 : vector<8xf32> to vector<8x1xf32>
    %162 = vector.broadcast %161 : vector<8x1xf32> to vector<8x8xf32>
    %163 = arith.divf %159, %162 : vector<8x8xf32>
    %c1_73 = arith.constant 1 : index
    %c2_74 = arith.constant 2 : index
    %c0_75 = arith.constant 0 : index
    %c0_76 = arith.constant 0 : index
    %164 = vector.load %arg16[%c1_73, %c2_74, %c0_75, %c0_76] : memref<2x8x8x8xf32, #tpu.memory_space<vmem>>, vector<1x1x8x8xf32>
    %165 = vector.shape_cast %164 : vector<1x1x8x8xf32> to vector<8x8xf32>
    %166 = vector.shape_cast %163 : vector<8x8xf32> to vector<1x1x8x8xf32>
    tpu.vector_store %arg16[%c1_73, %c2_74, %c0_75, %c0_76], %166 {strides = array<i32>} : memref<2x8x8x8xf32, #tpu.memory_space<vmem>>, vector<1x1x8x8xf32>,
    %cst_77 = arith.constant dense<0.000000e+00> : vector<8x64xf32>
    %167 = tpu.matmul %163, %149, %cst_77 {dimension_numbers = #tpu.dot_dimension_numbers<[1], [0], [0], [1], [0, 0, 1, 1], [], []>} : vector<8x8xf32>, vector<8x64xf32>, vector<8x64xf32> -> vector<8x64xf32>
    %168 = tpu.concatenate %146, %167 in 0 : vector<8x64xf32>, vector<8x64xf32> -> vector<16x64xf32>
    %c128 = arith.constant 128 : index
    %c0_78 = arith.constant 0 : index
    %169 = vector.load %arg11[%c128, %c0_78] : memref<512x64xf32, #tpu.memory_space<vmem>>, vector<64x64xf32>
    %cst_79 = arith.constant dense<0.000000e+00> : vector<16x64xf32>
    %170 = tpu.matmul %168, %169, %cst_79 {dimension_numbers = #tpu.dot_dimension_numbers<[1], [0], [0], [1], [0, 0, 1, 1], [], []>} : vector<16x64xf32>, vector<64x64xf32>, vector<16x64xf32> -> vector<16x64xf32>
    %171 = arith.addf %122, %170 : vector<16x64xf32>
    %172 = vector.extract_strided_slice %10 {offsets = [0, 192], sizes = [16, 64], strides = [1, 1]} : vector<16x512xf32> to vector<16x64xf32>
    %173 = vector.extract_strided_slice %15 {offsets = [0, 192], sizes = [16, 64], strides = [1, 1]} : vector<16x512xf32> to vector<16x64xf32>
    %174 = vector.extract_strided_slice %20 {offsets = [0, 192], sizes = [16, 64], strides = [1, 1]} : vector<16x512xf32> to vector<16x64xf32>
    %175 = vector.extract_strided_slice %172 {offsets = [0, 0], sizes = [8, 64], strides = [1, 1]} : vector<16x64xf32> to vector<8x64xf32>
    %176 = vector.extract_strided_slice %173 {offsets = [0, 0], sizes = [8, 64], strides = [1, 1]} : vector<16x64xf32> to vector<8x64xf32>
    %177 = vector.extract_strided_slice %174 {offsets = [0, 0], sizes = [8, 64], strides = [1, 1]} : vector<16x64xf32> to vector<8x64xf32>
    %cst_80 = arith.constant dense<0.000000e+00> : vector<8x8xf32>
    %178 = tpu.matmul %175, %176, %cst_80 {dimension_numbers = #tpu.dot_dimension_numbers<[1], [1], [0], [0], [0, 0, 1, 0], [], []>} : vector<8x64xf32>, vector<8x64xf32>, vector<8x8xf32> -> vector<8x8xf32>
    %179 = vector.extract_strided_slice %25 {offsets = [0, 0, 0], sizes = [1, 1, 8], strides = [1, 1, 1]} : vector<2x1x8xf32> to vector<1x1x8xf32>
    %180 = vector.shape_cast %179 : vector<1x1x8xf32> to vector<1x8xf32>
    %181 = vector.broadcast %180 : vector<1x8xf32> to vector<8x8xf32>
    %182 = arith.subf %178, %181 : vector<8x8xf32>
    %cst_81 = arith.constant dense<0xFF800000> : vector<8xf32>
    %183 = vector.multi_reduction <maximumf>, %182, %cst_81 [1] : vector<8x8xf32> to vector<8xf32>
    %184 = vector.shape_cast %183 : vector<8xf32> to vector<8x1xf32>
    %185 = vector.broadcast %184 : vector<8x1xf32> to vector<8x8xf32>
    %186 = arith.subf %182, %185 : vector<8x8xf32>
    %187 = math.exp %186 : vector<8x8xf32>
    %cst_82 = arith.constant dense<0.000000e+00> : vector<8xf32>
    %188 = vector.multi_reduction <add>, %187, %cst_82 [1] : vector<8x8xf32> to vector<8xf32>
    %189 = vector.shape_cast %188 : vector<8xf32> to vector<8x1xf32>
    %190 = vector.broadcast %189 : vector<8x1xf32> to vector<8x8xf32>
    %191 = arith.divf %187, %190 : vector<8x8xf32>
    %c0_83 = arith.constant 0 : index
    %c3 = arith.constant 3 : index
    %c0_84 = arith.constant 0 : index
    %c0_85 = arith.constant 0 : index
    %192 = vector.load %arg16[%c0_83, %c3, %c0_84, %c0_85] : memref<2x8x8x8xf32, #tpu.memory_space<vmem>>, vector<1x1x8x8xf32>
    %193 = vector.shape_cast %192 : vector<1x1x8x8xf32> to vector<8x8xf32>
    %194 = vector.shape_cast %191 : vector<8x8xf32> to vector<1x1x8x8xf32>
    tpu.vector_store %arg16[%c0_83, %c3, %c0_84, %c0_85], %194 {strides = array<i32>} : memref<2x8x8x8xf32, #tpu.memory_space<vmem>>, vector<1x1x8x8xf32>,
    %cst_86 = arith.constant dense<0.000000e+00> : vector<8x64xf32>
    %195 = tpu.matmul %191, %177, %cst_86 {dimension_numbers = #tpu.dot_dimension_numbers<[1], [0], [0], [1], [0, 0, 1, 1], [], []>} : vector<8x8xf32>, vector<8x64xf32>, vector<8x64xf32> -> vector<8x64xf32>
    %196 = vector.extract_strided_slice %172 {offsets = [8, 0], sizes = [8, 64], strides = [1, 1]} : vector<16x64xf32> to vector<8x64xf32>
    %197 = vector.extract_strided_slice %173 {offsets = [8, 0], sizes = [8, 64], strides = [1, 1]} : vector<16x64xf32> to vector<8x64xf32>
    %198 = vector.extract_strided_slice %174 {offsets = [8, 0], sizes = [8, 64], strides = [1, 1]} : vector<16x64xf32> to vector<8x64xf32>
    %cst_87 = arith.constant dense<0.000000e+00> : vector<8x8xf32>
    %199 = tpu.matmul %196, %197, %cst_87 {dimension_numbers = #tpu.dot_dimension_numbers<[1], [1], [0], [0], [0, 0, 1, 0], [], []>} : vector<8x64xf32>, vector<8x64xf32>, vector<8x8xf32> -> vector<8x8xf32>
    %200 = vector.extract_strided_slice %25 {offsets = [1, 0, 0], sizes = [1, 1, 8], strides = [1, 1, 1]} : vector<2x1x8xf32> to vector<1x1x8xf32>
    %201 = vector.shape_cast %200 : vector<1x1x8xf32> to vector<1x8xf32>
    %202 = vector.broadcast %201 : vector<1x8xf32> to vector<8x8xf32>
    %203 = arith.subf %199, %202 : vector<8x8xf32>
    %cst_88 = arith.constant dense<0xFF800000> : vector<8xf32>
    %204 = vector.multi_reduction <maximumf>, %203, %cst_88 [1] : vector<8x8xf32> to vector<8xf32>
    %205 = vector.shape_cast %204 : vector<8xf32> to vector<8x1xf32>
    %206 = vector.broadcast %205 : vector<8x1xf32> to vector<8x8xf32>
    %207 = arith.subf %203, %206 : vector<8x8xf32>
    %208 = math.exp %207 : vector<8x8xf32>
    %cst_89 = arith.constant dense<0.000000e+00> : vector<8xf32>
    %209 = vector.multi_reduction <add>, %208, %cst_89 [1] : vector<8x8xf32> to vector<8xf32>
    %210 = vector.shape_cast %209 : vector<8xf32> to vector<8x1xf32>
    %211 = vector.broadcast %210 : vector<8x1xf32> to vector<8x8xf32>
    %212 = arith.divf %208, %211 : vector<8x8xf32>
    %c1_90 = arith.constant 1 : index
    %c3_91 = arith.constant 3 : index
    %c0_92 = arith.constant 0 : index
    %c0_93 = arith.constant 0 : index
    %213 = vector.load %arg16[%c1_90, %c3_91, %c0_92, %c0_93] : memref<2x8x8x8xf32, #tpu.memory_space<vmem>>, vector<1x1x8x8xf32>
    %214 = vector.shape_cast %213 : vector<1x1x8x8xf32> to vector<8x8xf32>
    %215 = vector.shape_cast %212 : vector<8x8xf32> to vector<1x1x8x8xf32>
    tpu.vector_store %arg16[%c1_90, %c3_91, %c0_92, %c0_93], %215 {strides = array<i32>} : memref<2x8x8x8xf32, #tpu.memory_space<vmem>>, vector<1x1x8x8xf32>,
    %cst_94 = arith.constant dense<0.000000e+00> : vector<8x64xf32>
    %216 = tpu.matmul %212, %198, %cst_94 {dimension_numbers = #tpu.dot_dimension_numbers<[1], [0], [0], [1], [0, 0, 1, 1], [], []>} : vector<8x8xf32>, vector<8x64xf32>, vector<8x64xf32> -> vector<8x64xf32>
    %217 = tpu.concatenate %195, %216 in 0 : vector<8x64xf32>, vector<8x64xf32> -> vector<16x64xf32>
    %c192 = arith.constant 192 : index
    %c0_95 = arith.constant 0 : index
    %218 = vector.load %arg11[%c192, %c0_95] : memref<512x64xf32, #tpu.memory_space<vmem>>, vector<64x64xf32>
    %cst_96 = arith.constant dense<0.000000e+00> : vector<16x64xf32>
    %219 = tpu.matmul %217, %218, %cst_96 {dimension_numbers = #tpu.dot_dimension_numbers<[1], [0], [0], [1], [0, 0, 1, 1], [], []>} : vector<16x64xf32>, vector<64x64xf32>, vector<16x64xf32> -> vector<16x64xf32>
    %220 = arith.addf %171, %219 : vector<16x64xf32>
    %221 = vector.extract_strided_slice %10 {offsets = [0, 256], sizes = [16, 64], strides = [1, 1]} : vector<16x512xf32> to vector<16x64xf32>
    %222 = vector.extract_strided_slice %15 {offsets = [0, 256], sizes = [16, 64], strides = [1, 1]} : vector<16x512xf32> to vector<16x64xf32>
    %223 = vector.extract_strided_slice %20 {offsets = [0, 256], sizes = [16, 64], strides = [1, 1]} : vector<16x512xf32> to vector<16x64xf32>
    %224 = vector.extract_strided_slice %221 {offsets = [0, 0], sizes = [8, 64], strides = [1, 1]} : vector<16x64xf32> to vector<8x64xf32>
    %225 = vector.extract_strided_slice %222 {offsets = [0, 0], sizes = [8, 64], strides = [1, 1]} : vector<16x64xf32> to vector<8x64xf32>
    %226 = vector.extract_strided_slice %223 {offsets = [0, 0], sizes = [8, 64], strides = [1, 1]} : vector<16x64xf32> to vector<8x64xf32>
    %cst_97 = arith.constant dense<0.000000e+00> : vector<8x8xf32>
    %227 = tpu.matmul %224, %225, %cst_97 {dimension_numbers = #tpu.dot_dimension_numbers<[1], [1], [0], [0], [0, 0, 1, 0], [], []>} : vector<8x64xf32>, vector<8x64xf32>, vector<8x8xf32> -> vector<8x8xf32>
    %228 = vector.extract_strided_slice %25 {offsets = [0, 0, 0], sizes = [1, 1, 8], strides = [1, 1, 1]} : vector<2x1x8xf32> to vector<1x1x8xf32>
    %229 = vector.shape_cast %228 : vector<1x1x8xf32> to vector<1x8xf32>
    %230 = vector.broadcast %229 : vector<1x8xf32> to vector<8x8xf32>
    %231 = arith.subf %227, %230 : vector<8x8xf32>
    %cst_98 = arith.constant dense<0xFF800000> : vector<8xf32>
    %232 = vector.multi_reduction <maximumf>, %231, %cst_98 [1] : vector<8x8xf32> to vector<8xf32>
    %233 = vector.shape_cast %232 : vector<8xf32> to vector<8x1xf32>
    %234 = vector.broadcast %233 : vector<8x1xf32> to vector<8x8xf32>
    %235 = arith.subf %231, %234 : vector<8x8xf32>
    %236 = math.exp %235 : vector<8x8xf32>
    %cst_99 = arith.constant dense<0.000000e+00> : vector<8xf32>
    %237 = vector.multi_reduction <add>, %236, %cst_99 [1] : vector<8x8xf32> to vector<8xf32>
    %238 = vector.shape_cast %237 : vector<8xf32> to vector<8x1xf32>
    %239 = vector.broadcast %238 : vector<8x1xf32> to vector<8x8xf32>
    %240 = arith.divf %236, %239 : vector<8x8xf32>
    %c0_100 = arith.constant 0 : index
    %c4 = arith.constant 4 : index
    %c0_101 = arith.constant 0 : index
    %c0_102 = arith.constant 0 : index
    %241 = vector.load %arg16[%c0_100, %c4, %c0_101, %c0_102] : memref<2x8x8x8xf32, #tpu.memory_space<vmem>>, vector<1x1x8x8xf32>
    %242 = vector.shape_cast %241 : vector<1x1x8x8xf32> to vector<8x8xf32>
    %243 = vector.shape_cast %240 : vector<8x8xf32> to vector<1x1x8x8xf32>
    tpu.vector_store %arg16[%c0_100, %c4, %c0_101, %c0_102], %243 {strides = array<i32>} : memref<2x8x8x8xf32, #tpu.memory_space<vmem>>, vector<1x1x8x8xf32>,
    %cst_103 = arith.constant dense<0.000000e+00> : vector<8x64xf32>
    %244 = tpu.matmul %240, %226, %cst_103 {dimension_numbers = #tpu.dot_dimension_numbers<[1], [0], [0], [1], [0, 0, 1, 1], [], []>} : vector<8x8xf32>, vector<8x64xf32>, vector<8x64xf32> -> vector<8x64xf32>
    %245 = vector.extract_strided_slice %221 {offsets = [8, 0], sizes = [8, 64], strides = [1, 1]} : vector<16x64xf32> to vector<8x64xf32>
    %246 = vector.extract_strided_slice %222 {offsets = [8, 0], sizes = [8, 64], strides = [1, 1]} : vector<16x64xf32> to vector<8x64xf32>
    %247 = vector.extract_strided_slice %223 {offsets = [8, 0], sizes = [8, 64], strides = [1, 1]} : vector<16x64xf32> to vector<8x64xf32>
    %cst_104 = arith.constant dense<0.000000e+00> : vector<8x8xf32>
    %248 = tpu.matmul %245, %246, %cst_104 {dimension_numbers = #tpu.dot_dimension_numbers<[1], [1], [0], [0], [0, 0, 1, 0], [], []>} : vector<8x64xf32>, vector<8x64xf32>, vector<8x8xf32> -> vector<8x8xf32>
    %249 = vector.extract_strided_slice %25 {offsets = [1, 0, 0], sizes = [1, 1, 8], strides = [1, 1, 1]} : vector<2x1x8xf32> to vector<1x1x8xf32>
    %250 = vector.shape_cast %249 : vector<1x1x8xf32> to vector<1x8xf32>
    %251 = vector.broadcast %250 : vector<1x8xf32> to vector<8x8xf32>
    %252 = arith.subf %248, %251 : vector<8x8xf32>
    %cst_105 = arith.constant dense<0xFF800000> : vector<8xf32>
    %253 = vector.multi_reduction <maximumf>, %252, %cst_105 [1] : vector<8x8xf32> to vector<8xf32>
    %254 = vector.shape_cast %253 : vector<8xf32> to vector<8x1xf32>
    %255 = vector.broadcast %254 : vector<8x1xf32> to vector<8x8xf32>
    %256 = arith.subf %252, %255 : vector<8x8xf32>
    %257 = math.exp %256 : vector<8x8xf32>
    %cst_106 = arith.constant dense<0.000000e+00> : vector<8xf32>
    %258 = vector.multi_reduction <add>, %257, %cst_106 [1] : vector<8x8xf32> to vector<8xf32>
    %259 = vector.shape_cast %258 : vector<8xf32> to vector<8x1xf32>
    %260 = vector.broadcast %259 : vector<8x1xf32> to vector<8x8xf32>
    %261 = arith.divf %257, %260 : vector<8x8xf32>
    %c1_107 = arith.constant 1 : index
    %c4_108 = arith.constant 4 : index
    %c0_109 = arith.constant 0 : index
    %c0_110 = arith.constant 0 : index
    %262 = vector.load %arg16[%c1_107, %c4_108, %c0_109, %c0_110] : memref<2x8x8x8xf32, #tpu.memory_space<vmem>>, vector<1x1x8x8xf32>
    %263 = vector.shape_cast %262 : vector<1x1x8x8xf32> to vector<8x8xf32>
    %264 = vector.shape_cast %261 : vector<8x8xf32> to vector<1x1x8x8xf32>
    tpu.vector_store %arg16[%c1_107, %c4_108, %c0_109, %c0_110], %264 {strides = array<i32>} : memref<2x8x8x8xf32, #tpu.memory_space<vmem>>, vector<1x1x8x8xf32>,
    %cst_111 = arith.constant dense<0.000000e+00> : vector<8x64xf32>
    %265 = tpu.matmul %261, %247, %cst_111 {dimension_numbers = #tpu.dot_dimension_numbers<[1], [0], [0], [1], [0, 0, 1, 1], [], []>} : vector<8x8xf32>, vector<8x64xf32>, vector<8x64xf32> -> vector<8x64xf32>
    %266 = tpu.concatenate %244, %265 in 0 : vector<8x64xf32>, vector<8x64xf32> -> vector<16x64xf32>
    %c256 = arith.constant 256 : index
    %c0_112 = arith.constant 0 : index
    %267 = vector.load %arg11[%c256, %c0_112] : memref<512x64xf32, #tpu.memory_space<vmem>>, vector<64x64xf32>
    %cst_113 = arith.constant dense<0.000000e+00> : vector<16x64xf32>
    %268 = tpu.matmul %266, %267, %cst_113 {dimension_numbers = #tpu.dot_dimension_numbers<[1], [0], [0], [1], [0, 0, 1, 1], [], []>} : vector<16x64xf32>, vector<64x64xf32>, vector<16x64xf32> -> vector<16x64xf32>
    %269 = arith.addf %220, %268 : vector<16x64xf32>
    %270 = vector.extract_strided_slice %10 {offsets = [0, 320], sizes = [16, 64], strides = [1, 1]} : vector<16x512xf32> to vector<16x64xf32>
    %271 = vector.extract_strided_slice %15 {offsets = [0, 320], sizes = [16, 64], strides = [1, 1]} : vector<16x512xf32> to vector<16x64xf32>
    %272 = vector.extract_strided_slice %20 {offsets = [0, 320], sizes = [16, 64], strides = [1, 1]} : vector<16x512xf32> to vector<16x64xf32>
    %273 = vector.extract_strided_slice %270 {offsets = [0, 0], sizes = [8, 64], strides = [1, 1]} : vector<16x64xf32> to vector<8x64xf32>
    %274 = vector.extract_strided_slice %271 {offsets = [0, 0], sizes = [8, 64], strides = [1, 1]} : vector<16x64xf32> to vector<8x64xf32>
    %275 = vector.extract_strided_slice %272 {offsets = [0, 0], sizes = [8, 64], strides = [1, 1]} : vector<16x64xf32> to vector<8x64xf32>
    %cst_114 = arith.constant dense<0.000000e+00> : vector<8x8xf32>
    %276 = tpu.matmul %273, %274, %cst_114 {dimension_numbers = #tpu.dot_dimension_numbers<[1], [1], [0], [0], [0, 0, 1, 0], [], []>} : vector<8x64xf32>, vector<8x64xf32>, vector<8x8xf32> -> vector<8x8xf32>
    %277 = vector.extract_strided_slice %25 {offsets = [0, 0, 0], sizes = [1, 1, 8], strides = [1, 1, 1]} : vector<2x1x8xf32> to vector<1x1x8xf32>
    %278 = vector.shape_cast %277 : vector<1x1x8xf32> to vector<1x8xf32>
    %279 = vector.broadcast %278 : vector<1x8xf32> to vector<8x8xf32>
    %280 = arith.subf %276, %279 : vector<8x8xf32>
    %cst_115 = arith.constant dense<0xFF800000> : vector<8xf32>
    %281 = vector.multi_reduction <maximumf>, %280, %cst_115 [1] : vector<8x8xf32> to vector<8xf32>
    %282 = vector.shape_cast %281 : vector<8xf32> to vector<8x1xf32>
    %283 = vector.broadcast %282 : vector<8x1xf32> to vector<8x8xf32>
    %284 = arith.subf %280, %283 : vector<8x8xf32>
    %285 = math.exp %284 : vector<8x8xf32>
    %cst_116 = arith.constant dense<0.000000e+00> : vector<8xf32>
    %286 = vector.multi_reduction <add>, %285, %cst_116 [1] : vector<8x8xf32> to vector<8xf32>
    %287 = vector.shape_cast %286 : vector<8xf32> to vector<8x1xf32>
    %288 = vector.broadcast %287 : vector<8x1xf32> to vector<8x8xf32>
    %289 = arith.divf %285, %288 : vector<8x8xf32>
    %c0_117 = arith.constant 0 : index
    %c5 = arith.constant 5 : index
    %c0_118 = arith.constant 0 : index
    %c0_119 = arith.constant 0 : index
    %290 = vector.load %arg16[%c0_117, %c5, %c0_118, %c0_119] : memref<2x8x8x8xf32, #tpu.memory_space<vmem>>, vector<1x1x8x8xf32>
    %291 = vector.shape_cast %290 : vector<1x1x8x8xf32> to vector<8x8xf32>
    %292 = vector.shape_cast %289 : vector<8x8xf32> to vector<1x1x8x8xf32>
    tpu.vector_store %arg16[%c0_117, %c5, %c0_118, %c0_119], %292 {strides = array<i32>} : memref<2x8x8x8xf32, #tpu.memory_space<vmem>>, vector<1x1x8x8xf32>,
    %cst_120 = arith.constant dense<0.000000e+00> : vector<8x64xf32>
    %293 = tpu.matmul %289, %275, %cst_120 {dimension_numbers = #tpu.dot_dimension_numbers<[1], [0], [0], [1], [0, 0, 1, 1], [], []>} : vector<8x8xf32>, vector<8x64xf32>, vector<8x64xf32> -> vector<8x64xf32>
    %294 = vector.extract_strided_slice %270 {offsets = [8, 0], sizes = [8, 64], strides = [1, 1]} : vector<16x64xf32> to vector<8x64xf32>
    %295 = vector.extract_strided_slice %271 {offsets = [8, 0], sizes = [8, 64], strides = [1, 1]} : vector<16x64xf32> to vector<8x64xf32>
    %296 = vector.extract_strided_slice %272 {offsets = [8, 0], sizes = [8, 64], strides = [1, 1]} : vector<16x64xf32> to vector<8x64xf32>
    %cst_121 = arith.constant dense<0.000000e+00> : vector<8x8xf32>
    %297 = tpu.matmul %294, %295, %cst_121 {dimension_numbers = #tpu.dot_dimension_numbers<[1], [1], [0], [0], [0, 0, 1, 0], [], []>} : vector<8x64xf32>, vector<8x64xf32>, vector<8x8xf32> -> vector<8x8xf32>
    %298 = vector.extract_strided_slice %25 {offsets = [1, 0, 0], sizes = [1, 1, 8], strides = [1, 1, 1]} : vector<2x1x8xf32> to vector<1x1x8xf32>
    %299 = vector.shape_cast %298 : vector<1x1x8xf32> to vector<1x8xf32>
    %300 = vector.broadcast %299 : vector<1x8xf32> to vector<8x8xf32>
    %301 = arith.subf %297, %300 : vector<8x8xf32>
    %cst_122 = arith.constant dense<0xFF800000> : vector<8xf32>
    %302 = vector.multi_reduction <maximumf>, %301, %cst_122 [1] : vector<8x8xf32> to vector<8xf32>
    %303 = vector.shape_cast %302 : vector<8xf32> to vector<8x1xf32>
    %304 = vector.broadcast %303 : vector<8x1xf32> to vector<8x8xf32>
    %305 = arith.subf %301, %304 : vector<8x8xf32>
    %306 = math.exp %305 : vector<8x8xf32>
    %cst_123 = arith.constant dense<0.000000e+00> : vector<8xf32>
    %307 = vector.multi_reduction <add>, %306, %cst_123 [1] : vector<8x8xf32> to vector<8xf32>
    %308 = vector.shape_cast %307 : vector<8xf32> to vector<8x1xf32>
    %309 = vector.broadcast %308 : vector<8x1xf32> to vector<8x8xf32>
    %310 = arith.divf %306, %309 : vector<8x8xf32>
    %c1_124 = arith.constant 1 : index
    %c5_125 = arith.constant 5 : index
    %c0_126 = arith.constant 0 : index
    %c0_127 = arith.constant 0 : index
    %311 = vector.load %arg16[%c1_124, %c5_125, %c0_126, %c0_127] : memref<2x8x8x8xf32, #tpu.memory_space<vmem>>, vector<1x1x8x8xf32>
    %312 = vector.shape_cast %311 : vector<1x1x8x8xf32> to vector<8x8xf32>
    %313 = vector.shape_cast %310 : vector<8x8xf32> to vector<1x1x8x8xf32>
    tpu.vector_store %arg16[%c1_124, %c5_125, %c0_126, %c0_127], %313 {strides = array<i32>} : memref<2x8x8x8xf32, #tpu.memory_space<vmem>>, vector<1x1x8x8xf32>,
    %cst_128 = arith.constant dense<0.000000e+00> : vector<8x64xf32>
    %314 = tpu.matmul %310, %296, %cst_128 {dimension_numbers = #tpu.dot_dimension_numbers<[1], [0], [0], [1], [0, 0, 1, 1], [], []>} : vector<8x8xf32>, vector<8x64xf32>, vector<8x64xf32> -> vector<8x64xf32>
    %315 = tpu.concatenate %293, %314 in 0 : vector<8x64xf32>, vector<8x64xf32> -> vector<16x64xf32>
    %c320 = arith.constant 320 : index
    %c0_129 = arith.constant 0 : index
    %316 = vector.load %arg11[%c320, %c0_129] : memref<512x64xf32, #tpu.memory_space<vmem>>, vector<64x64xf32>
    %cst_130 = arith.constant dense<0.000000e+00> : vector<16x64xf32>
    %317 = tpu.matmul %315, %316, %cst_130 {dimension_numbers = #tpu.dot_dimension_numbers<[1], [0], [0], [1], [0, 0, 1, 1], [], []>} : vector<16x64xf32>, vector<64x64xf32>, vector<16x64xf32> -> vector<16x64xf32>
    %318 = arith.addf %269, %317 : vector<16x64xf32>
    %319 = vector.extract_strided_slice %10 {offsets = [0, 384], sizes = [16, 64], strides = [1, 1]} : vector<16x512xf32> to vector<16x64xf32>
    %320 = vector.extract_strided_slice %15 {offsets = [0, 384], sizes = [16, 64], strides = [1, 1]} : vector<16x512xf32> to vector<16x64xf32>
    %321 = vector.extract_strided_slice %20 {offsets = [0, 384], sizes = [16, 64], strides = [1, 1]} : vector<16x512xf32> to vector<16x64xf32>
    %322 = vector.extract_strided_slice %319 {offsets = [0, 0], sizes = [8, 64], strides = [1, 1]} : vector<16x64xf32> to vector<8x64xf32>
    %323 = vector.extract_strided_slice %320 {offsets = [0, 0], sizes = [8, 64], strides = [1, 1]} : vector<16x64xf32> to vector<8x64xf32>
    %324 = vector.extract_strided_slice %321 {offsets = [0, 0], sizes = [8, 64], strides = [1, 1]} : vector<16x64xf32> to vector<8x64xf32>
    %cst_131 = arith.constant dense<0.000000e+00> : vector<8x8xf32>
    %325 = tpu.matmul %322, %323, %cst_131 {dimension_numbers = #tpu.dot_dimension_numbers<[1], [1], [0], [0], [0, 0, 1, 0], [], []>} : vector<8x64xf32>, vector<8x64xf32>, vector<8x8xf32> -> vector<8x8xf32>
    %326 = vector.extract_strided_slice %25 {offsets = [0, 0, 0], sizes = [1, 1, 8], strides = [1, 1, 1]} : vector<2x1x8xf32> to vector<1x1x8xf32>
    %327 = vector.shape_cast %326 : vector<1x1x8xf32> to vector<1x8xf32>
    %328 = vector.broadcast %327 : vector<1x8xf32> to vector<8x8xf32>
    %329 = arith.subf %325, %328 : vector<8x8xf32>
    %cst_132 = arith.constant dense<0xFF800000> : vector<8xf32>
    %330 = vector.multi_reduction <maximumf>, %329, %cst_132 [1] : vector<8x8xf32> to vector<8xf32>
    %331 = vector.shape_cast %330 : vector<8xf32> to vector<8x1xf32>
    %332 = vector.broadcast %331 : vector<8x1xf32> to vector<8x8xf32>
    %333 = arith.subf %329, %332 : vector<8x8xf32>
    %334 = math.exp %333 : vector<8x8xf32>
    %cst_133 = arith.constant dense<0.000000e+00> : vector<8xf32>
    %335 = vector.multi_reduction <add>, %334, %cst_133 [1] : vector<8x8xf32> to vector<8xf32>
    %336 = vector.shape_cast %335 : vector<8xf32> to vector<8x1xf32>
    %337 = vector.broadcast %336 : vector<8x1xf32> to vector<8x8xf32>
    %338 = arith.divf %334, %337 : vector<8x8xf32>
    %c0_134 = arith.constant 0 : index
    %c6 = arith.constant 6 : index
    %c0_135 = arith.constant 0 : index
    %c0_136 = arith.constant 0 : index
    %339 = vector.load %arg16[%c0_134, %c6, %c0_135, %c0_136] : memref<2x8x8x8xf32, #tpu.memory_space<vmem>>, vector<1x1x8x8xf32>
    %340 = vector.shape_cast %339 : vector<1x1x8x8xf32> to vector<8x8xf32>
    %341 = vector.shape_cast %338 : vector<8x8xf32> to vector<1x1x8x8xf32>
    tpu.vector_store %arg16[%c0_134, %c6, %c0_135, %c0_136], %341 {strides = array<i32>} : memref<2x8x8x8xf32, #tpu.memory_space<vmem>>, vector<1x1x8x8xf32>,
    %cst_137 = arith.constant dense<0.000000e+00> : vector<8x64xf32>
    %342 = tpu.matmul %338, %324, %cst_137 {dimension_numbers = #tpu.dot_dimension_numbers<[1], [0], [0], [1], [0, 0, 1, 1], [], []>} : vector<8x8xf32>, vector<8x64xf32>, vector<8x64xf32> -> vector<8x64xf32>
    %343 = vector.extract_strided_slice %319 {offsets = [8, 0], sizes = [8, 64], strides = [1, 1]} : vector<16x64xf32> to vector<8x64xf32>
    %344 = vector.extract_strided_slice %320 {offsets = [8, 0], sizes = [8, 64], strides = [1, 1]} : vector<16x64xf32> to vector<8x64xf32>
    %345 = vector.extract_strided_slice %321 {offsets = [8, 0], sizes = [8, 64], strides = [1, 1]} : vector<16x64xf32> to vector<8x64xf32>
    %cst_138 = arith.constant dense<0.000000e+00> : vector<8x8xf32>
    %346 = tpu.matmul %343, %344, %cst_138 {dimension_numbers = #tpu.dot_dimension_numbers<[1], [1], [0], [0], [0, 0, 1, 0], [], []>} : vector<8x64xf32>, vector<8x64xf32>, vector<8x8xf32> -> vector<8x8xf32>
    %347 = vector.extract_strided_slice %25 {offsets = [1, 0, 0], sizes = [1, 1, 8], strides = [1, 1, 1]} : vector<2x1x8xf32> to vector<1x1x8xf32>
    %348 = vector.shape_cast %347 : vector<1x1x8xf32> to vector<1x8xf32>
    %349 = vector.broadcast %348 : vector<1x8xf32> to vector<8x8xf32>
    %350 = arith.subf %346, %349 : vector<8x8xf32>
    %cst_139 = arith.constant dense<0xFF800000> : vector<8xf32>
    %351 = vector.multi_reduction <maximumf>, %350, %cst_139 [1] : vector<8x8xf32> to vector<8xf32>
    %352 = vector.shape_cast %351 : vector<8xf32> to vector<8x1xf32>
    %353 = vector.broadcast %352 : vector<8x1xf32> to vector<8x8xf32>
    %354 = arith.subf %350, %353 : vector<8x8xf32>
    %355 = math.exp %354 : vector<8x8xf32>
    %cst_140 = arith.constant dense<0.000000e+00> : vector<8xf32>
    %356 = vector.multi_reduction <add>, %355, %cst_140 [1] : vector<8x8xf32> to vector<8xf32>
    %357 = vector.shape_cast %356 : vector<8xf32> to vector<8x1xf32>
    %358 = vector.broadcast %357 : vector<8x1xf32> to vector<8x8xf32>
    %359 = arith.divf %355, %358 : vector<8x8xf32>
    %c1_141 = arith.constant 1 : index
    %c6_142 = arith.constant 6 : index
    %c0_143 = arith.constant 0 : index
    %c0_144 = arith.constant 0 : index
    %360 = vector.load %arg16[%c1_141, %c6_142, %c0_143, %c0_144] : memref<2x8x8x8xf32, #tpu.memory_space<vmem>>, vector<1x1x8x8xf32>
    %361 = vector.shape_cast %360 : vector<1x1x8x8xf32> to vector<8x8xf32>
    %362 = vector.shape_cast %359 : vector<8x8xf32> to vector<1x1x8x8xf32>
    tpu.vector_store %arg16[%c1_141, %c6_142, %c0_143, %c0_144], %362 {strides = array<i32>} : memref<2x8x8x8xf32, #tpu.memory_space<vmem>>, vector<1x1x8x8xf32>,
    %cst_145 = arith.constant dense<0.000000e+00> : vector<8x64xf32>
    %363 = tpu.matmul %359, %345, %cst_145 {dimension_numbers = #tpu.dot_dimension_numbers<[1], [0], [0], [1], [0, 0, 1, 1], [], []>} : vector<8x8xf32>, vector<8x64xf32>, vector<8x64xf32> -> vector<8x64xf32>
    %364 = tpu.concatenate %342, %363 in 0 : vector<8x64xf32>, vector<8x64xf32> -> vector<16x64xf32>
    %c384 = arith.constant 384 : index
    %c0_146 = arith.constant 0 : index
    %365 = vector.load %arg11[%c384, %c0_146] : memref<512x64xf32, #tpu.memory_space<vmem>>, vector<64x64xf32>
    %cst_147 = arith.constant dense<0.000000e+00> : vector<16x64xf32>
    %366 = tpu.matmul %364, %365, %cst_147 {dimension_numbers = #tpu.dot_dimension_numbers<[1], [0], [0], [1], [0, 0, 1, 1], [], []>} : vector<16x64xf32>, vector<64x64xf32>, vector<16x64xf32> -> vector<16x64xf32>
    %367 = arith.addf %318, %366 : vector<16x64xf32>
    %368 = vector.extract_strided_slice %10 {offsets = [0, 448], sizes = [16, 64], strides = [1, 1]} : vector<16x512xf32> to vector<16x64xf32>
    %369 = vector.extract_strided_slice %15 {offsets = [0, 448], sizes = [16, 64], strides = [1, 1]} : vector<16x512xf32> to vector<16x64xf32>
    %370 = vector.extract_strided_slice %20 {offsets = [0, 448], sizes = [16, 64], strides = [1, 1]} : vector<16x512xf32> to vector<16x64xf32>
    %371 = vector.extract_strided_slice %368 {offsets = [0, 0], sizes = [8, 64], strides = [1, 1]} : vector<16x64xf32> to vector<8x64xf32>
    %372 = vector.extract_strided_slice %369 {offsets = [0, 0], sizes = [8, 64], strides = [1, 1]} : vector<16x64xf32> to vector<8x64xf32>
    %373 = vector.extract_strided_slice %370 {offsets = [0, 0], sizes = [8, 64], strides = [1, 1]} : vector<16x64xf32> to vector<8x64xf32>
    %cst_148 = arith.constant dense<0.000000e+00> : vector<8x8xf32>
    %374 = tpu.matmul %371, %372, %cst_148 {dimension_numbers = #tpu.dot_dimension_numbers<[1], [1], [0], [0], [0, 0, 1, 0], [], []>} : vector<8x64xf32>, vector<8x64xf32>, vector<8x8xf32> -> vector<8x8xf32>
    %375 = vector.extract_strided_slice %25 {offsets = [0, 0, 0], sizes = [1, 1, 8], strides = [1, 1, 1]} : vector<2x1x8xf32> to vector<1x1x8xf32>
    %376 = vector.shape_cast %375 : vector<1x1x8xf32> to vector<1x8xf32>
    %377 = vector.broadcast %376 : vector<1x8xf32> to vector<8x8xf32>
    %378 = arith.subf %374, %377 : vector<8x8xf32>
    %cst_149 = arith.constant dense<0xFF800000> : vector<8xf32>
    %379 = vector.multi_reduction <maximumf>, %378, %cst_149 [1] : vector<8x8xf32> to vector<8xf32>
    %380 = vector.shape_cast %379 : vector<8xf32> to vector<8x1xf32>
    %381 = vector.broadcast %380 : vector<8x1xf32> to vector<8x8xf32>
    %382 = arith.subf %378, %381 : vector<8x8xf32>
    %383 = math.exp %382 : vector<8x8xf32>
    %cst_150 = arith.constant dense<0.000000e+00> : vector<8xf32>
    %384 = vector.multi_reduction <add>, %383, %cst_150 [1] : vector<8x8xf32> to vector<8xf32>
    %385 = vector.shape_cast %384 : vector<8xf32> to vector<8x1xf32>
    %386 = vector.broadcast %385 : vector<8x1xf32> to vector<8x8xf32>
    %387 = arith.divf %383, %386 : vector<8x8xf32>
    %c0_151 = arith.constant 0 : index
    %c7 = arith.constant 7 : index
    %c0_152 = arith.constant 0 : index
    %c0_153 = arith.constant 0 : index
    %388 = vector.load %arg16[%c0_151, %c7, %c0_152, %c0_153] : memref<2x8x8x8xf32, #tpu.memory_space<vmem>>, vector<1x1x8x8xf32>
    %389 = vector.shape_cast %388 : vector<1x1x8x8xf32> to vector<8x8xf32>
    %390 = vector.shape_cast %387 : vector<8x8xf32> to vector<1x1x8x8xf32>
    tpu.vector_store %arg16[%c0_151, %c7, %c0_152, %c0_153], %390 {strides = array<i32>} : memref<2x8x8x8xf32, #tpu.memory_space<vmem>>, vector<1x1x8x8xf32>,
    %cst_154 = arith.constant dense<0.000000e+00> : vector<8x64xf32>
    %391 = tpu.matmul %387, %373, %cst_154 {dimension_numbers = #tpu.dot_dimension_numbers<[1], [0], [0], [1], [0, 0, 1, 1], [], []>} : vector<8x8xf32>, vector<8x64xf32>, vector<8x64xf32> -> vector<8x64xf32>
    %392 = vector.extract_strided_slice %368 {offsets = [8, 0], sizes = [8, 64], strides = [1, 1]} : vector<16x64xf32> to vector<8x64xf32>
    %393 = vector.extract_strided_slice %369 {offsets = [8, 0], sizes = [8, 64], strides = [1, 1]} : vector<16x64xf32> to vector<8x64xf32>
    %394 = vector.extract_strided_slice %370 {offsets = [8, 0], sizes = [8, 64], strides = [1, 1]} : vector<16x64xf32> to vector<8x64xf32>
    %cst_155 = arith.constant dense<0.000000e+00> : vector<8x8xf32>
    %395 = tpu.matmul %392, %393, %cst_155 {dimension_numbers = #tpu.dot_dimension_numbers<[1], [1], [0], [0], [0, 0, 1, 0], [], []>} : vector<8x64xf32>, vector<8x64xf32>, vector<8x8xf32> -> vector<8x8xf32>
    %396 = vector.extract_strided_slice %25 {offsets = [1, 0, 0], sizes = [1, 1, 8], strides = [1, 1, 1]} : vector<2x1x8xf32> to vector<1x1x8xf32>
    %397 = vector.shape_cast %396 : vector<1x1x8xf32> to vector<1x8xf32>
    %398 = vector.broadcast %397 : vector<1x8xf32> to vector<8x8xf32>
    %399 = arith.subf %395, %398 : vector<8x8xf32>
    %cst_156 = arith.constant dense<0xFF800000> : vector<8xf32>
    %400 = vector.multi_reduction <maximumf>, %399, %cst_156 [1] : vector<8x8xf32> to vector<8xf32>
    %401 = vector.shape_cast %400 : vector<8xf32> to vector<8x1xf32>
    %402 = vector.broadcast %401 : vector<8x1xf32> to vector<8x8xf32>
    %403 = arith.subf %399, %402 : vector<8x8xf32>
    %404 = math.exp %403 : vector<8x8xf32>
    %cst_157 = arith.constant dense<0.000000e+00> : vector<8xf32>
    %405 = vector.multi_reduction <add>, %404, %cst_157 [1] : vector<8x8xf32> to vector<8xf32>
    %406 = vector.shape_cast %405 : vector<8xf32> to vector<8x1xf32>
    %407 = vector.broadcast %406 : vector<8x1xf32> to vector<8x8xf32>
    %408 = arith.divf %404, %407 : vector<8x8xf32>
    %c1_158 = arith.constant 1 : index
    %c7_159 = arith.constant 7 : index
    %c0_160 = arith.constant 0 : index
    %c0_161 = arith.constant 0 : index
    %409 = vector.load %arg16[%c1_158, %c7_159, %c0_160, %c0_161] : memref<2x8x8x8xf32, #tpu.memory_space<vmem>>, vector<1x1x8x8xf32>
    %410 = vector.shape_cast %409 : vector<1x1x8x8xf32> to vector<8x8xf32>
    %411 = vector.shape_cast %408 : vector<8x8xf32> to vector<1x1x8x8xf32>
    tpu.vector_store %arg16[%c1_158, %c7_159, %c0_160, %c0_161], %411 {strides = array<i32>} : memref<2x8x8x8xf32, #tpu.memory_space<vmem>>, vector<1x1x8x8xf32>,
    %cst_162 = arith.constant dense<0.000000e+00> : vector<8x64xf32>
    %412 = tpu.matmul %408, %394, %cst_162 {dimension_numbers = #tpu.dot_dimension_numbers<[1], [0], [0], [1], [0, 0, 1, 1], [], []>} : vector<8x8xf32>, vector<8x64xf32>, vector<8x64xf32> -> vector<8x64xf32>
    %413 = tpu.concatenate %391, %412 in 0 : vector<8x64xf32>, vector<8x64xf32> -> vector<16x64xf32>
    %c448 = arith.constant 448 : index
    %c0_163 = arith.constant 0 : index
    %414 = vector.load %arg11[%c448, %c0_163] : memref<512x64xf32, #tpu.memory_space<vmem>>, vector<64x64xf32>
    %cst_164 = arith.constant dense<0.000000e+00> : vector<16x64xf32>
    %415 = tpu.matmul %413, %414, %cst_164 {dimension_numbers = #tpu.dot_dimension_numbers<[1], [0], [0], [1], [0, 0, 1, 1], [], []>} : vector<16x64xf32>, vector<64x64xf32>, vector<16x64xf32> -> vector<16x64xf32>
    %416 = arith.addf %367, %415 : vector<16x64xf32>
    %c0_165 = arith.constant 0 : index
    %c0_166 = arith.constant 0 : index
    %417 = vector.load %arg12[%c0_165, %c0_166] : memref<1x64xf32, #tpu.memory_space<vmem>>, vector<1x64xf32>
    %418 = vector.broadcast %417 : vector<1x64xf32> to vector<16x64xf32>
    %419 = arith.addf %416, %418 : vector<16x64xf32>
    %420 = arith.addf %419, %1 : vector<16x64xf32>
    %cst_167 = arith.constant dense<0.000000e+00> : vector<16xf32>
    %421 = vector.multi_reduction <add>, %420, %cst_167 [1] : vector<16x64xf32> to vector<16xf32>
    %422 = vector.shape_cast %421 : vector<16xf32> to vector<16x1xf32>
    %cst_168 = arith.constant 6.400000e+01 : f32
    %423 = vector.broadcast %cst_168 : f32 to vector<16x1xf32>
    %424 = arith.divf %422, %423 : vector<16x1xf32>
    %425 = vector.broadcast %424 : vector<16x1xf32> to vector<16x64xf32>
    %426 = arith.subf %420, %425 : vector<16x64xf32>
    %427 = arith.mulf %426, %426 : vector<16x64xf32>
    %cst_169 = arith.constant dense<0.000000e+00> : vector<16xf32>
    %428 = vector.multi_reduction <add>, %427, %cst_169 [1] : vector<16x64xf32> to vector<16xf32>
    %429 = vector.shape_cast %428 : vector<16xf32> to vector<16x1xf32>
    %cst_170 = arith.constant 6.400000e+01 : f32
    %430 = vector.broadcast %cst_170 : f32 to vector<16x1xf32>
    %431 = arith.divf %429, %430 : vector<16x1xf32>
    %432 = vector.broadcast %424 : vector<16x1xf32> to vector<16x64xf32>
    %433 = arith.subf %420, %432 : vector<16x64xf32>
    %cst_171 = arith.constant 9.99999974E-6 : f32
    %434 = vector.broadcast %cst_171 : f32 to vector<16x1xf32>
    %435 = arith.addf %431, %434 : vector<16x1xf32>
    %436 = math.rsqrt %435 : vector<16x1xf32>
    %437 = vector.broadcast %436 : vector<16x1xf32> to vector<16x64xf32>
    %438 = arith.mulf %433, %437 : vector<16x64xf32>
    %c0_172 = arith.constant 0 : index
    %c0_173 = arith.constant 0 : index
    %439 = vector.load %arg13[%c0_172, %c0_173] : memref<1x64xf32, #tpu.memory_space<vmem>>, vector<1x64xf32>
    %440 = vector.broadcast %439 : vector<1x64xf32> to vector<16x64xf32>
    %441 = arith.mulf %438, %440 : vector<16x64xf32>
    %c0_174 = arith.constant 0 : index
    %c0_175 = arith.constant 0 : index
    %442 = vector.load %arg14[%c0_174, %c0_175] : memref<1x64xf32, #tpu.memory_space<vmem>>, vector<1x64xf32>
    %443 = vector.broadcast %442 : vector<1x64xf32> to vector<16x64xf32>
    %444 = arith.addf %441, %443 : vector<16x64xf32>
    %445 = vector.shape_cast %444 : vector<16x64xf32> to vector<2x8x64xf32>
    %c0_176 = arith.constant 0 : index
    %c0_177 = arith.constant 0 : index
    %c0_178 = arith.constant 0 : index
    %446 = vector.load %arg15[%c0_176, %c0_177, %c0_178] : memref<2x8x64xf32, #tpu.memory_space<vmem>>, vector<2x8x64xf32>
    tpu.vector_store %arg15[%c0_176, %c0_177, %c0_178], %445 {strides = array<i32>} : memref<2x8x64xf32, #tpu.memory_space<vmem>>, vector<2x8x64xf32>,
    return
  }
  func.func @transform_0(%arg0: i32) -> (i32, i32, i32) {
    %c0_i32 = arith.constant 0 : i32
    %c0_i32_0 = arith.constant 0 : i32
    %c0_i32_1 = arith.constant 0 : i32
    return %arg0, %c0_i32, %c0_i32_0 : i32, i32, i32
  }
  func.func @transform_1(%arg0: i32) -> (i32, i32, i32) {
    %c0_i32 = arith.constant 0 : i32
    %c0_i32_0 = arith.constant 0 : i32
    %c0_i32_1 = arith.constant 0 : i32
    return %arg0, %c0_i32, %c0_i32_0 : i32, i32, i32
  }
  func.func @transform_2(%arg0: i32) -> (i32, i32, i32) {
    %c0_i32 = arith.constant 0 : i32
    %c0_i32_0 = arith.constant 0 : i32
    %c0_i32_1 = arith.constant 0 : i32
    return %arg0, %c0_i32, %c0_i32_0 : i32, i32, i32
  }
  func.func @transform_3(%arg0: i32) -> (i32, i32, i32) {
    %c0_i32 = arith.constant 0 : i32
    %c0_i32_0 = arith.constant 0 : i32
    %c0_i32_1 = arith.constant 0 : i32
    return %arg0, %c0_i32, %c0_i32_0 : i32, i32, i32
  }
  func.func @transform_4(%arg0: i32) -> (i32, i32) {
    %c0_i32 = arith.constant 0 : i32
    %c0_i32_0 = arith.constant 0 : i32
    %c0_i32_1 = arith.constant 0 : i32
    return %c0_i32, %c0_i32_0 : i32, i32
  }
  func.func @transform_5(%arg0: i32) -> (i32, i32) {
    %c0_i32 = arith.constant 0 : i32
    %c0_i32_0 = arith.constant 0 : i32
    %c0_i32_1 = arith.constant 0 : i32
    return %c0_i32, %c0_i32_0 : i32, i32
  }
  func.func @transform_6(%arg0: i32) -> (i32, i32) {
    %c0_i32 = arith.constant 0 : i32
    %c0_i32_0 = arith.constant 0 : i32
    %c0_i32_1 = arith.constant 0 : i32
    return %c0_i32, %c0_i32_0 : i32, i32
  }
  func.func @transform_7(%arg0: i32) -> (i32, i32) {
    %c0_i32 = arith.constant 0 : i32
    %c0_i32_0 = arith.constant 0 : i32
    %c0_i32_1 = arith.constant 0 : i32
    return %c0_i32, %c0_i32_0 : i32, i32
  }
  func.func @transform_8(%arg0: i32) -> (i32, i32) {
    %c0_i32 = arith.constant 0 : i32
    %c0_i32_0 = arith.constant 0 : i32
    %c0_i32_1 = arith.constant 0 : i32
    return %c0_i32, %c0_i32_0 : i32, i32
  }
  func.func @transform_9(%arg0: i32) -> (i32, i32) {
    %c0_i32 = arith.constant 0 : i32
    %c0_i32_0 = arith.constant 0 : i32
    %c0_i32_1 = arith.constant 0 : i32
    return %c0_i32, %c0_i32_0 : i32, i32
  }
  func.func @transform_10(%arg0: i32) -> (i32, i32) {
    %c0_i32 = arith.constant 0 : i32
    %c0_i32_0 = arith.constant 0 : i32
    %c0_i32_1 = arith.constant 0 : i32
    return %c0_i32, %c0_i32_0 : i32, i32
  }
  func.func @transform_11(%arg0: i32) -> (i32, i32) {
    %c0_i32 = arith.constant 0 : i32
    %c0_i32_0 = arith.constant 0 : i32
    %c0_i32_1 = arith.constant 0 : i32
    return %c0_i32, %c0_i32_0 : i32, i32
  }
  func.func @transform_12(%arg0: i32) -> (i32, i32) {
    %c0_i32 = arith.constant 0 : i32
    %c0_i32_0 = arith.constant 0 : i32
    %c0_i32_1 = arith.constant 0 : i32
    return %c0_i32, %c0_i32_0 : i32, i32
  }
  func.func @transform_13(%arg0: i32) -> (i32, i32) {
    %c0_i32 = arith.constant 0 : i32
    %c0_i32_0 = arith.constant 0 : i32
    %c0_i32_1 = arith.constant 0 : i32
    return %c0_i32, %c0_i32_0 : i32, i32
  }
  func.func @transform_14(%arg0: i32) -> (i32, i32, i32) {
    %c0_i32 = arith.constant 0 : i32
    %c0_i32_0 = arith.constant 0 : i32
    %c0_i32_1 = arith.constant 0 : i32
    return %arg0, %c0_i32, %c0_i32_0 : i32, i32, i32
  }
  func.func @transform_15(%arg0: i32) -> (i32, i32, i32, i32) {
    %c0_i32 = arith.constant 0 : i32
    %c0_i32_0 = arith.constant 0 : i32
    %c0_i32_1 = arith.constant 0 : i32
    %c0_i32_2 = arith.constant 0 : i32
    return %arg0, %c0_i32, %c0_i32_0, %c0_i32_1 : i32, i32, i32, i32
  }
}

</mosaic_0001>

<llo_original>
// kernel: mha_pallas.1
$region0: #{mha_pallas.1}
  #allocation0 [shape = 'u32[]', space=smem, size = 0x4, offset = 0x4, fixed_abs, tag = 'smem constant byte address 0x4 - core index']
  #allocation1 [shape = 'u32[144,128]{1,0:T(1,128)}', space=vmem, size = 0x12000, scoped, tag = 'internal scratch']
  %s0 = inlined_call_operand.vmem [shape: f32[2,1,8], index: 0, kind: input, shape index: {}]
  %s1 = inlined_call_operand.vmem [shape: f32[2,8,64], index: 1, kind: input, shape index: {}]
  %s2 = inlined_call_operand.vmem [shape: f32[2,8,64], index: 2, kind: input, shape index: {}]
  %s3 = inlined_call_operand.vmem [shape: f32[2,8,64], index: 3, kind: input, shape index: {}]
  %s4 = inlined_call_operand.vmem [shape: f32[64,512], index: 4, kind: input, shape index: {}]
  %s5 = inlined_call_operand.vmem [shape: f32[1,512], index: 5, kind: input, shape index: {}]
  %s6 = inlined_call_operand.vmem [shape: f32[64,512], index: 6, kind: input, shape index: {}]
  %s7 = inlined_call_operand.vmem [shape: f32[1,512], index: 7, kind: input, shape index: {}]
  %s8 = inlined_call_operand.vmem [shape: f32[64,512], index: 8, kind: input, shape index: {}]
  %s9 = inlined_call_operand.vmem [shape: f32[1,512], index: 9, kind: input, shape index: {}]
  %s10 = inlined_call_operand.vmem [shape: f32[512,64], index: 10, kind: input, shape index: {}]
  %s11 = inlined_call_operand.vmem [shape: f32[1,64], index: 11, kind: input, shape index: {}]
  %s12 = inlined_call_operand.vmem [shape: f32[1,64], index: 12, kind: input, shape index: {}]
  %s13 = inlined_call_operand.vmem [shape: f32[1,64], index: 13, kind: input, shape index: {}]
  %s14 = inlined_call_operand.hbm [shape: f32[2,8,64], index: 14, kind: output, shape index: {0}]
  %s15 = inlined_call_operand.vmem [shape: f32[2,8,8,8], index: 15, kind: output, shape index: {1}]
  %16 = xla_tuple %s14, %s15
  %s17 = sld [smem:[#allocation0]]
  $region74: #{mha_pallas.1} parent=0
    _
  %s19 = ssub.s32 1, %s17
  %s20 = scalar_select 0, %s19, %s17
  $region1: #{mha_pallas.1} parent=0
    #allocation2 [shape = 'u8[8192]{0}', space=vmem, size = 0x2000, scoped, tag = 'output window, operand 0, single buffered']
    #allocation3 [shape = 's32[1]{0}', space=sflag, size = 0x4, scoped, tag = 'scoped memory for mha_pallas.1']
    %21 = vsyncpa [#allocation3], 0
    // Predicated region
    $region2: #{mha_pallas.1} parent=1 // pred_check
      _
    $region3: #{mha_pallas.1} parent=1 // pred_check_branch
      %23 = sbr.rel (0) target = $region5
    $region4: #{mha_pallas.1} parent=1 // pred_region
      _
    $region5: #{mha_pallas.1} parent=1 // pred_fallthru
      _
    // Predicated region
    $region6: #{mha_pallas.1} parent=1 // pred_check
      _
    $region7: #{mha_pallas.1} parent=1 // pred_check_branch
      %25 = sbr.rel (0) target = $region9
    $region8: #{mha_pallas.1} parent=1 // pred_region
      _
    $region9: #{mha_pallas.1} parent=1 // pred_fallthru
      _
    // Predicated region
    $region10: #{mha_pallas.1} parent=1 // pred_check
      _
    $region11: #{mha_pallas.1} parent=1 // pred_check_branch
      %27 = sbr.rel (0) target = $region13
    $region12: #{mha_pallas.1} parent=1 // pred_region
      _
    $region13: #{mha_pallas.1} parent=1 // pred_fallthru
      _
    // Predicated region
    $region14: #{mha_pallas.1} parent=1 // pred_check
      _
    $region15: #{mha_pallas.1} parent=1 // pred_check_branch
      %29 = sbr.rel (0) target = $region17
    $region16: #{mha_pallas.1} parent=1 // pred_region
      _
    $region17: #{mha_pallas.1} parent=1 // pred_fallthru
      _
    // Predicated region
    $region18: #{mha_pallas.1} parent=1 // pred_check
      _
    $region19: #{mha_pallas.1} parent=1 // pred_check_branch
      %31 = sbr.rel (0) target = $region21
    $region20: #{mha_pallas.1} parent=1 // pred_region
      _
    $region21: #{mha_pallas.1} parent=1 // pred_fallthru
      _
    // Predicated region
    $region22: #{mha_pallas.1} parent=1 // pred_check
      _
    $region23: #{mha_pallas.1} parent=1 // pred_check_branch
      %33 = sbr.rel (0) target = $region25
    $region24: #{mha_pallas.1} parent=1 // pred_region
      _
    $region25: #{mha_pallas.1} parent=1 // pred_fallthru
      _
    // Predicated region
    $region26: #{mha_pallas.1} parent=1 // pred_check
      _
    $region27: #{mha_pallas.1} parent=1 // pred_check_branch
      %35 = sbr.rel (0) target = $region29
    $region28: #{mha_pallas.1} parent=1 // pred_region
      _
    $region29: #{mha_pallas.1} parent=1 // pred_fallthru
      _
    // Predicated region
    $region30: #{mha_pallas.1} parent=1 // pred_check
      _
    $region31: #{mha_pallas.1} parent=1 // pred_check_branch
      %37 = sbr.rel (0) target = $region33
    $region32: #{mha_pallas.1} parent=1 // pred_region
      _
    $region33: #{mha_pallas.1} parent=1 // pred_fallthru
      _
    // Predicated region
    $region34: #{mha_pallas.1} parent=1 // pred_check
      _
    $region35: #{mha_pallas.1} parent=1 // pred_check_branch
      %39 = sbr.rel (0) target = $region37
    $region36: #{mha_pallas.1} parent=1 // pred_region
      _
    $region37: #{mha_pallas.1} parent=1 // pred_fallthru
      _
    // Predicated region
    $region38: #{mha_pallas.1} parent=1 // pred_check
      _
    $region39: #{mha_pallas.1} parent=1 // pred_check_branch
      %41 = sbr.rel (0) target = $region41
    $region40: #{mha_pallas.1} parent=1 // pred_region
      _
    $region41: #{mha_pallas.1} parent=1 // pred_fallthru
      _
    // Predicated region
    $region42: #{mha_pallas.1} parent=1 // pred_check
      _
    $region43: #{mha_pallas.1} parent=1 // pred_check_branch
      %43 = sbr.rel (0) target = $region45
    $region44: #{mha_pallas.1} parent=1 // pred_region
      _
    $region45: #{mha_pallas.1} parent=1 // pred_fallthru
      _
    // Predicated region
    $region46: #{mha_pallas.1} parent=1 // pred_check
      _
    $region47: #{mha_pallas.1} parent=1 // pred_check_branch
      %45 = sbr.rel (0) target = $region49
    $region48: #{mha_pallas.1} parent=1 // pred_region
      _
    $region49: #{mha_pallas.1} parent=1 // pred_fallthru
      _
    // Predicated region
    $region50: #{mha_pallas.1} parent=1 // pred_check
      _
    $region51: #{mha_pallas.1} parent=1 // pred_check_branch
      %47 = sbr.rel (0) target = $region53
    $region52: #{mha_pallas.1} parent=1 // pred_region
      _
    $region53: #{mha_pallas.1} parent=1 // pred_fallthru
      _
    // Predicated region
    $region54: #{mha_pallas.1} parent=1 // pred_check
      _
    $region55: #{mha_pallas.1} parent=1 // pred_check_branch
      %49 = sbr.rel (0) target = $region57
    $region56: #{mha_pallas.1} parent=1 // pred_region
      _
    $region57: #{mha_pallas.1} parent=1 // pred_fallthru
      _
    %v50 = vld [vmem:[%s1] sm:$0xff]
    %v51 = vld [vmem:[%s1 + $0x8] sm:$0xff]
    %v52 = vld [vmem:[%s2] sm:$0xff]
    %v53 = vld [vmem:[%s2 + $0x8] sm:$0xff]
    %v54 = vld [vmem:[%s3] sm:$0xff]
    %v55 = vld [vmem:[%s3 + $0x8] sm:$0xff]
    %v56 = vld [vmem:[%s4] sm:$0xff]
    %v57 = vld [vmem:[%s4 + $0x8] sm:$0xff]
    %v58 = vld [vmem:[%s4 + $0x10] sm:$0xff]
    %v59 = vld [vmem:[%s4 + $0x18] sm:$0xff]
    %v60 = vld [vmem:[%s4 + $0x20] sm:$0xff]
    %v61 = vld [vmem:[%s4 + $0x28] sm:$0xff]
    %v62 = vld [vmem:[%s4 + $0x30] sm:$0xff]
    %v63 = vld [vmem:[%s4 + $0x38] sm:$0xff]
    %v64 = vld [vmem:[%s4 + $0x40] sm:$0xff]
    %v65 = vld [vmem:[%s4 + $0x48] sm:$0xff]
    %v66 = vld [vmem:[%s4 + $0x50] sm:$0xff]
    %v67 = vld [vmem:[%s4 + $0x58] sm:$0xff]
    %v68 = vld [vmem:[%s4 + $0x60] sm:$0xff]
    %v69 = vld [vmem:[%s4 + $0x68] sm:$0xff]
    %v70 = vld [vmem:[%s4 + $0x70] sm:$0xff]
    %v71 = vld [vmem:[%s4 + $0x78] sm:$0xff]
    %v72 = vld [vmem:[%s4 + $0x80] sm:$0xff]
    %v73 = vld [vmem:[%s4 + $0x88] sm:$0xff]
    %v74 = vld [vmem:[%s4 + $0x90] sm:$0xff]
    %v75 = vld [vmem:[%s4 + $0x98] sm:$0xff]
    %v76 = vld [vmem:[%s4 + $0xa0] sm:$0xff]
    %v77 = vld [vmem:[%s4 + $0xa8] sm:$0xff]
    %v78 = vld [vmem:[%s4 + $0xb0] sm:$0xff]
    %v79 = vld [vmem:[%s4 + $0xb8] sm:$0xff]
    %v80 = vld [vmem:[%s4 + $0xc0] sm:$0xff]
    %v81 = vld [vmem:[%s4 + $0xc8] sm:$0xff]
    %v82 = vld [vmem:[%s4 + $0xd0] sm:$0xff]
    %v83 = vld [vmem:[%s4 + $0xd8] sm:$0xff]
    %v84 = vld [vmem:[%s4 + $0xe0] sm:$0xff]
    %v85 = vld [vmem:[%s4 + $0xe8] sm:$0xff]
    %v86 = vld [vmem:[%s4 + $0xf0] sm:$0xff]
    %v87 = vld [vmem:[%s4 + $0xf8] sm:$0xff]
    %v88 = vld [vmem:[%s5] sm:$0xf]
    %v90 = vlaneseq
    %v91 = vshrl.u32 %v90, 7
    %v92 = vsub.s32 0, %v91
    %v93 = vrot.slane %v88, %v92
    %v94 = vlaneseq
    %v95 = vshrl.u32 %v94, 7
    %v96 = vsub.s32 1, %v95
    %v97 = vrot.slane %v88, %v96
    %v98 = vlaneseq
    %v99 = vshrl.u32 %v98, 7
    %v100 = vsub.s32 2, %v99
    %v101 = vrot.slane %v88, %v100
    %v102 = vlaneseq
    %v103 = vshrl.u32 %v102, 7
    %v104 = vsub.s32 3, %v103
    %v105 = vrot.slane %v88, %v104
    %vm110 = vcmask 523264
    %v112 = vsel %vm110, %v50, 0
    %v115 = vsel %vm110, %v51, 0
    %117 = vmatprep.subr.mxu0 %v57
    %118 = vmatpush1.msra.mxu0 %v56
    %119 = vmatprep.subr.mxu0 %v61
    %120 = vmatpush1.msra.mxu0 %v60
    %121 = vmatprep.subr.mxu0 %v65
    %122 = vmatpush1.msra.mxu0 %v64
    %123 = vmatprep.subr.mxu0 %v69
    %124 = vmatpush1.msra.mxu0 %v68
    %125 = vmatprep.subr.mxu0 %v73
    %126 = vmatpush1.msra.mxu0 %v72
    %127 = vmatprep.subr.mxu0 %v77
    %128 = vmatpush1.msra.mxu0 %v76
    %129 = vmatprep.subr.mxu0 %v81
    %130 = vmatpush1.msra.mxu0 %v80
    %131 = vmatprep.subr.mxu0 %v85
    %132 = vmatpush1.msra.mxu0 %v84
    %133 = vmatprep.subr.mxu0 0.0
    %134 = vmatpush1.msra.mxu0 0.0
    %135 = vmatprep.subr.mxu0 0.0
    %136 = vmatpush1.msra.mxu0 0.0
    %137 = vmatprep.subr.mxu0 0.0
    %138 = vmatpush1.msra.mxu0 0.0
    %139 = vmatprep.subr.mxu0 0.0
    %140 = vmatpush1.msra.mxu0 0.0
    %141 = vmatprep.subr.mxu0 0.0
    %142 = vmatpush1.msra.mxu0 0.0
    %143 = vmatprep.subr.mxu0 0.0
    %144 = vmatpush1.msra.mxu0 0.0
    %145 = vmatprep.subr.mxu0 0.0
    %146 = vmatpush1.msra.mxu0 0.0
    %147 = vmatprep.subr.mxu0 0.0
    %148 = vmatpush1.msra.mxu0 0.0
    %149 = vmatprep.subr.mxu0 0.0
    %150 = vmatpush1.msra.mxu0 0.0
    %151 = vmatprep.subr.mxu0 0.0
    %152 = vmatpush1.msra.mxu0 0.0
    %153 = vmatprep.subr.mxu0 0.0
    %154 = vmatpush1.msra.mxu0 0.0
    %155 = vmatprep.subr.mxu0 0.0
    %156 = vmatpush1.msra.mxu0 0.0
    %157 = vmatprep.subr.mxu0 0.0
    %158 = vmatpush1.msra.mxu0 0.0
    %159 = vmatprep.subr.mxu0 0.0
    %160 = vmatpush1.msra.mxu0 0.0
    %161 = vmatprep.subr.mxu0 0.0
    %162 = vmatpush1.msra.mxu0 0.0
    %163 = vmatprep.subr.mxu0 0.0
    %164 = vmatpush1.msra.mxu0 0.0
    %165 = vmatprep.subr.mxu0 0.0
    %166 = vmatpush1.msra.mxu0 0.0
    %167 = vmatprep.subr.mxu0 0.0
    %168 = vmatpush1.msra.mxu0 0.0
    %169 = vmatprep.subr.mxu0 0.0
    %170 = vmatpush1.msra.mxu0 0.0
    %171 = vmatprep.subr.mxu0 0.0
    %172 = vmatpush1.msra.mxu0 0.0
    %173 = vmatprep.subr.mxu0 0.0
    %174 = vmatpush1.msra.mxu0 0.0
    %175 = vmatprep.subr.mxu0 0.0
    %176 = vmatpush1.msra.mxu0 0.0
    %177 = vmatprep.subr.mxu0 0.0
    %178 = vmatpush1.msra.mxu0 0.0
    %179 = vmatprep.subr.mxu0 0.0
    %180 = vmatpush1.msra.mxu0 0.0
    %181 = vmatprep.mubr.f32.mxu0 0.0
    %182 = vmatmul.mubr.f32.gmra.mrb[0].mxu0 %v112
    %v183 = vpop.f32.mrb[0].mxu0
    %v184 = vadd.f32 %v93, %v183
    %v185 = vpop.f32.mrb[0].mxu0
    %v186 = vadd.f32 %v97, %v185
    %187 = vmatprep.mubr.f32.mxu0 0.0
    %188 = vmatmul.mubr.f32.gmra.mrb[0].mxu0 %v115
    %v189 = vpop.f32.mrb[0].mxu0
    %v190 = vadd.f32 %v93, %v189
    %v191 = vpop.f32.mrb[0].mxu0
    %v192 = vadd.f32 %v97, %v191
    %193 = vdwg.mxu0
    %194 = vmatprep.subr.mxu0 %v59
    %195 = vmatpush1.msra.mxu0 %v58
    %196 = vmatprep.subr.mxu0 %v63
    %197 = vmatpush1.msra.mxu0 %v62
    %198 = vmatprep.subr.mxu0 %v67
    %199 = vmatpush1.msra.mxu0 %v66
    %200 = vmatprep.subr.mxu0 %v71
    %201 = vmatpush1.msra.mxu0 %v70
    %202 = vmatprep.subr.mxu0 %v75
    %203 = vmatpush1.msra.mxu0 %v74
    %204 = vmatprep.subr.mxu0 %v79
    %205 = vmatpush1.msra.mxu0 %v78
    %206 = vmatprep.subr.mxu0 %v83
    %207 = vmatpush1.msra.mxu0 %v82
    %208 = vmatprep.subr.mxu0 %v87
    %209 = vmatpush1.msra.mxu0 %v86
    %210 = vmatprep.subr.mxu0 0.0
    %211 = vmatpush1.msra.mxu0 0.0
    %212 = vmatprep.subr.mxu0 0.0
    %213 = vmatpush1.msra.mxu0 0.0
    %214 = vmatprep.subr.mxu0 0.0
    %215 = vmatpush1.msra.mxu0 0.0
    %216 = vmatprep.subr.mxu0 0.0
    %217 = vmatpush1.msra.mxu0 0.0
    %218 = vmatprep.subr.mxu0 0.0
    %219 = vmatpush1.msra.mxu0 0.0
    %220 = vmatprep.subr.mxu0 0.0
    %221 = vmatpush1.msra.mxu0 0.0
    %222 = vmatprep.subr.mxu0 0.0
    %223 = vmatpush1.msra.mxu0 0.0
    %224 = vmatprep.subr.mxu0 0.0
    %225 = vmatpush1.msra.mxu0 0.0
    %226 = vmatprep.subr.mxu0 0.0
    %227 = vmatpush1.msra.mxu0 0.0
    %228 = vmatprep.subr.mxu0 0.0
    %229 = vmatpush1.msra.mxu0 0.0
    %230 = vmatprep.subr.mxu0 0.0
    %231 = vmatpush1.msra.mxu0 0.0
    %232 = vmatprep.subr.mxu0 0.0
    %233 = vmatpush1.msra.mxu0 0.0
    %234 = vmatprep.subr.mxu0 0.0
    %235 = vmatpush1.msra.mxu0 0.0
    %236 = vmatprep.subr.mxu0 0.0
    %237 = vmatpush1.msra.mxu0 0.0
    %238 = vmatprep.subr.mxu0 0.0
    %239 = vmatpush1.msra.mxu0 0.0
    %240 = vmatprep.subr.mxu0 0.0
    %241 = vmatpush1.msra.mxu0 0.0
    %242 = vmatprep.subr.mxu0 0.0
    %243 = vmatpush1.msra.mxu0 0.0
    %244 = vmatprep.subr.mxu0 0.0
    %245 = vmatpush1.msra.mxu0 0.0
    %246 = vmatprep.subr.mxu0 0.0
    %247 = vmatpush1.msra.mxu0 0.0
    %248 = vmatprep.subr.mxu0 0.0
    %249 = vmatpush1.msra.mxu0 0.0
    %250 = vmatprep.subr.mxu0 0.0
    %251 = vmatpush1.msra.mxu0 0.0
    %252 = vmatprep.subr.mxu0 0.0
    %253 = vmatpush1.msra.mxu0 0.0
    %254 = vmatprep.subr.mxu0 0.0
    %255 = vmatpush1.msra.mxu0 0.0
    %256 = vmatprep.subr.mxu0 0.0
    %257 = vmatpush1.msra.mxu0 0.0
    %258 = vmatprep.mubr.f32.mxu0 0.0
    %259 = vmatmul.mubr.f32.gmra.mrb[0].mxu0 %v112
    %v260 = vpop.f32.mrb[0].mxu0
    %v261 = vadd.f32 %v101, %v260
    %v262 = vpop.f32.mrb[0].mxu0
    %v263 = vadd.f32 %v105, %v262
    %264 = vmatprep.mubr.f32.mxu0 0.0
    %265 = vmatmul.mubr.f32.gmra.mrb[0].mxu0 %v115
    %v266 = vpop.f32.mrb[0].mxu0
    %v267 = vadd.f32 %v101, %v266
    %v268 = vpop.f32.mrb[0].mxu0
    %v269 = vadd.f32 %v105, %v268
    %270 = vdwg.mxu0
    %v271 = vld [vmem:[%s6] sm:$0xff]
    %v272 = vld [vmem:[%s6 + $0x8] sm:$0xff]
    %v273 = vld [vmem:[%s6 + $0x10] sm:$0xff]
    %v274 = vld [vmem:[%s6 + $0x18] sm:$0xff]
    %v275 = vld [vmem:[%s6 + $0x20] sm:$0xff]
    %v276 = vld [vmem:[%s6 + $0x28] sm:$0xff]
    %v277 = vld [vmem:[%s6 + $0x30] sm:$0xff]
    %v278 = vld [vmem:[%s6 + $0x38] sm:$0xff]
    %v279 = vld [vmem:[%s6 + $0x40] sm:$0xff]
    %v280 = vld [vmem:[%s6 + $0x48] sm:$0xff]
    %v281 = vld [vmem:[%s6 + $0x50] sm:$0xff]
    %v282 = vld [vmem:[%s6 + $0x58] sm:$0xff]
    %v283 = vld [vmem:[%s6 + $0x60] sm:$0xff]
    %v284 = vld [vmem:[%s6 + $0x68] sm:$0xff]
    %v285 = vld [vmem:[%s6 + $0x70] sm:$0xff]
    %v286 = vld [vmem:[%s6 + $0x78] sm:$0xff]
    %v287 = vld [vmem:[%s6 + $0x80] sm:$0xff]
    %v288 = vld [vmem:[%s6 + $0x88] sm:$0xff]
    %v289 = vld [vmem:[%s6 + $0x90] sm:$0xff]
    %v290 = vld [vmem:[%s6 + $0x98] sm:$0xff]
    %v291 = vld [vmem:[%s6 + $0xa0] sm:$0xff]
    %v292 = vld [vmem:[%s6 + $0xa8] sm:$0xff]
    %v293 = vld [vmem:[%s6 + $0xb0] sm:$0xff]
    %v294 = vld [vmem:[%s6 + $0xb8] sm:$0xff]
    %v295 = vld [vmem:[%s6 + $0xc0] sm:$0xff]
    %v296 = vld [vmem:[%s6 + $0xc8] sm:$0xff]
    %v297 = vld [vmem:[%s6 + $0xd0] sm:$0xff]
    %v298 = vld [vmem:[%s6 + $0xd8] sm:$0xff]
    %v299 = vld [vmem:[%s6 + $0xe0] sm:$0xff]
    %v300 = vld [vmem:[%s6 + $0xe8] sm:$0xff]
    %v301 = vld [vmem:[%s6 + $0xf0] sm:$0xff]
    %v302 = vld [vmem:[%s6 + $0xf8] sm:$0xff]
    %v303 = vld [vmem:[%s7] sm:$0xf]
    %v305 = vlaneseq
    %v306 = vshrl.u32 %v305, 7
    %v307 = vsub.s32 0, %v306
    %v308 = vrot.slane %v303, %v307
    %v309 = vlaneseq
    %v310 = vshrl.u32 %v309, 7
    %v311 = vsub.s32 1, %v310
    %v312 = vrot.slane %v303, %v311
    %v313 = vlaneseq
    %v314 = vshrl.u32 %v313, 7
    %v315 = vsub.s32 2, %v314
    %v316 = vrot.slane %v303, %v315
    %v317 = vlaneseq
    %v318 = vshrl.u32 %v317, 7
    %v319 = vsub.s32 3, %v318
    %v320 = vrot.slane %v303, %v319
    %v326 = vsel %vm110, %v52, 0
    %v329 = vsel %vm110, %v53, 0
    %331 = vmatprep.subr.mxu0 %v272
    %332 = vmatpush1.msra.mxu0 %v271
    %333 = vmatprep.subr.mxu0 %v276
    %334 = vmatpush1.msra.mxu0 %v275
    %335 = vmatprep.subr.mxu0 %v280
    %336 = vmatpush1.msra.mxu0 %v279
    %337 = vmatprep.subr.mxu0 %v284
    %338 = vmatpush1.msra.mxu0 %v283
    %339 = vmatprep.subr.mxu0 %v288
    %340 = vmatpush1.msra.mxu0 %v287
    %341 = vmatprep.subr.mxu0 %v292
    %342 = vmatpush1.msra.mxu0 %v291
    %343 = vmatprep.subr.mxu0 %v296
    %344 = vmatpush1.msra.mxu0 %v295
    %345 = vmatprep.subr.mxu0 %v300
    %346 = vmatpush1.msra.mxu0 %v299
    %347 = vmatprep.subr.mxu0 0.0
    %348 = vmatpush1.msra.mxu0 0.0
    %349 = vmatprep.subr.mxu0 0.0
    %350 = vmatpush1.msra.mxu0 0.0
    %351 = vmatprep.subr.mxu0 0.0
    %352 = vmatpush1.msra.mxu0 0.0
    %353 = vmatprep.subr.mxu0 0.0
    %354 = vmatpush1.msra.mxu0 0.0
    %355 = vmatprep.subr.mxu0 0.0
    %356 = vmatpush1.msra.mxu0 0.0
    %357 = vmatprep.subr.mxu0 0.0
    %358 = vmatpush1.msra.mxu0 0.0
    %359 = vmatprep.subr.mxu0 0.0
    %360 = vmatpush1.msra.mxu0 0.0
    %361 = vmatprep.subr.mxu0 0.0
    %362 = vmatpush1.msra.mxu0 0.0
    %363 = vmatprep.subr.mxu0 0.0
    %364 = vmatpush1.msra.mxu0 0.0
    %365 = vmatprep.subr.mxu0 0.0
    %366 = vmatpush1.msra.mxu0 0.0
    %367 = vmatprep.subr.mxu0 0.0
    %368 = vmatpush1.msra.mxu0 0.0
    %369 = vmatprep.subr.mxu0 0.0
    %370 = vmatpush1.msra.mxu0 0.0
    %371 = vmatprep.subr.mxu0 0.0
    %372 = vmatpush1.msra.mxu0 0.0
    %373 = vmatprep.subr.mxu0 0.0
    %374 = vmatpush1.msra.mxu0 0.0
    %375 = vmatprep.subr.mxu0 0.0
    %376 = vmatpush1.msra.mxu0 0.0
    %377 = vmatprep.subr.mxu0 0.0
    %378 = vmatpush1.msra.mxu0 0.0
    %379 = vmatprep.subr.mxu0 0.0
    %380 = vmatpush1.msra.mxu0 0.0
    %381 = vmatprep.subr.mxu0 0.0
    %382 = vmatpush1.msra.mxu0 0.0
    %383 = vmatprep.subr.mxu0 0.0
    %384 = vmatpush1.msra.mxu0 0.0
    %385 = vmatprep.subr.mxu0 0.0
    %386 = vmatpush1.msra.mxu0 0.0
    %387 = vmatprep.subr.mxu0 0.0
    %388 = vmatpush1.msra.mxu0 0.0
    %389 = vmatprep.subr.mxu0 0.0
    %390 = vmatpush1.msra.mxu0 0.0
    %391 = vmatprep.subr.mxu0 0.0
    %392 = vmatpush1.msra.mxu0 0.0
    %393 = vmatprep.subr.mxu0 0.0
    %394 = vmatpush1.msra.mxu0 0.0
    %395 = vmatprep.mubr.f32.mxu0 0.0
    %396 = vmatmul.mubr.f32.gmra.mrb[0].mxu0 %v326
    %v397 = vpop.f32.mrb[0].mxu0
    %v398 = vadd.f32 %v308, %v397
    %v399 = vpop.f32.mrb[0].mxu0
    %v400 = vadd.f32 %v312, %v399
    %401 = vmatprep.mubr.f32.mxu0 0.0
    %402 = vmatmul.mubr.f32.gmra.mrb[0].mxu0 %v329
    %v403 = vpop.f32.mrb[0].mxu0
    %v404 = vadd.f32 %v308, %v403
    %v405 = vpop.f32.mrb[0].mxu0
    %v406 = vadd.f32 %v312, %v405
    %407 = vdwg.mxu0
    %408 = vmatprep.subr.mxu0 %v274
    %409 = vmatpush1.msra.mxu0 %v273
    %410 = vmatprep.subr.mxu0 %v278
    %411 = vmatpush1.msra.mxu0 %v277
    %412 = vmatprep.subr.mxu0 %v282
    %413 = vmatpush1.msra.mxu0 %v281
    %414 = vmatprep.subr.mxu0 %v286
    %415 = vmatpush1.msra.mxu0 %v285
    %416 = vmatprep.subr.mxu0 %v290
    %417 = vmatpush1.msra.mxu0 %v289
    %418 = vmatprep.subr.mxu0 %v294
    %419 = vmatpush1.msra.mxu0 %v293
    %420 = vmatprep.subr.mxu0 %v298
    %421 = vmatpush1.msra.mxu0 %v297
    %422 = vmatprep.subr.mxu0 %v302
    %423 = vmatpush1.msra.mxu0 %v301
    %424 = vmatprep.subr.mxu0 0.0
    %425 = vmatpush1.msra.mxu0 0.0
    %426 = vmatprep.subr.mxu0 0.0
    %427 = vmatpush1.msra.mxu0 0.0
    %428 = vmatprep.subr.mxu0 0.0
    %429 = vmatpush1.msra.mxu0 0.0
    %430 = vmatprep.subr.mxu0 0.0
    %431 = vmatpush1.msra.mxu0 0.0
    %432 = vmatprep.subr.mxu0 0.0
    %433 = vmatpush1.msra.mxu0 0.0
    %434 = vmatprep.subr.mxu0 0.0
    %435 = vmatpush1.msra.mxu0 0.0
    %436 = vmatprep.subr.mxu0 0.0
    %437 = vmatpush1.msra.mxu0 0.0
    %438 = vmatprep.subr.mxu0 0.0
    %439 = vmatpush1.msra.mxu0 0.0
    %440 = vmatprep.subr.mxu0 0.0
    %441 = vmatpush1.msra.mxu0 0.0
    %442 = vmatprep.subr.mxu0 0.0
    %443 = vmatpush1.msra.mxu0 0.0
    %444 = vmatprep.subr.mxu0 0.0
    %445 = vmatpush1.msra.mxu0 0.0
    %446 = vmatprep.subr.mxu0 0.0
    %447 = vmatpush1.msra.mxu0 0.0
    %448 = vmatprep.subr.mxu0 0.0
    %449 = vmatpush1.msra.mxu0 0.0
    %450 = vmatprep.subr.mxu0 0.0
    %451 = vmatpush1.msra.mxu0 0.0
    %452 = vmatprep.subr.mxu0 0.0
    %453 = vmatpush1.msra.mxu0 0.0
    %454 = vmatprep.subr.mxu0 0.0
    %455 = vmatpush1.msra.mxu0 0.0
    %456 = vmatprep.subr.mxu0 0.0
    %457 = vmatpush1.msra.mxu0 0.0
    %458 = vmatprep.subr.mxu0 0.0
    %459 = vmatpush1.msra.mxu0 0.0
    %460 = vmatprep.subr.mxu0 0.0
    %461 = vmatpush1.msra.mxu0 0.0
    %462 = vmatprep.subr.mxu0 0.0
    %463 = vmatpush1.msra.mxu0 0.0
    %464 = vmatprep.subr.mxu0 0.0
    %465 = vmatpush1.msra.mxu0 0.0
    %466 = vmatprep.subr.mxu0 0.0
    %467 = vmatpush1.msra.mxu0 0.0
    %468 = vmatprep.subr.mxu0 0.0
    %469 = vmatpush1.msra.mxu0 0.0
    %470 = vmatprep.subr.mxu0 0.0
    %471 = vmatpush1.msra.mxu0 0.0
    %472 = vmatprep.mubr.f32.mxu0 0.0
    %473 = vmatmul.mubr.f32.gmra.mrb[0].mxu0 %v326
    %v474 = vpop.f32.mrb[0].mxu0
    %v475 = vadd.f32 %v316, %v474
    %v476 = vpop.f32.mrb[0].mxu0
    %v477 = vadd.f32 %v320, %v476
    %478 = vmatprep.mubr.f32.mxu0 0.0
    %479 = vmatmul.mubr.f32.gmra.mrb[0].mxu0 %v329
    %v480 = vpop.f32.mrb[0].mxu0
    %v481 = vadd.f32 %v316, %v480
    %v482 = vpop.f32.mrb[0].mxu0
    %v483 = vadd.f32 %v320, %v482
    %484 = vdwg.mxu0
    %v485 = vld [vmem:[%s8] sm:$0xff]
    %v486 = vld [vmem:[%s8 + $0x8] sm:$0xff]
    %v487 = vld [vmem:[%s8 + $0x10] sm:$0xff]
    %v488 = vld [vmem:[%s8 + $0x18] sm:$0xff]
    %v489 = vld [vmem:[%s8 + $0x20] sm:$0xff]
    %v490 = vld [vmem:[%s8 + $0x28] sm:$0xff]
    %v491 = vld [vmem:[%s8 + $0x30] sm:$0xff]
    %v492 = vld [vmem:[%s8 + $0x38] sm:$0xff]
    %v493 = vld [vmem:[%s8 + $0x40] sm:$0xff]
    %v494 = vld [vmem:[%s8 + $0x48] sm:$0xff]
    %v495 = vld [vmem:[%s8 + $0x50] sm:$0xff]
    %v496 = vld [vmem:[%s8 + $0x58] sm:$0xff]
    %v497 = vld [vmem:[%s8 + $0x60] sm:$0xff]
    %v498 = vld [vmem:[%s8 + $0x68] sm:$0xff]
    %v499 = vld [vmem:[%s8 + $0x70] sm:$0xff]
    %v500 = vld [vmem:[%s8 + $0x78] sm:$0xff]
    %v501 = vld [vmem:[%s8 + $0x80] sm:$0xff]
    %v502 = vld [vmem:[%s8 + $0x88] sm:$0xff]
    %v503 = vld [vmem:[%s8 + $0x90] sm:$0xff]
    %v504 = vld [vmem:[%s8 + $0x98] sm:$0xff]
    %v505 = vld [vmem:[%s8 + $0xa0] sm:$0xff]
    %v506 = vld [vmem:[%s8 + $0xa8] sm:$0xff]
    %v507 = vld [vmem:[%s8 + $0xb0] sm:$0xff]
    %v508 = vld [vmem:[%s8 + $0xb8] sm:$0xff]
    %v509 = vld [vmem:[%s8 + $0xc0] sm:$0xff]
    %v510 = vld [vmem:[%s8 + $0xc8] sm:$0xff]
    %v511 = vld [vmem:[%s8 + $0xd0] sm:$0xff]
    %v512 = vld [vmem:[%s8 + $0xd8] sm:$0xff]
    %v513 = vld [vmem:[%s8 + $0xe0] sm:$0xff]
    %v514 = vld [vmem:[%s8 + $0xe8] sm:$0xff]
    %v515 = vld [vmem:[%s8 + $0xf0] sm:$0xff]
    %v516 = vld [vmem:[%s8 + $0xf8] sm:$0xff]
    %v517 = vld [vmem:[%s9] sm:$0xf]
    %v519 = vlaneseq
    %v520 = vshrl.u32 %v519, 7
    %v521 = vsub.s32 0, %v520
    %v522 = vrot.slane %v517, %v521
    %v523 = vlaneseq
    %v524 = vshrl.u32 %v523, 7
    %v525 = vsub.s32 1, %v524
    %v526 = vrot.slane %v517, %v525
    %v527 = vlaneseq
    %v528 = vshrl.u32 %v527, 7
    %v529 = vsub.s32 2, %v528
    %v530 = vrot.slane %v517, %v529
    %v531 = vlaneseq
    %v532 = vshrl.u32 %v531, 7
    %v533 = vsub.s32 3, %v532
    %v534 = vrot.slane %v517, %v533
    %v540 = vsel %vm110, %v54, 0
    %v543 = vsel %vm110, %v55, 0
    %545 = vmatprep.subr.mxu0 %v486
    %546 = vmatpush1.msra.mxu0 %v485
    %547 = vmatprep.subr.mxu0 %v490
    %548 = vmatpush1.msra.mxu0 %v489
    %549 = vmatprep.subr.mxu0 %v494
    %550 = vmatpush1.msra.mxu0 %v493
    %551 = vmatprep.subr.mxu0 %v498
    %552 = vmatpush1.msra.mxu0 %v497
    %553 = vmatprep.subr.mxu0 %v502
    %554 = vmatpush1.msra.mxu0 %v501
    %555 = vmatprep.subr.mxu0 %v506
    %556 = vmatpush1.msra.mxu0 %v505
    %557 = vmatprep.subr.mxu0 %v510
    %558 = vmatpush1.msra.mxu0 %v509
    %559 = vmatprep.subr.mxu0 %v514
    %560 = vmatpush1.msra.mxu0 %v513
    %561 = vmatprep.subr.mxu0 0.0
    %562 = vmatpush1.msra.mxu0 0.0
    %563 = vmatprep.subr.mxu0 0.0
    %564 = vmatpush1.msra.mxu0 0.0
    %565 = vmatprep.subr.mxu0 0.0
    %566 = vmatpush1.msra.mxu0 0.0
    %567 = vmatprep.subr.mxu0 0.0
    %568 = vmatpush1.msra.mxu0 0.0
    %569 = vmatprep.subr.mxu0 0.0
    %570 = vmatpush1.msra.mxu0 0.0
    %571 = vmatprep.subr.mxu0 0.0
    %572 = vmatpush1.msra.mxu0 0.0
    %573 = vmatprep.subr.mxu0 0.0
    %574 = vmatpush1.msra.mxu0 0.0
    %575 = vmatprep.subr.mxu0 0.0
    %576 = vmatpush1.msra.mxu0 0.0
    %577 = vmatprep.subr.mxu0 0.0
    %578 = vmatpush1.msra.mxu0 0.0
    %579 = vmatprep.subr.mxu0 0.0
    %580 = vmatpush1.msra.mxu0 0.0
    %581 = vmatprep.subr.mxu0 0.0
    %582 = vmatpush1.msra.mxu0 0.0
    %583 = vmatprep.subr.mxu0 0.0
    %584 = vmatpush1.msra.mxu0 0.0
    %585 = vmatprep.subr.mxu0 0.0
    %586 = vmatpush1.msra.mxu0 0.0
    %587 = vmatprep.subr.mxu0 0.0
    %588 = vmatpush1.msra.mxu0 0.0
    %589 = vmatprep.subr.mxu0 0.0
    %590 = vmatpush1.msra.mxu0 0.0
    %591 = vmatprep.subr.mxu0 0.0
    %592 = vmatpush1.msra.mxu0 0.0
    %593 = vmatprep.subr.mxu0 0.0
    %594 = vmatpush1.msra.mxu0 0.0
    %595 = vmatprep.subr.mxu0 0.0
    %596 = vmatpush1.msra.mxu0 0.0
    %597 = vmatprep.subr.mxu0 0.0
    %598 = vmatpush1.msra.mxu0 0.0
    %599 = vmatprep.subr.mxu0 0.0
    %600 = vmatpush1.msra.mxu0 0.0
    %601 = vmatprep.subr.mxu0 0.0
    %602 = vmatpush1.msra.mxu0 0.0
    %603 = vmatprep.subr.mxu0 0.0
    %604 = vmatpush1.msra.mxu0 0.0
    %605 = vmatprep.subr.mxu0 0.0
    %606 = vmatpush1.msra.mxu0 0.0
    %607 = vmatprep.subr.mxu0 0.0
    %608 = vmatpush1.msra.mxu0 0.0
    %609 = vmatprep.mubr.f32.mxu0 0.0
    %610 = vmatmul.mubr.f32.gmra.mrb[0].mxu0 %v540
    %v611 = vpop.f32.mrb[0].mxu0
    %v612 = vadd.f32 %v522, %v611
    %v613 = vpop.f32.mrb[0].mxu0
    %v614 = vadd.f32 %v526, %v613
    %615 = vmatprep.mubr.f32.mxu0 0.0
    %616 = vmatmul.mubr.f32.gmra.mrb[0].mxu0 %v543
    %v617 = vpop.f32.mrb[0].mxu0
    %v618 = vadd.f32 %v522, %v617
    %v619 = vpop.f32.mrb[0].mxu0
    %v620 = vadd.f32 %v526, %v619
    %621 = vdwg.mxu0
    %622 = vmatprep.subr.mxu0 %v488
    %623 = vmatpush1.msra.mxu0 %v487
    %624 = vmatprep.subr.mxu0 %v492
    %625 = vmatpush1.msra.mxu0 %v491
    %626 = vmatprep.subr.mxu0 %v496
    %627 = vmatpush1.msra.mxu0 %v495
    %628 = vmatprep.subr.mxu0 %v500
    %629 = vmatpush1.msra.mxu0 %v499
    %630 = vmatprep.subr.mxu0 %v504
    %631 = vmatpush1.msra.mxu0 %v503
    %632 = vmatprep.subr.mxu0 %v508
    %633 = vmatpush1.msra.mxu0 %v507
    %634 = vmatprep.subr.mxu0 %v512
    %635 = vmatpush1.msra.mxu0 %v511
    %636 = vmatprep.subr.mxu0 %v516
    %637 = vmatpush1.msra.mxu0 %v515
    %638 = vmatprep.subr.mxu0 0.0
    %639 = vmatpush1.msra.mxu0 0.0
    %640 = vmatprep.subr.mxu0 0.0
    %641 = vmatpush1.msra.mxu0 0.0
    %642 = vmatprep.subr.mxu0 0.0
    %643 = vmatpush1.msra.mxu0 0.0
    %644 = vmatprep.subr.mxu0 0.0
    %645 = vmatpush1.msra.mxu0 0.0
    %646 = vmatprep.subr.mxu0 0.0
    %647 = vmatpush1.msra.mxu0 0.0
    %648 = vmatprep.subr.mxu0 0.0
    %649 = vmatpush1.msra.mxu0 0.0
    %650 = vmatprep.subr.mxu0 0.0
    %651 = vmatpush1.msra.mxu0 0.0
    %652 = vmatprep.subr.mxu0 0.0
    %653 = vmatpush1.msra.mxu0 0.0
    %654 = vmatprep.subr.mxu0 0.0
    %655 = vmatpush1.msra.mxu0 0.0
    %656 = vmatprep.subr.mxu0 0.0
    %657 = vmatpush1.msra.mxu0 0.0
    %658 = vmatprep.subr.mxu0 0.0
    %659 = vmatpush1.msra.mxu0 0.0
    %660 = vmatprep.subr.mxu0 0.0
    %661 = vmatpush1.msra.mxu0 0.0
    %662 = vmatprep.subr.mxu0 0.0
    %663 = vmatpush1.msra.mxu0 0.0
    %664 = vmatprep.subr.mxu0 0.0
    %665 = vmatpush1.msra.mxu0 0.0
    %666 = vmatprep.subr.mxu0 0.0
    %667 = vmatpush1.msra.mxu0 0.0
    %668 = vmatprep.subr.mxu0 0.0
    %669 = vmatpush1.msra.mxu0 0.0
    %670 = vmatprep.subr.mxu0 0.0
    %671 = vmatpush1.msra.mxu0 0.0
    %672 = vmatprep.subr.mxu0 0.0
    %673 = vmatpush1.msra.mxu0 0.0
    %674 = vmatprep.subr.mxu0 0.0
    %675 = vmatpush1.msra.mxu0 0.0
    %676 = vmatprep.subr.mxu0 0.0
    %677 = vmatpush1.msra.mxu0 0.0
    %678 = vmatprep.subr.mxu0 0.0
    %679 = vmatpush1.msra.mxu0 0.0
    %680 = vmatprep.subr.mxu0 0.0
    %681 = vmatpush1.msra.mxu0 0.0
    %682 = vmatprep.subr.mxu0 0.0
    %683 = vmatpush1.msra.mxu0 0.0
    %684 = vmatprep.subr.mxu0 0.0
    %685 = vmatpush1.msra.mxu0 0.0
    %686 = vmatprep.mubr.f32.mxu0 0.0
    %687 = vmatmul.mubr.f32.gmra.mrb[0].mxu0 %v540
    %v688 = vpop.f32.mrb[0].mxu0
    %v689 = vadd.f32 %v530, %v688
    %v690 = vpop.f32.mrb[0].mxu0
    %v691 = vadd.f32 %v534, %v690
    %692 = vmatprep.mubr.f32.mxu0 0.0
    %693 = vmatmul.mubr.f32.gmra.mrb[0].mxu0 %v543
    %v694 = vpop.f32.mrb[0].mxu0
    %v695 = vadd.f32 %v530, %v694
    %v696 = vpop.f32.mrb[0].mxu0
    %v697 = vadd.f32 %v534, %v696
    %698 = vdwg.mxu0
    %v699 = vld [vmem:[%s0] sm:$0x1]
    %v700 = vld [vmem:[%s0 + $0x1] sm:$0x1]
    %v701 = vsub.f32 1.0, %v699
    %v702 = vsub.f32 1.0, %v700
    %v703 = vmul.f32 %v701, 1e+30
    %v704 = vmul.f32 %v702, 1e+30
    %v706 = vsel %vm110, %v184, 0
    %v709 = vsel %vm110, %v398, 0
    %711 = vmatprep.subr.mxu0 0.0
    %712 = vmatpush1.xpose.msra.mxu0 %v709
    %713 = vmatprep.subr.mxu0 0.0
    %714 = vmatpush1.xpose.msra.mxu0 0.0
    %715 = vmatprep.subr.mxu0 0.0
    %716 = vmatpush1.xpose.msra.mxu0 0.0
    %717 = vmatprep.subr.mxu0 0.0
    %718 = vmatpush1.xpose.msra.mxu0 0.0
    %719 = vmatprep.subr.mxu0 0.0
    %720 = vmatpush1.xpose.msra.mxu0 0.0
    %721 = vmatprep.subr.mxu0 0.0
    %722 = vmatpush1.xpose.msra.mxu0 0.0
    %723 = vmatprep.subr.mxu0 0.0
    %724 = vmatpush1.xpose.msra.mxu0 0.0
    %725 = vmatprep.subr.mxu0 0.0
    %726 = vmatpush1.xpose.msra.mxu0 0.0
    %727 = vmatprep.subr.mxu0 0.0
    %728 = vmatpush1.xpose.msra.mxu0 0.0
    %729 = vmatprep.subr.mxu0 0.0
    %730 = vmatpush1.xpose.msra.mxu0 0.0
    %731 = vmatprep.subr.mxu0 0.0
    %732 = vmatpush1.xpose.msra.mxu0 0.0
    %733 = vmatprep.subr.mxu0 0.0
    %734 = vmatpush1.xpose.msra.mxu0 0.0
    %735 = vmatprep.subr.mxu0 0.0
    %736 = vmatpush1.xpose.msra.mxu0 0.0
    %737 = vmatprep.subr.mxu0 0.0
    %738 = vmatpush1.xpose.msra.mxu0 0.0
    %739 = vmatprep.subr.mxu0 0.0
    %740 = vmatpush1.xpose.msra.mxu0 0.0
    %741 = vmatprep.subr.mxu0 0.0
    %742 = vmatpush1.xpose.msra.mxu0 0.0
    %743 = vmatprep.subr.mxu0 0.0
    %744 = vmatpush1.xpose.msra.mxu0 0.0
    %745 = vmatprep.subr.mxu0 0.0
    %746 = vmatpush1.xpose.msra.mxu0 0.0
    %747 = vmatprep.subr.mxu0 0.0
    %748 = vmatpush1.xpose.msra.mxu0 0.0
    %749 = vmatprep.subr.mxu0 0.0
    %750 = vmatpush1.xpose.msra.mxu0 0.0
    %751 = vmatprep.subr.mxu0 0.0
    %752 = vmatpush1.xpose.msra.mxu0 0.0
    %753 = vmatprep.subr.mxu0 0.0
    %754 = vmatpush1.xpose.msra.mxu0 0.0
    %755 = vmatprep.subr.mxu0 0.0
    %756 = vmatpush1.xpose.msra.mxu0 0.0
    %757 = vmatprep.subr.mxu0 0.0
    %758 = vmatpush1.xpose.msra.mxu0 0.0
    %759 = vmatprep.subr.mxu0 0.0
    %760 = vmatpush1.xpose.msra.mxu0 0.0
    %761 = vmatprep.subr.mxu0 0.0
    %762 = vmatpush1.xpose.msra.mxu0 0.0
    %763 = vmatprep.subr.mxu0 0.0
    %764 = vmatpush1.xpose.msra.mxu0 0.0
    %765 = vmatprep.subr.mxu0 0.0
    %766 = vmatpush1.xpose.msra.mxu0 0.0
    %767 = vmatprep.subr.mxu0 0.0
    %768 = vmatpush1.xpose.msra.mxu0 0.0
    %769 = vmatprep.subr.mxu0 0.0
    %770 = vmatpush1.xpose.msra.mxu0 0.0
    %771 = vmatprep.subr.mxu0 0.0
    %772 = vmatpush1.xpose.msra.mxu0 0.0
    %773 = vmatprep.subr.mxu0 0.0
    %774 = vmatpush1.xpose.msra.mxu0 0.0
    %775 = vmatprep.mubr.f32.mxu0 0.0
    %776 = vmatmul.mubr.f32.gmra.mrb[0].mxu0 %v706
    %v777 = vpop.f32.mrb[0].mxu0
    %v778 = vadd.f32 0.0, %v777
    %v779 = vpop.f32.mrb[0].mxu0
    %780 = vdwg.mxu0
    %v782 = vlaneseq
    %v783 = vshrl.u32 %v782, 7
    %v784 = vsub.s32 0, %v783
    %v785 = vrot.slane %v703, %v784
    %v787 = vsub.f32 %v778, %v785
    %vm788 = vcmask 64512
    %v789 = vsel %vm788, %v787, -inf
    %790 = vmax.xlane.f32.xlu0 %v789
    %v791 = vpop.xlane.xlu0 %790
    %v792 = vsub.f32 %v787, %v791
    %v793 = vmul.f32 %v792, 1.442695
    %v794 = vpow.pop %v793
    %v795 = vsel %vm788, %v794, 0.0
    %796 = vadd.xlane.f32.xlu0 %v795
    %v797 = vpop.xlane.xlu0 %796
    %v798 = vrcp.pop %v797
    %v799 = vmul.f32 %v794, %v798
    %800 = vst.msk [vmem:[%s15] sm:$0xff] %vm788, %v799
    %v802 = vsel %vm788, %v799, 0
    %804 = vmatprep.subr.mxu0 0.0
    %805 = vmatpush1.msra.mxu0 %v612
    %806 = vmatprep.subr.mxu0 0.0
    %807 = vmatpush1.msra.mxu0 0.0
    %808 = vmatprep.subr.mxu0 0.0
    %809 = vmatpush1.msra.mxu0 0.0
    %810 = vmatprep.subr.mxu0 0.0
    %811 = vmatpush1.msra.mxu0 0.0
    %812 = vmatprep.subr.mxu0 0.0
    %813 = vmatpush1.msra.mxu0 0.0
    %814 = vmatprep.subr.mxu0 0.0
    %815 = vmatpush1.msra.mxu0 0.0
    %816 = vmatprep.subr.mxu0 0.0
    %817 = vmatpush1.msra.mxu0 0.0
    %818 = vmatprep.subr.mxu0 0.0
    %819 = vmatpush1.msra.mxu0 0.0
    %820 = vmatprep.subr.mxu0 0.0
    %821 = vmatpush1.msra.mxu0 0.0
    %822 = vmatprep.subr.mxu0 0.0
    %823 = vmatpush1.msra.mxu0 0.0
    %824 = vmatprep.subr.mxu0 0.0
    %825 = vmatpush1.msra.mxu0 0.0
    %826 = vmatprep.subr.mxu0 0.0
    %827 = vmatpush1.msra.mxu0 0.0
    %828 = vmatprep.subr.mxu0 0.0
    %829 = vmatpush1.msra.mxu0 0.0
    %830 = vmatprep.subr.mxu0 0.0
    %831 = vmatpush1.msra.mxu0 0.0
    %832 = vmatprep.subr.mxu0 0.0
    %833 = vmatpush1.msra.mxu0 0.0
    %834 = vmatprep.subr.mxu0 0.0
    %835 = vmatpush1.msra.mxu0 0.0
    %836 = vmatprep.subr.mxu0 0.0
    %837 = vmatpush1.msra.mxu0 0.0
    %838 = vmatprep.subr.mxu0 0.0
    %839 = vmatpush1.msra.mxu0 0.0
    %840 = vmatprep.subr.mxu0 0.0
    %841 = vmatpush1.msra.mxu0 0.0
    %842 = vmatprep.subr.mxu0 0.0
    %843 = vmatpush1.msra.mxu0 0.0
    %844 = vmatprep.subr.mxu0 0.0
    %845 = vmatpush1.msra.mxu0 0.0
    %846 = vmatprep.subr.mxu0 0.0
    %847 = vmatpush1.msra.mxu0 0.0
    %848 = vmatprep.subr.mxu0 0.0
    %849 = vmatpush1.msra.mxu0 0.0
    %850 = vmatprep.subr.mxu0 0.0
    %851 = vmatpush1.msra.mxu0 0.0
    %852 = vmatprep.subr.mxu0 0.0
    %853 = vmatpush1.msra.mxu0 0.0
    %854 = vmatprep.subr.mxu0 0.0
    %855 = vmatpush1.msra.mxu0 0.0
    %856 = vmatprep.subr.mxu0 0.0
    %857 = vmatpush1.msra.mxu0 0.0
    %858 = vmatprep.subr.mxu0 0.0
    %859 = vmatpush1.msra.mxu0 0.0
    %860 = vmatprep.subr.mxu0 0.0
    %861 = vmatpush1.msra.mxu0 0.0
    %862 = vmatprep.subr.mxu0 0.0
    %863 = vmatpush1.msra.mxu0 0.0
    %864 = vmatprep.subr.mxu0 0.0
    %865 = vmatpush1.msra.mxu0 0.0
    %866 = vmatprep.subr.mxu0 0.0
    %867 = vmatpush1.msra.mxu0 0.0
    %868 = vmatprep.mubr.f32.mxu0 0.0
    %869 = vmatmul.mubr.f32.gmra.mrb[0].mxu0 %v802
    %v870 = vpop.f32.mrb[0].mxu0
    %v871 = vadd.f32 0.0, %v870
    %v872 = vpop.f32.mrb[0].mxu0
    %873 = vdwg.mxu0
    %v875 = vsel %vm110, %v190, 0
    %v878 = vsel %vm110, %v404, 0
    %880 = vmatprep.subr.mxu0 0.0
    %881 = vmatpush1.xpose.msra.mxu0 %v878
    %882 = vmatprep.subr.mxu0 0.0
    %883 = vmatpush1.xpose.msra.mxu0 0.0
    %884 = vmatprep.subr.mxu0 0.0
    %885 = vmatpush1.xpose.msra.mxu0 0.0
    %886 = vmatprep.subr.mxu0 0.0
    %887 = vmatpush1.xpose.msra.mxu0 0.0
    %888 = vmatprep.subr.mxu0 0.0
    %889 = vmatpush1.xpose.msra.mxu0 0.0
    %890 = vmatprep.subr.mxu0 0.0
    %891 = vmatpush1.xpose.msra.mxu0 0.0
    %892 = vmatprep.subr.mxu0 0.0
    %893 = vmatpush1.xpose.msra.mxu0 0.0
    %894 = vmatprep.subr.mxu0 0.0
    %895 = vmatpush1.xpose.msra.mxu0 0.0
    %896 = vmatprep.subr.mxu0 0.0
    %897 = vmatpush1.xpose.msra.mxu0 0.0
    %898 = vmatprep.subr.mxu0 0.0
    %899 = vmatpush1.xpose.msra.mxu0 0.0
    %900 = vmatprep.subr.mxu0 0.0
    %901 = vmatpush1.xpose.msra.mxu0 0.0
    %902 = vmatprep.subr.mxu0 0.0
    %903 = vmatpush1.xpose.msra.mxu0 0.0
    %904 = vmatprep.subr.mxu0 0.0
    %905 = vmatpush1.xpose.msra.mxu0 0.0
    %906 = vmatprep.subr.mxu0 0.0
    %907 = vmatpush1.xpose.msra.mxu0 0.0
    %908 = vmatprep.subr.mxu0 0.0
    %909 = vmatpush1.xpose.msra.mxu0 0.0
    %910 = vmatprep.subr.mxu0 0.0
    %911 = vmatpush1.xpose.msra.mxu0 0.0
    %912 = vmatprep.subr.mxu0 0.0
    %913 = vmatpush1.xpose.msra.mxu0 0.0
    %914 = vmatprep.subr.mxu0 0.0
    %915 = vmatpush1.xpose.msra.mxu0 0.0
    %916 = vmatprep.subr.mxu0 0.0
    %917 = vmatpush1.xpose.msra.mxu0 0.0
    %918 = vmatprep.subr.mxu0 0.0
    %919 = vmatpush1.xpose.msra.mxu0 0.0
    %920 = vmatprep.subr.mxu0 0.0
    %921 = vmatpush1.xpose.msra.mxu0 0.0
    %922 = vmatprep.subr.mxu0 0.0
    %923 = vmatpush1.xpose.msra.mxu0 0.0
    %924 = vmatprep.subr.mxu0 0.0
    %925 = vmatpush1.xpose.msra.mxu0 0.0
    %926 = vmatprep.subr.mxu0 0.0
    %927 = vmatpush1.xpose.msra.mxu0 0.0
    %928 = vmatprep.subr.mxu0 0.0
    %929 = vmatpush1.xpose.msra.mxu0 0.0
    %930 = vmatprep.subr.mxu0 0.0
    %931 = vmatpush1.xpose.msra.mxu0 0.0
    %932 = vmatprep.subr.mxu0 0.0
    %933 = vmatpush1.xpose.msra.mxu0 0.0
    %934 = vmatprep.subr.mxu0 0.0
    %935 = vmatpush1.xpose.msra.mxu0 0.0
    %936 = vmatprep.subr.mxu0 0.0
    %937 = vmatpush1.xpose.msra.mxu0 0.0
    %938 = vmatprep.subr.mxu0 0.0
    %939 = vmatpush1.xpose.msra.mxu0 0.0
    %940 = vmatprep.subr.mxu0 0.0
    %941 = vmatpush1.xpose.msra.mxu0 0.0
    %942 = vmatprep.subr.mxu0 0.0
    %943 = vmatpush1.xpose.msra.mxu0 0.0
    %944 = vmatprep.mubr.f32.mxu0 0.0
    %945 = vmatmul.mubr.f32.gmra.mrb[0].mxu0 %v875
    %v946 = vpop.f32.mrb[0].mxu0
    %v947 = vadd.f32 0.0, %v946
    %v948 = vpop.f32.mrb[0].mxu0
    %949 = vdwg.mxu0
    %v951 = vlaneseq
    %v952 = vshrl.u32 %v951, 7
    %v953 = vsub.s32 0, %v952
    %v954 = vrot.slane %v704, %v953
    %v956 = vsub.f32 %v947, %v954
    %v957 = vsel %vm788, %v956, -inf
    %958 = vmax.xlane.f32.xlu0 %v957
    %v959 = vpop.xlane.xlu0 %958
    %v960 = vsub.f32 %v956, %v959
    %v961 = vmul.f32 %v960, 1.442695
    %v962 = vpow.pop %v961
    %v963 = vsel %vm788, %v962, 0.0
    %964 = vadd.xlane.f32.xlu0 %v963
    %v965 = vpop.xlane.xlu0 %964
    %v966 = vrcp.pop %v965
    %v967 = vmul.f32 %v962, %v966
    %s968 = scalar_lea.vmem %s15, 64
    %969 = vst.msk [vmem:[%s968] sm:$0xff] %vm788, %v967
    %v971 = vsel %vm788, %v967, 0
    %973 = vmatprep.subr.mxu0 0.0
    %974 = vmatpush1.msra.mxu0 %v618
    %975 = vmatprep.subr.mxu0 0.0
    %976 = vmatpush1.msra.mxu0 0.0
    %977 = vmatprep.subr.mxu0 0.0
    %978 = vmatpush1.msra.mxu0 0.0
    %979 = vmatprep.subr.mxu0 0.0
    %980 = vmatpush1.msra.mxu0 0.0
    %981 = vmatprep.subr.mxu0 0.0
    %982 = vmatpush1.msra.mxu0 0.0
    %983 = vmatprep.subr.mxu0 0.0
    %984 = vmatpush1.msra.mxu0 0.0
    %985 = vmatprep.subr.mxu0 0.0
    %986 = vmatpush1.msra.mxu0 0.0
    %987 = vmatprep.subr.mxu0 0.0
    %988 = vmatpush1.msra.mxu0 0.0
    %989 = vmatprep.subr.mxu0 0.0
    %990 = vmatpush1.msra.mxu0 0.0
    %991 = vmatprep.subr.mxu0 0.0
    %992 = vmatpush1.msra.mxu0 0.0
    %993 = vmatprep.subr.mxu0 0.0
    %994 = vmatpush1.msra.mxu0 0.0
    %995 = vmatprep.subr.mxu0 0.0
    %996 = vmatpush1.msra.mxu0 0.0
    %997 = vmatprep.subr.mxu0 0.0
    %998 = vmatpush1.msra.mxu0 0.0
    %999 = vmatprep.subr.mxu0 0.0
    %1000 = vmatpush1.msra.mxu0 0.0
    %1001 = vmatprep.subr.mxu0 0.0
    %1002 = vmatpush1.msra.mxu0 0.0
    %1003 = vmatprep.subr.mxu0 0.0
    %1004 = vmatpush1.msra.mxu0 0.0
    %1005 = vmatprep.subr.mxu0 0.0
    %1006 = vmatpush1.msra.mxu0 0.0
    %1007 = vmatprep.subr.mxu0 0.0
    %1008 = vmatpush1.msra.mxu0 0.0
    %1009 = vmatprep.subr.mxu0 0.0
    %1010 = vmatpush1.msra.mxu0 0.0
    %1011 = vmatprep.subr.mxu0 0.0
    %1012 = vmatpush1.msra.mxu0 0.0
    %1013 = vmatprep.subr.mxu0 0.0
    %1014 = vmatpush1.msra.mxu0 0.0
    %1015 = vmatprep.subr.mxu0 0.0
    %1016 = vmatpush1.msra.mxu0 0.0
    %1017 = vmatprep.subr.mxu0 0.0
    %1018 = vmatpush1.msra.mxu0 0.0
    %1019 = vmatprep.subr.mxu0 0.0
    %1020 = vmatpush1.msra.mxu0 0.0
    %1021 = vmatprep.subr.mxu0 0.0
    %1022 = vmatpush1.msra.mxu0 0.0
    %1023 = vmatprep.subr.mxu0 0.0
    %1024 = vmatpush1.msra.mxu0 0.0
    %1025 = vmatprep.subr.mxu0 0.0
    %1026 = vmatpush1.msra.mxu0 0.0
    %1027 = vmatprep.subr.mxu0 0.0
    %1028 = vmatpush1.msra.mxu0 0.0
    %1029 = vmatprep.subr.mxu0 0.0
    %1030 = vmatpush1.msra.mxu0 0.0
    %1031 = vmatprep.subr.mxu0 0.0
    %1032 = vmatpush1.msra.mxu0 0.0
    %1033 = vmatprep.subr.mxu0 0.0
    %1034 = vmatpush1.msra.mxu0 0.0
    %1035 = vmatprep.subr.mxu0 0.0
    %1036 = vmatpush1.msra.mxu0 0.0
    %1037 = vmatprep.mubr.f32.mxu0 0.0
    %1038 = vmatmul.mubr.f32.gmra.mrb[0].mxu0 %v971
    %v1039 = vpop.f32.mrb[0].mxu0
    %v1040 = vadd.f32 0.0, %v1039
    %v1041 = vpop.f32.mrb[0].mxu0
    %1042 = vdwg.mxu0
    %v1043 = vld [vmem:[%s10] sm:$0xff]
    %v1044 = vld [vmem:[%s10 + $0x8] sm:$0xff]
    %v1045 = vld [vmem:[%s10 + $0x10] sm:$0xff]
    %v1046 = vld [vmem:[%s10 + $0x18] sm:$0xff]
    %v1047 = vld [vmem:[%s10 + $0x20] sm:$0xff]
    %v1048 = vld [vmem:[%s10 + $0x28] sm:$0xff]
    %v1049 = vld [vmem:[%s10 + $0x30] sm:$0xff]
    %v1050 = vld [vmem:[%s10 + $0x38] sm:$0xff]
    %1051 = vrot.lane.b32.xlu0 %v184, 64
    %v1052 = vpop.permute.xlu0 %1051
    %1053 = vrot.lane.b32.xlu0 %v398, 64
    %v1054 = vpop.permute.xlu0 %1053
    %v1055 = vsel %vm110, %v1052, 0
    %v1057 = vsel %vm110, %v1054, 0
    %1059 = vmatprep.subr.mxu0 0.0
    %1060 = vmatpush1.xpose.msra.mxu0 %v1057
    %1061 = vmatprep.subr.mxu0 0.0
    %1062 = vmatpush1.xpose.msra.mxu0 0.0
    %1063 = vmatprep.subr.mxu0 0.0
    %1064 = vmatpush1.xpose.msra.mxu0 0.0
    %1065 = vmatprep.subr.mxu0 0.0
    %1066 = vmatpush1.xpose.msra.mxu0 0.0
    %1067 = vmatprep.subr.mxu0 0.0
    %1068 = vmatpush1.xpose.msra.mxu0 0.0
    %1069 = vmatprep.subr.mxu0 0.0
    %1070 = vmatpush1.xpose.msra.mxu0 0.0
    %1071 = vmatprep.subr.mxu0 0.0
    %1072 = vmatpush1.xpose.msra.mxu0 0.0
    %1073 = vmatprep.subr.mxu0 0.0
    %1074 = vmatpush1.xpose.msra.mxu0 0.0
    %1075 = vmatprep.subr.mxu0 0.0
    %1076 = vmatpush1.xpose.msra.mxu0 0.0
    %1077 = vmatprep.subr.mxu0 0.0
    %1078 = vmatpush1.xpose.msra.mxu0 0.0
    %1079 = vmatprep.subr.mxu0 0.0
    %1080 = vmatpush1.xpose.msra.mxu0 0.0
    %1081 = vmatprep.subr.mxu0 0.0
    %1082 = vmatpush1.xpose.msra.mxu0 0.0
    %1083 = vmatprep.subr.mxu0 0.0
    %1084 = vmatpush1.xpose.msra.mxu0 0.0
    %1085 = vmatprep.subr.mxu0 0.0
    %1086 = vmatpush1.xpose.msra.mxu0 0.0
    %1087 = vmatprep.subr.mxu0 0.0
    %1088 = vmatpush1.xpose.msra.mxu0 0.0
    %1089 = vmatprep.subr.mxu0 0.0
    %1090 = vmatpush1.xpose.msra.mxu0 0.0
    %1091 = vmatprep.subr.mxu0 0.0
    %1092 = vmatpush1.xpose.msra.mxu0 0.0
    %1093 = vmatprep.subr.mxu0 0.0
    %1094 = vmatpush1.xpose.msra.mxu0 0.0
    %1095 = vmatprep.subr.mxu0 0.0
    %1096 = vmatpush1.xpose.msra.mxu0 0.0
    %1097 = vmatprep.subr.mxu0 0.0
    %1098 = vmatpush1.xpose.msra.mxu0 0.0
    %1099 = vmatprep.subr.mxu0 0.0
    %1100 = vmatpush1.xpose.msra.mxu0 0.0
    %1101 = vmatprep.subr.mxu0 0.0
    %1102 = vmatpush1.xpose.msra.mxu0 0.0
    %1103 = vmatprep.subr.mxu0 0.0
    %1104 = vmatpush1.xpose.msra.mxu0 0.0
    %1105 = vmatprep.subr.mxu0 0.0
    %1106 = vmatpush1.xpose.msra.mxu0 0.0
    %1107 = vmatprep.subr.mxu0 0.0
    %1108 = vmatpush1.xpose.msra.mxu0 0.0
    %1109 = vmatprep.subr.mxu0 0.0
    %1110 = vmatpush1.xpose.msra.mxu0 0.0
    %1111 = vmatprep.subr.mxu0 0.0
    %1112 = vmatpush1.xpose.msra.mxu0 0.0
    %1113 = vmatprep.subr.mxu0 0.0
    %1114 = vmatpush1.xpose.msra.mxu0 0.0
    %1115 = vmatprep.subr.mxu0 0.0
    %1116 = vmatpush1.xpose.msra.mxu0 0.0
    %1117 = vmatprep.subr.mxu0 0.0
    %1118 = vmatpush1.xpose.msra.mxu0 0.0
    %1119 = vmatprep.subr.mxu0 0.0
    %1120 = vmatpush1.xpose.msra.mxu0 0.0
    %1121 = vmatprep.subr.mxu0 0.0
    %1122 = vmatpush1.xpose.msra.mxu0 0.0
    %1123 = vmatprep.mubr.f32.mxu0 0.0
    %1124 = vmatmul.mubr.f32.gmra.mrb[0].mxu0 %v1055
    %v1125 = vpop.f32.mrb[0].mxu0
    %v1126 = vadd.f32 0.0, %v1125
    %v1127 = vpop.f32.mrb[0].mxu0
    %1128 = vdwg.mxu0
    %v1129 = vsub.f32 %v1126, %v785
    %v1130 = vsel %vm788, %v1129, -inf
    %1131 = vmax.xlane.f32.xlu0 %v1130
    %v1132 = vpop.xlane.xlu0 %1131
    %v1133 = vsub.f32 %v1129, %v1132
    %v1134 = vmul.f32 %v1133, 1.442695
    %v1135 = vpow.pop %v1134
    %v1136 = vsel %vm788, %v1135, 0.0
    %1137 = vadd.xlane.f32.xlu0 %v1136
    %v1138 = vpop.xlane.xlu0 %1137
    %v1139 = vrcp.pop %v1138
    %v1140 = vmul.f32 %v1135, %v1139
    %s1141 = scalar_lea.vmem %s15, 8
    %1142 = vst.msk [vmem:[%s1141] sm:$0xff] %vm788, %v1140
    %1144 = vrot.lane.b32.xlu0 %v612, 64
    %v1145 = vpop.permute.xlu0 %1144
    %v1148 = vsel %vm788, %v1140, 0
    %1150 = vmatprep.subr.mxu0 0.0
    %1151 = vmatpush1.msra.mxu0 %v1145
    %1152 = vmatprep.subr.mxu0 0.0
    %1153 = vmatpush1.msra.mxu0 0.0
    %1154 = vmatprep.subr.mxu0 0.0
    %1155 = vmatpush1.msra.mxu0 0.0
    %1156 = vmatprep.subr.mxu0 0.0
    %1157 = vmatpush1.msra.mxu0 0.0
    %1158 = vmatprep.subr.mxu0 0.0
    %1159 = vmatpush1.msra.mxu0 0.0
    %1160 = vmatprep.subr.mxu0 0.0
    %1161 = vmatpush1.msra.mxu0 0.0
    %1162 = vmatprep.subr.mxu0 0.0
    %1163 = vmatpush1.msra.mxu0 0.0
    %1164 = vmatprep.subr.mxu0 0.0
    %1165 = vmatpush1.msra.mxu0 0.0
    %1166 = vmatprep.subr.mxu0 0.0
    %1167 = vmatpush1.msra.mxu0 0.0
    %1168 = vmatprep.subr.mxu0 0.0
    %1169 = vmatpush1.msra.mxu0 0.0
    %1170 = vmatprep.subr.mxu0 0.0
    %1171 = vmatpush1.msra.mxu0 0.0
    %1172 = vmatprep.subr.mxu0 0.0
    %1173 = vmatpush1.msra.mxu0 0.0
    %1174 = vmatprep.subr.mxu0 0.0
    %1175 = vmatpush1.msra.mxu0 0.0
    %1176 = vmatprep.subr.mxu0 0.0
    %1177 = vmatpush1.msra.mxu0 0.0
    %1178 = vmatprep.subr.mxu0 0.0
    %1179 = vmatpush1.msra.mxu0 0.0
    %1180 = vmatprep.subr.mxu0 0.0
    %1181 = vmatpush1.msra.mxu0 0.0
    %1182 = vmatprep.subr.mxu0 0.0
    %1183 = vmatpush1.msra.mxu0 0.0
    %1184 = vmatprep.subr.mxu0 0.0
    %1185 = vmatpush1.msra.mxu0 0.0
    %1186 = vmatprep.subr.mxu0 0.0
    %1187 = vmatpush1.msra.mxu0 0.0
    %1188 = vmatprep.subr.mxu0 0.0
    %1189 = vmatpush1.msra.mxu0 0.0
    %1190 = vmatprep.subr.mxu0 0.0
    %1191 = vmatpush1.msra.mxu0 0.0
    %1192 = vmatprep.subr.mxu0 0.0
    %1193 = vmatpush1.msra.mxu0 0.0
    %1194 = vmatprep.subr.mxu0 0.0
    %1195 = vmatpush1.msra.mxu0 0.0
    %1196 = vmatprep.subr.mxu0 0.0
    %1197 = vmatpush1.msra.mxu0 0.0
    %1198 = vmatprep.subr.mxu0 0.0
    %1199 = vmatpush1.msra.mxu0 0.0
    %1200 = vmatprep.subr.mxu0 0.0
    %1201 = vmatpush1.msra.mxu0 0.0
    %1202 = vmatprep.subr.mxu0 0.0
    %1203 = vmatpush1.msra.mxu0 0.0
    %1204 = vmatprep.subr.mxu0 0.0
    %1205 = vmatpush1.msra.mxu0 0.0
    %1206 = vmatprep.subr.mxu0 0.0
    %1207 = vmatpush1.msra.mxu0 0.0
    %1208 = vmatprep.subr.mxu0 0.0
    %1209 = vmatpush1.msra.mxu0 0.0
    %1210 = vmatprep.subr.mxu0 0.0
    %1211 = vmatpush1.msra.mxu0 0.0
    %1212 = vmatprep.subr.mxu0 0.0
    %1213 = vmatpush1.msra.mxu0 0.0
    %1214 = vmatprep.mubr.f32.mxu0 0.0
    %1215 = vmatmul.mubr.f32.gmra.mrb[0].mxu0 %v1148
    %v1216 = vpop.f32.mrb[0].mxu0
    %v1217 = vadd.f32 0.0, %v1216
    %v1218 = vpop.f32.mrb[0].mxu0
    %1219 = vdwg.mxu0
    %1220 = vrot.lane.b32.xlu0 %v190, 64
    %v1221 = vpop.permute.xlu0 %1220
    %1222 = vrot.lane.b32.xlu0 %v404, 64
    %v1223 = vpop.permute.xlu0 %1222
    %v1224 = vsel %vm110, %v1221, 0
    %v1226 = vsel %vm110, %v1223, 0
    %1228 = vmatprep.subr.mxu0 0.0
    %1229 = vmatpush1.xpose.msra.mxu0 %v1226
    %1230 = vmatprep.subr.mxu0 0.0
    %1231 = vmatpush1.xpose.msra.mxu0 0.0
    %1232 = vmatprep.subr.mxu0 0.0
    %1233 = vmatpush1.xpose.msra.mxu0 0.0
    %1234 = vmatprep.subr.mxu0 0.0
    %1235 = vmatpush1.xpose.msra.mxu0 0.0
    %1236 = vmatprep.subr.mxu0 0.0
    %1237 = vmatpush1.xpose.msra.mxu0 0.0
    %1238 = vmatprep.subr.mxu0 0.0
    %1239 = vmatpush1.xpose.msra.mxu0 0.0
    %1240 = vmatprep.subr.mxu0 0.0
    %1241 = vmatpush1.xpose.msra.mxu0 0.0
    %1242 = vmatprep.subr.mxu0 0.0
    %1243 = vmatpush1.xpose.msra.mxu0 0.0
    %1244 = vmatprep.subr.mxu0 0.0
    %1245 = vmatpush1.xpose.msra.mxu0 0.0
    %1246 = vmatprep.subr.mxu0 0.0
    %1247 = vmatpush1.xpose.msra.mxu0 0.0
    %1248 = vmatprep.subr.mxu0 0.0
    %1249 = vmatpush1.xpose.msra.mxu0 0.0
    %1250 = vmatprep.subr.mxu0 0.0
    %1251 = vmatpush1.xpose.msra.mxu0 0.0
    %1252 = vmatprep.subr.mxu0 0.0
    %1253 = vmatpush1.xpose.msra.mxu0 0.0
    %1254 = vmatprep.subr.mxu0 0.0
    %1255 = vmatpush1.xpose.msra.mxu0 0.0
    %1256 = vmatprep.subr.mxu0 0.0
    %1257 = vmatpush1.xpose.msra.mxu0 0.0
    %1258 = vmatprep.subr.mxu0 0.0
    %1259 = vmatpush1.xpose.msra.mxu0 0.0
    %1260 = vmatprep.subr.mxu0 0.0
    %1261 = vmatpush1.xpose.msra.mxu0 0.0
    %1262 = vmatprep.subr.mxu0 0.0
    %1263 = vmatpush1.xpose.msra.mxu0 0.0
    %1264 = vmatprep.subr.mxu0 0.0
    %1265 = vmatpush1.xpose.msra.mxu0 0.0
    %1266 = vmatprep.subr.mxu0 0.0
    %1267 = vmatpush1.xpose.msra.mxu0 0.0
    %1268 = vmatprep.subr.mxu0 0.0
    %1269 = vmatpush1.xpose.msra.mxu0 0.0
    %1270 = vmatprep.subr.mxu0 0.0
    %1271 = vmatpush1.xpose.msra.mxu0 0.0
    %1272 = vmatprep.subr.mxu0 0.0
    %1273 = vmatpush1.xpose.msra.mxu0 0.0
    %1274 = vmatprep.subr.mxu0 0.0
    %1275 = vmatpush1.xpose.msra.mxu0 0.0
    %1276 = vmatprep.subr.mxu0 0.0
    %1277 = vmatpush1.xpose.msra.mxu0 0.0
    %1278 = vmatprep.subr.mxu0 0.0
    %1279 = vmatpush1.xpose.msra.mxu0 0.0
    %1280 = vmatprep.subr.mxu0 0.0
    %1281 = vmatpush1.xpose.msra.mxu0 0.0
    %1282 = vmatprep.subr.mxu0 0.0
    %1283 = vmatpush1.xpose.msra.mxu0 0.0
    %1284 = vmatprep.subr.mxu0 0.0
    %1285 = vmatpush1.xpose.msra.mxu0 0.0
    %1286 = vmatprep.subr.mxu0 0.0
    %1287 = vmatpush1.xpose.msra.mxu0 0.0
    %1288 = vmatprep.subr.mxu0 0.0
    %1289 = vmatpush1.xpose.msra.mxu0 0.0
    %1290 = vmatprep.subr.mxu0 0.0
    %1291 = vmatpush1.xpose.msra.mxu0 0.0
    %1292 = vmatprep.mubr.f32.mxu0 0.0
    %1293 = vmatmul.mubr.f32.gmra.mrb[0].mxu0 %v1224
    %v1294 = vpop.f32.mrb[0].mxu0
    %v1295 = vadd.f32 0.0, %v1294
    %v1296 = vpop.f32.mrb[0].mxu0
    %1297 = vdwg.mxu0
    %v1298 = vsub.f32 %v1295, %v954
    %v1299 = vsel %vm788, %v1298, -inf
    %1300 = vmax.xlane.f32.xlu0 %v1299
    %v1301 = vpop.xlane.xlu0 %1300
    %v1302 = vsub.f32 %v1298, %v1301
    %v1303 = vmul.f32 %v1302, 1.442695
    %v1304 = vpow.pop %v1303
    %v1305 = vsel %vm788, %v1304, 0.0
    %1306 = vadd.xlane.f32.xlu0 %v1305
    %v1307 = vpop.xlane.xlu0 %1306
    %v1308 = vrcp.pop %v1307
    %v1309 = vmul.f32 %v1304, %v1308
    %s1310 = scalar_lea.vmem %s15, 72
    %1311 = vst.msk [vmem:[%s1310] sm:$0xff] %vm788, %v1309
    %1313 = vrot.lane.b32.xlu0 %v618, 64
    %v1314 = vpop.permute.xlu0 %1313
    %v1317 = vsel %vm788, %v1309, 0
    %1319 = vmatprep.subr.mxu0 0.0
    %1320 = vmatpush1.msra.mxu0 %v1314
    %1321 = vmatprep.subr.mxu0 0.0
    %1322 = vmatpush1.msra.mxu0 0.0
    %1323 = vmatprep.subr.mxu0 0.0
    %1324 = vmatpush1.msra.mxu0 0.0
    %1325 = vmatprep.subr.mxu0 0.0
    %1326 = vmatpush1.msra.mxu0 0.0
    %1327 = vmatprep.subr.mxu0 0.0
    %1328 = vmatpush1.msra.mxu0 0.0
    %1329 = vmatprep.subr.mxu0 0.0
    %1330 = vmatpush1.msra.mxu0 0.0
    %1331 = vmatprep.subr.mxu0 0.0
    %1332 = vmatpush1.msra.mxu0 0.0
    %1333 = vmatprep.subr.mxu0 0.0
    %1334 = vmatpush1.msra.mxu0 0.0
    %1335 = vmatprep.subr.mxu0 0.0
    %1336 = vmatpush1.msra.mxu0 0.0
    %1337 = vmatprep.subr.mxu0 0.0
    %1338 = vmatpush1.msra.mxu0 0.0
    %1339 = vmatprep.subr.mxu0 0.0
    %1340 = vmatpush1.msra.mxu0 0.0
    %1341 = vmatprep.subr.mxu0 0.0
    %1342 = vmatpush1.msra.mxu0 0.0
    %1343 = vmatprep.subr.mxu0 0.0
    %1344 = vmatpush1.msra.mxu0 0.0
    %1345 = vmatprep.subr.mxu0 0.0
    %1346 = vmatpush1.msra.mxu0 0.0
    %1347 = vmatprep.subr.mxu0 0.0
    %1348 = vmatpush1.msra.mxu0 0.0
    %1349 = vmatprep.subr.mxu0 0.0
    %1350 = vmatpush1.msra.mxu0 0.0
    %1351 = vmatprep.subr.mxu0 0.0
    %1352 = vmatpush1.msra.mxu0 0.0
    %1353 = vmatprep.subr.mxu0 0.0
    %1354 = vmatpush1.msra.mxu0 0.0
    %1355 = vmatprep.subr.mxu0 0.0
    %1356 = vmatpush1.msra.mxu0 0.0
    %1357 = vmatprep.subr.mxu0 0.0
    %1358 = vmatpush1.msra.mxu0 0.0
    %1359 = vmatprep.subr.mxu0 0.0
    %1360 = vmatpush1.msra.mxu0 0.0
    %1361 = vmatprep.subr.mxu0 0.0
    %1362 = vmatpush1.msra.mxu0 0.0
    %1363 = vmatprep.subr.mxu0 0.0
    %1364 = vmatpush1.msra.mxu0 0.0
    %1365 = vmatprep.subr.mxu0 0.0
    %1366 = vmatpush1.msra.mxu0 0.0
    %1367 = vmatprep.subr.mxu0 0.0
    %1368 = vmatpush1.msra.mxu0 0.0
    %1369 = vmatprep.subr.mxu0 0.0
    %1370 = vmatpush1.msra.mxu0 0.0
    %1371 = vmatprep.subr.mxu0 0.0
    %1372 = vmatpush1.msra.mxu0 0.0
    %1373 = vmatprep.subr.mxu0 0.0
    %1374 = vmatpush1.msra.mxu0 0.0
    %1375 = vmatprep.subr.mxu0 0.0
    %1376 = vmatpush1.msra.mxu0 0.0
    %1377 = vmatprep.subr.mxu0 0.0
    %1378 = vmatpush1.msra.mxu0 0.0
    %1379 = vmatprep.subr.mxu0 0.0
    %1380 = vmatpush1.msra.mxu0 0.0
    %1381 = vmatprep.subr.mxu0 0.0
    %1382 = vmatpush1.msra.mxu0 0.0
    %1383 = vmatprep.mubr.f32.mxu0 0.0
    %1384 = vmatmul.mubr.f32.gmra.mrb[0].mxu0 %v1317
    %v1385 = vpop.f32.mrb[0].mxu0
    %v1386 = vadd.f32 0.0, %v1385
    %v1387 = vpop.f32.mrb[0].mxu0
    %1388 = vdwg.mxu0
    %v1389 = vld [vmem:[%s10 + $0x40] sm:$0xff]
    %v1390 = vld [vmem:[%s10 + $0x48] sm:$0xff]
    %v1391 = vld [vmem:[%s10 + $0x50] sm:$0xff]
    %v1392 = vld [vmem:[%s10 + $0x58] sm:$0xff]
    %v1393 = vld [vmem:[%s10 + $0x60] sm:$0xff]
    %v1394 = vld [vmem:[%s10 + $0x68] sm:$0xff]
    %v1395 = vld [vmem:[%s10 + $0x70] sm:$0xff]
    %v1396 = vld [vmem:[%s10 + $0x78] sm:$0xff]
    %v1398 = vsel %vm110, %v1217, 0
    %v1401 = vsel %vm110, %v1386, 0
    %1403 = vmatprep.subr.mxu0 0.0
    %1404 = vmatpush1.msra.mxu0 %v1389
    %1405 = vmatprep.subr.mxu0 0.0
    %1406 = vmatpush1.msra.mxu0 %v1390
    %1407 = vmatprep.subr.mxu0 0.0
    %1408 = vmatpush1.msra.mxu0 %v1391
    %1409 = vmatprep.subr.mxu0 0.0
    %1410 = vmatpush1.msra.mxu0 %v1392
    %1411 = vmatprep.subr.mxu0 0.0
    %1412 = vmatpush1.msra.mxu0 %v1393
    %1413 = vmatprep.subr.mxu0 0.0
    %1414 = vmatpush1.msra.mxu0 %v1394
    %1415 = vmatprep.subr.mxu0 0.0
    %1416 = vmatpush1.msra.mxu0 %v1395
    %1417 = vmatprep.subr.mxu0 0.0
    %1418 = vmatpush1.msra.mxu0 %v1396
    %1419 = vmatprep.subr.mxu0 0.0
    %1420 = vmatpush1.msra.mxu0 0.0
    %1421 = vmatprep.subr.mxu0 0.0
    %1422 = vmatpush1.msra.mxu0 0.0
    %1423 = vmatprep.subr.mxu0 0.0
    %1424 = vmatpush1.msra.mxu0 0.0
    %1425 = vmatprep.subr.mxu0 0.0
    %1426 = vmatpush1.msra.mxu0 0.0
    %1427 = vmatprep.subr.mxu0 0.0
    %1428 = vmatpush1.msra.mxu0 0.0
    %1429 = vmatprep.subr.mxu0 0.0
    %1430 = vmatpush1.msra.mxu0 0.0
    %1431 = vmatprep.subr.mxu0 0.0
    %1432 = vmatpush1.msra.mxu0 0.0
    %1433 = vmatprep.subr.mxu0 0.0
    %1434 = vmatpush1.msra.mxu0 0.0
    %1435 = vmatprep.subr.mxu0 0.0
    %1436 = vmatpush1.msra.mxu0 0.0
    %1437 = vmatprep.subr.mxu0 0.0
    %1438 = vmatpush1.msra.mxu0 0.0
    %1439 = vmatprep.subr.mxu0 0.0
    %1440 = vmatpush1.msra.mxu0 0.0
    %1441 = vmatprep.subr.mxu0 0.0
    %1442 = vmatpush1.msra.mxu0 0.0
    %1443 = vmatprep.subr.mxu0 0.0
    %1444 = vmatpush1.msra.mxu0 0.0
    %1445 = vmatprep.subr.mxu0 0.0
    %1446 = vmatpush1.msra.mxu0 0.0
    %1447 = vmatprep.subr.mxu0 0.0
    %1448 = vmatpush1.msra.mxu0 0.0
    %1449 = vmatprep.subr.mxu0 0.0
    %1450 = vmatpush1.msra.mxu0 0.0
    %1451 = vmatprep.subr.mxu0 0.0
    %1452 = vmatpush1.msra.mxu0 0.0
    %1453 = vmatprep.subr.mxu0 0.0
    %1454 = vmatpush1.msra.mxu0 0.0
    %1455 = vmatprep.subr.mxu0 0.0
    %1456 = vmatpush1.msra.mxu0 0.0
    %1457 = vmatprep.subr.mxu0 0.0
    %1458 = vmatpush1.msra.mxu0 0.0
    %1459 = vmatprep.subr.mxu0 0.0
    %1460 = vmatpush1.msra.mxu0 0.0
    %1461 = vmatprep.subr.mxu0 0.0
    %1462 = vmatpush1.msra.mxu0 0.0
    %1463 = vmatprep.subr.mxu0 0.0
    %1464 = vmatpush1.msra.mxu0 0.0
    %1465 = vmatprep.subr.mxu0 0.0
    %1466 = vmatpush1.msra.mxu0 0.0
    %1467 = vmatprep.mubr.f32.mxu0 0.0
    %1468 = vmatmul.mubr.f32.gmra.mrb[0].mxu0 %v1398
    %v1469 = vpop.f32.mrb[0].mxu0
    %v1470 = vadd.f32 0.0, %v1469
    %v1471 = vpop.f32.mrb[0].mxu0
    %1472 = vmatprep.mubr.f32.mxu0 0.0
    %1473 = vmatmul.mubr.f32.gmra.mrb[0].mxu0 %v1401
    %v1474 = vpop.f32.mrb[0].mxu0
    %v1475 = vadd.f32 0.0, %v1474
    %v1476 = vpop.f32.mrb[0].mxu0
    %1477 = vdwg.mxu0
    %v1479 = vsel %vm110, %v871, 0
    %v1482 = vsel %vm110, %v1040, 0
    %1484 = vmatprep.subr.mxu0 0.0
    %1485 = vmatpush1.msra.mxu0 %v1043
    %1486 = vmatprep.subr.mxu0 0.0
    %1487 = vmatpush1.msra.mxu0 %v1044
    %1488 = vmatprep.subr.mxu0 0.0
    %1489 = vmatpush1.msra.mxu0 %v1045
    %1490 = vmatprep.subr.mxu0 0.0
    %1491 = vmatpush1.msra.mxu0 %v1046
    %1492 = vmatprep.subr.mxu0 0.0
    %1493 = vmatpush1.msra.mxu0 %v1047
    %1494 = vmatprep.subr.mxu0 0.0
    %1495 = vmatpush1.msra.mxu0 %v1048
    %1496 = vmatprep.subr.mxu0 0.0
    %1497 = vmatpush1.msra.mxu0 %v1049
    %1498 = vmatprep.subr.mxu0 0.0
    %1499 = vmatpush1.msra.mxu0 %v1050
    %1500 = vmatprep.subr.mxu0 0.0
    %1501 = vmatpush1.msra.mxu0 0.0
    %1502 = vmatprep.subr.mxu0 0.0
    %1503 = vmatpush1.msra.mxu0 0.0
    %1504 = vmatprep.subr.mxu0 0.0
    %1505 = vmatpush1.msra.mxu0 0.0
    %1506 = vmatprep.subr.mxu0 0.0
    %1507 = vmatpush1.msra.mxu0 0.0
    %1508 = vmatprep.subr.mxu0 0.0
    %1509 = vmatpush1.msra.mxu0 0.0
    %1510 = vmatprep.subr.mxu0 0.0
    %1511 = vmatpush1.msra.mxu0 0.0
    %1512 = vmatprep.subr.mxu0 0.0
    %1513 = vmatpush1.msra.mxu0 0.0
    %1514 = vmatprep.subr.mxu0 0.0
    %1515 = vmatpush1.msra.mxu0 0.0
    %1516 = vmatprep.subr.mxu0 0.0
    %1517 = vmatpush1.msra.mxu0 0.0
    %1518 = vmatprep.subr.mxu0 0.0
    %1519 = vmatpush1.msra.mxu0 0.0
    %1520 = vmatprep.subr.mxu0 0.0
    %1521 = vmatpush1.msra.mxu0 0.0
    %1522 = vmatprep.subr.mxu0 0.0
    %1523 = vmatpush1.msra.mxu0 0.0
    %1524 = vmatprep.subr.mxu0 0.0
    %1525 = vmatpush1.msra.mxu0 0.0
    %1526 = vmatprep.subr.mxu0 0.0
    %1527 = vmatpush1.msra.mxu0 0.0
    %1528 = vmatprep.subr.mxu0 0.0
    %1529 = vmatpush1.msra.mxu0 0.0
    %1530 = vmatprep.subr.mxu0 0.0
    %1531 = vmatpush1.msra.mxu0 0.0
    %1532 = vmatprep.subr.mxu0 0.0
    %1533 = vmatpush1.msra.mxu0 0.0
    %1534 = vmatprep.subr.mxu0 0.0
    %1535 = vmatpush1.msra.mxu0 0.0
    %1536 = vmatprep.subr.mxu0 0.0
    %1537 = vmatpush1.msra.mxu0 0.0
    %1538 = vmatprep.subr.mxu0 0.0
    %1539 = vmatpush1.msra.mxu0 0.0
    %1540 = vmatprep.subr.mxu0 0.0
    %1541 = vmatpush1.msra.mxu0 0.0
    %1542 = vmatprep.subr.mxu0 0.0
    %1543 = vmatpush1.msra.mxu0 0.0
    %1544 = vmatprep.subr.mxu0 0.0
    %1545 = vmatpush1.msra.mxu0 0.0
    %1546 = vmatprep.subr.mxu0 0.0
    %1547 = vmatpush1.msra.mxu0 0.0
    %1548 = vmatprep.mubr.f32.mxu0 0.0
    %1549 = vmatmul.mubr.f32.gmra.mrb[0].mxu0 %v1479
    %v1550 = vpop.f32.mrb[0].mxu0
    %v1551 = vadd.f32 %v1470, %v1550
    %v1552 = vpop.f32.mrb[0].mxu0
    %1553 = vmatprep.mubr.f32.mxu0 0.0
    %1554 = vmatmul.mubr.f32.gmra.mrb[0].mxu0 %v1482
    %v1555 = vpop.f32.mrb[0].mxu0
    %v1556 = vadd.f32 %v1475, %v1555
    %v1557 = vpop.f32.mrb[0].mxu0
    %1558 = vdwg.mxu0
    %v1560 = vsel %vm110, %v186, 0
    %v1563 = vsel %vm110, %v400, 0
    %1565 = vmatprep.subr.mxu0 0.0
    %1566 = vmatpush1.xpose.msra.mxu0 %v1563
    %1567 = vmatprep.subr.mxu0 0.0
    %1568 = vmatpush1.xpose.msra.mxu0 0.0
    %1569 = vmatprep.subr.mxu0 0.0
    %1570 = vmatpush1.xpose.msra.mxu0 0.0
    %1571 = vmatprep.subr.mxu0 0.0
    %1572 = vmatpush1.xpose.msra.mxu0 0.0
    %1573 = vmatprep.subr.mxu0 0.0
    %1574 = vmatpush1.xpose.msra.mxu0 0.0
    %1575 = vmatprep.subr.mxu0 0.0
    %1576 = vmatpush1.xpose.msra.mxu0 0.0
    %1577 = vmatprep.subr.mxu0 0.0
    %1578 = vmatpush1.xpose.msra.mxu0 0.0
    %1579 = vmatprep.subr.mxu0 0.0
    %1580 = vmatpush1.xpose.msra.mxu0 0.0
    %1581 = vmatprep.subr.mxu0 0.0
    %1582 = vmatpush1.xpose.msra.mxu0 0.0
    %1583 = vmatprep.subr.mxu0 0.0
    %1584 = vmatpush1.xpose.msra.mxu0 0.0
    %1585 = vmatprep.subr.mxu0 0.0
    %1586 = vmatpush1.xpose.msra.mxu0 0.0
    %1587 = vmatprep.subr.mxu0 0.0
    %1588 = vmatpush1.xpose.msra.mxu0 0.0
    %1589 = vmatprep.subr.mxu0 0.0
    %1590 = vmatpush1.xpose.msra.mxu0 0.0
    %1591 = vmatprep.subr.mxu0 0.0
    %1592 = vmatpush1.xpose.msra.mxu0 0.0
    %1593 = vmatprep.subr.mxu0 0.0
    %1594 = vmatpush1.xpose.msra.mxu0 0.0
    %1595 = vmatprep.subr.mxu0 0.0
    %1596 = vmatpush1.xpose.msra.mxu0 0.0
    %1597 = vmatprep.subr.mxu0 0.0
    %1598 = vmatpush1.xpose.msra.mxu0 0.0
    %1599 = vmatprep.subr.mxu0 0.0
    %1600 = vmatpush1.xpose.msra.mxu0 0.0
    %1601 = vmatprep.subr.mxu0 0.0
    %1602 = vmatpush1.xpose.msra.mxu0 0.0
    %1603 = vmatprep.subr.mxu0 0.0
    %1604 = vmatpush1.xpose.msra.mxu0 0.0
    %1605 = vmatprep.subr.mxu0 0.0
    %1606 = vmatpush1.xpose.msra.mxu0 0.0
    %1607 = vmatprep.subr.mxu0 0.0
    %1608 = vmatpush1.xpose.msra.mxu0 0.0
    %1609 = vmatprep.subr.mxu0 0.0
    %1610 = vmatpush1.xpose.msra.mxu0 0.0
    %1611 = vmatprep.subr.mxu0 0.0
    %1612 = vmatpush1.xpose.msra.mxu0 0.0
    %1613 = vmatprep.subr.mxu0 0.0
    %1614 = vmatpush1.xpose.msra.mxu0 0.0
    %1615 = vmatprep.subr.mxu0 0.0
    %1616 = vmatpush1.xpose.msra.mxu0 0.0
    %1617 = vmatprep.subr.mxu0 0.0
    %1618 = vmatpush1.xpose.msra.mxu0 0.0
    %1619 = vmatprep.subr.mxu0 0.0
    %1620 = vmatpush1.xpose.msra.mxu0 0.0
    %1621 = vmatprep.subr.mxu0 0.0
    %1622 = vmatpush1.xpose.msra.mxu0 0.0
    %1623 = vmatprep.subr.mxu0 0.0
    %1624 = vmatpush1.xpose.msra.mxu0 0.0
    %1625 = vmatprep.subr.mxu0 0.0
    %1626 = vmatpush1.xpose.msra.mxu0 0.0
    %1627 = vmatprep.subr.mxu0 0.0
    %1628 = vmatpush1.xpose.msra.mxu0 0.0
    %1629 = vmatprep.mubr.f32.mxu0 0.0
    %1630 = vmatmul.mubr.f32.gmra.mrb[0].mxu0 %v1560
    %v1631 = vpop.f32.mrb[0].mxu0
    %v1632 = vadd.f32 0.0, %v1631
    %v1633 = vpop.f32.mrb[0].mxu0
    %1634 = vdwg.mxu0
    %v1635 = vsub.f32 %v1632, %v785
    %v1636 = vsel %vm788, %v1635, -inf
    %1637 = vmax.xlane.f32.xlu0 %v1636
    %v1638 = vpop.xlane.xlu0 %1637
    %v1639 = vsub.f32 %v1635, %v1638
    %v1640 = vmul.f32 %v1639, 1.442695
    %v1641 = vpow.pop %v1640
    %v1642 = vsel %vm788, %v1641, 0.0
    %1643 = vadd.xlane.f32.xlu0 %v1642
    %v1644 = vpop.xlane.xlu0 %1643
    %v1645 = vrcp.pop %v1644
    %v1646 = vmul.f32 %v1641, %v1645
    %s1647 = scalar_lea.vmem %s15, 16
    %1648 = vst.msk [vmem:[%s1647] sm:$0xff] %vm788, %v1646
    %v1650 = vsel %vm788, %v1646, 0
    %1652 = vmatprep.subr.mxu0 0.0
    %1653 = vmatpush1.msra.mxu0 %v614
    %1654 = vmatprep.subr.mxu0 0.0
    %1655 = vmatpush1.msra.mxu0 0.0
    %1656 = vmatprep.subr.mxu0 0.0
    %1657 = vmatpush1.msra.mxu0 0.0
    %1658 = vmatprep.subr.mxu0 0.0
    %1659 = vmatpush1.msra.mxu0 0.0
    %1660 = vmatprep.subr.mxu0 0.0
    %1661 = vmatpush1.msra.mxu0 0.0
    %1662 = vmatprep.subr.mxu0 0.0
    %1663 = vmatpush1.msra.mxu0 0.0
    %1664 = vmatprep.subr.mxu0 0.0
    %1665 = vmatpush1.msra.mxu0 0.0
    %1666 = vmatprep.subr.mxu0 0.0
    %1667 = vmatpush1.msra.mxu0 0.0
    %1668 = vmatprep.subr.mxu0 0.0
    %1669 = vmatpush1.msra.mxu0 0.0
    %1670 = vmatprep.subr.mxu0 0.0
    %1671 = vmatpush1.msra.mxu0 0.0
    %1672 = vmatprep.subr.mxu0 0.0
    %1673 = vmatpush1.msra.mxu0 0.0
    %1674 = vmatprep.subr.mxu0 0.0
    %1675 = vmatpush1.msra.mxu0 0.0
    %1676 = vmatprep.subr.mxu0 0.0
    %1677 = vmatpush1.msra.mxu0 0.0
    %1678 = vmatprep.subr.mxu0 0.0
    %1679 = vmatpush1.msra.mxu0 0.0
    %1680 = vmatprep.subr.mxu0 0.0
    %1681 = vmatpush1.msra.mxu0 0.0
    %1682 = vmatprep.subr.mxu0 0.0
    %1683 = vmatpush1.msra.mxu0 0.0
    %1684 = vmatprep.subr.mxu0 0.0
    %1685 = vmatpush1.msra.mxu0 0.0
    %1686 = vmatprep.subr.mxu0 0.0
    %1687 = vmatpush1.msra.mxu0 0.0
    %1688 = vmatprep.subr.mxu0 0.0
    %1689 = vmatpush1.msra.mxu0 0.0
    %1690 = vmatprep.subr.mxu0 0.0
    %1691 = vmatpush1.msra.mxu0 0.0
    %1692 = vmatprep.subr.mxu0 0.0
    %1693 = vmatpush1.msra.mxu0 0.0
    %1694 = vmatprep.subr.mxu0 0.0
    %1695 = vmatpush1.msra.mxu0 0.0
    %1696 = vmatprep.subr.mxu0 0.0
    %1697 = vmatpush1.msra.mxu0 0.0
    %1698 = vmatprep.subr.mxu0 0.0
    %1699 = vmatpush1.msra.mxu0 0.0
    %1700 = vmatprep.subr.mxu0 0.0
    %1701 = vmatpush1.msra.mxu0 0.0
    %1702 = vmatprep.subr.mxu0 0.0
    %1703 = vmatpush1.msra.mxu0 0.0
    %1704 = vmatprep.subr.mxu0 0.0
    %1705 = vmatpush1.msra.mxu0 0.0
    %1706 = vmatprep.subr.mxu0 0.0
    %1707 = vmatpush1.msra.mxu0 0.0
    %1708 = vmatprep.subr.mxu0 0.0
    %1709 = vmatpush1.msra.mxu0 0.0
    %1710 = vmatprep.subr.mxu0 0.0
    %1711 = vmatpush1.msra.mxu0 0.0
    %1712 = vmatprep.subr.mxu0 0.0
    %1713 = vmatpush1.msra.mxu0 0.0
    %1714 = vmatprep.subr.mxu0 0.0
    %1715 = vmatpush1.msra.mxu0 0.0
    %1716 = vmatprep.mubr.f32.mxu0 0.0
    %1717 = vmatmul.mubr.f32.gmra.mrb[0].mxu0 %v1650
    %v1718 = vpop.f32.mrb[0].mxu0
    %v1719 = vadd.f32 0.0, %v1718
    %v1720 = vpop.f32.mrb[0].mxu0
    %1721 = vdwg.mxu0
    %v1723 = vsel %vm110, %v192, 0
    %v1726 = vsel %vm110, %v406, 0
    %1728 = vmatprep.subr.mxu0 0.0
    %1729 = vmatpush1.xpose.msra.mxu0 %v1726
    %1730 = vmatprep.subr.mxu0 0.0
    %1731 = vmatpush1.xpose.msra.mxu0 0.0
    %1732 = vmatprep.subr.mxu0 0.0
    %1733 = vmatpush1.xpose.msra.mxu0 0.0
    %1734 = vmatprep.subr.mxu0 0.0
    %1735 = vmatpush1.xpose.msra.mxu0 0.0
    %1736 = vmatprep.subr.mxu0 0.0
    %1737 = vmatpush1.xpose.msra.mxu0 0.0
    %1738 = vmatprep.subr.mxu0 0.0
    %1739 = vmatpush1.xpose.msra.mxu0 0.0
    %1740 = vmatprep.subr.mxu0 0.0
    %1741 = vmatpush1.xpose.msra.mxu0 0.0
    %1742 = vmatprep.subr.mxu0 0.0
    %1743 = vmatpush1.xpose.msra.mxu0 0.0
    %1744 = vmatprep.subr.mxu0 0.0
    %1745 = vmatpush1.xpose.msra.mxu0 0.0
    %1746 = vmatprep.subr.mxu0 0.0
    %1747 = vmatpush1.xpose.msra.mxu0 0.0
    %1748 = vmatprep.subr.mxu0 0.0
    %1749 = vmatpush1.xpose.msra.mxu0 0.0
    %1750 = vmatprep.subr.mxu0 0.0
    %1751 = vmatpush1.xpose.msra.mxu0 0.0
    %1752 = vmatprep.subr.mxu0 0.0
    %1753 = vmatpush1.xpose.msra.mxu0 0.0
    %1754 = vmatprep.subr.mxu0 0.0
    %1755 = vmatpush1.xpose.msra.mxu0 0.0
    %1756 = vmatprep.subr.mxu0 0.0
    %1757 = vmatpush1.xpose.msra.mxu0 0.0
    %1758 = vmatprep.subr.mxu0 0.0
    %1759 = vmatpush1.xpose.msra.mxu0 0.0
    %1760 = vmatprep.subr.mxu0 0.0
    %1761 = vmatpush1.xpose.msra.mxu0 0.0
    %1762 = vmatprep.subr.mxu0 0.0
    %1763 = vmatpush1.xpose.msra.mxu0 0.0
    %1764 = vmatprep.subr.mxu0 0.0
    %1765 = vmatpush1.xpose.msra.mxu0 0.0
    %1766 = vmatprep.subr.mxu0 0.0
    %1767 = vmatpush1.xpose.msra.mxu0 0.0
    %1768 = vmatprep.subr.mxu0 0.0
    %1769 = vmatpush1.xpose.msra.mxu0 0.0
    %1770 = vmatprep.subr.mxu0 0.0
    %1771 = vmatpush1.xpose.msra.mxu0 0.0
    %1772 = vmatprep.subr.mxu0 0.0
    %1773 = vmatpush1.xpose.msra.mxu0 0.0
    %1774 = vmatprep.subr.mxu0 0.0
    %1775 = vmatpush1.xpose.msra.mxu0 0.0
    %1776 = vmatprep.subr.mxu0 0.0
    %1777 = vmatpush1.xpose.msra.mxu0 0.0
    %1778 = vmatprep.subr.mxu0 0.0
    %1779 = vmatpush1.xpose.msra.mxu0 0.0
    %1780 = vmatprep.subr.mxu0 0.0
    %1781 = vmatpush1.xpose.msra.mxu0 0.0
    %1782 = vmatprep.subr.mxu0 0.0
    %1783 = vmatpush1.xpose.msra.mxu0 0.0
    %1784 = vmatprep.subr.mxu0 0.0
    %1785 = vmatpush1.xpose.msra.mxu0 0.0
    %1786 = vmatprep.subr.mxu0 0.0
    %1787 = vmatpush1.xpose.msra.mxu0 0.0
    %1788 = vmatprep.subr.mxu0 0.0
    %1789 = vmatpush1.xpose.msra.mxu0 0.0
    %1790 = vmatprep.subr.mxu0 0.0
    %1791 = vmatpush1.xpose.msra.mxu0 0.0
    %1792 = vmatprep.mubr.f32.mxu0 0.0
    %1793 = vmatmul.mubr.f32.gmra.mrb[0].mxu0 %v1723
    %v1794 = vpop.f32.mrb[0].mxu0
    %v1795 = vadd.f32 0.0, %v1794
    %v1796 = vpop.f32.mrb[0].mxu0
    %1797 = vdwg.mxu0
    %v1798 = vsub.f32 %v1795, %v954
    %v1799 = vsel %vm788, %v1798, -inf
    %1800 = vmax.xlane.f32.xlu0 %v1799
    %v1801 = vpop.xlane.xlu0 %1800
    %v1802 = vsub.f32 %v1798, %v1801
    %v1803 = vmul.f32 %v1802, 1.442695
    %v1804 = vpow.pop %v1803
    %v1805 = vsel %vm788, %v1804, 0.0
    %1806 = vadd.xlane.f32.xlu0 %v1805
    %v1807 = vpop.xlane.xlu0 %1806
    %v1808 = vrcp.pop %v1807
    %v1809 = vmul.f32 %v1804, %v1808
    %s1810 = scalar_lea.vmem %s15, 80
    %1811 = vst.msk [vmem:[%s1810] sm:$0xff] %vm788, %v1809
    %v1813 = vsel %vm788, %v1809, 0
    %1815 = vmatprep.subr.mxu0 0.0
    %1816 = vmatpush1.msra.mxu0 %v620
    %1817 = vmatprep.subr.mxu0 0.0
    %1818 = vmatpush1.msra.mxu0 0.0
    %1819 = vmatprep.subr.mxu0 0.0
    %1820 = vmatpush1.msra.mxu0 0.0
    %1821 = vmatprep.subr.mxu0 0.0
    %1822 = vmatpush1.msra.mxu0 0.0
    %1823 = vmatprep.subr.mxu0 0.0
    %1824 = vmatpush1.msra.mxu0 0.0
    %1825 = vmatprep.subr.mxu0 0.0
    %1826 = vmatpush1.msra.mxu0 0.0
    %1827 = vmatprep.subr.mxu0 0.0
    %1828 = vmatpush1.msra.mxu0 0.0
    %1829 = vmatprep.subr.mxu0 0.0
    %1830 = vmatpush1.msra.mxu0 0.0
    %1831 = vmatprep.subr.mxu0 0.0
    %1832 = vmatpush1.msra.mxu0 0.0
    %1833 = vmatprep.subr.mxu0 0.0
    %1834 = vmatpush1.msra.mxu0 0.0
    %1835 = vmatprep.subr.mxu0 0.0
    %1836 = vmatpush1.msra.mxu0 0.0
    %1837 = vmatprep.subr.mxu0 0.0
    %1838 = vmatpush1.msra.mxu0 0.0
    %1839 = vmatprep.subr.mxu0 0.0
    %1840 = vmatpush1.msra.mxu0 0.0
    %1841 = vmatprep.subr.mxu0 0.0
    %1842 = vmatpush1.msra.mxu0 0.0
    %1843 = vmatprep.subr.mxu0 0.0
    %1844 = vmatpush1.msra.mxu0 0.0
    %1845 = vmatprep.subr.mxu0 0.0
    %1846 = vmatpush1.msra.mxu0 0.0
    %1847 = vmatprep.subr.mxu0 0.0
    %1848 = vmatpush1.msra.mxu0 0.0
    %1849 = vmatprep.subr.mxu0 0.0
    %1850 = vmatpush1.msra.mxu0 0.0
    %1851 = vmatprep.subr.mxu0 0.0
    %1852 = vmatpush1.msra.mxu0 0.0
    %1853 = vmatprep.subr.mxu0 0.0
    %1854 = vmatpush1.msra.mxu0 0.0
    %1855 = vmatprep.subr.mxu0 0.0
    %1856 = vmatpush1.msra.mxu0 0.0
    %1857 = vmatprep.subr.mxu0 0.0
    %1858 = vmatpush1.msra.mxu0 0.0
    %1859 = vmatprep.subr.mxu0 0.0
    %1860 = vmatpush1.msra.mxu0 0.0
    %1861 = vmatprep.subr.mxu0 0.0
    %1862 = vmatpush1.msra.mxu0 0.0
    %1863 = vmatprep.subr.mxu0 0.0
    %1864 = vmatpush1.msra.mxu0 0.0
    %1865 = vmatprep.subr.mxu0 0.0
    %1866 = vmatpush1.msra.mxu0 0.0
    %1867 = vmatprep.subr.mxu0 0.0
    %1868 = vmatpush1.msra.mxu0 0.0
    %1869 = vmatprep.subr.mxu0 0.0
    %1870 = vmatpush1.msra.mxu0 0.0
    %1871 = vmatprep.subr.mxu0 0.0
    %1872 = vmatpush1.msra.mxu0 0.0
    %1873 = vmatprep.subr.mxu0 0.0
    %1874 = vmatpush1.msra.mxu0 0.0
    %1875 = vmatprep.subr.mxu0 0.0
    %1876 = vmatpush1.msra.mxu0 0.0
    %1877 = vmatprep.subr.mxu0 0.0
    %1878 = vmatpush1.msra.mxu0 0.0
    %1879 = vmatprep.mubr.f32.mxu0 0.0
    %1880 = vmatmul.mubr.f32.gmra.mrb[0].mxu0 %v1813
    %v1881 = vpop.f32.mrb[0].mxu0
    %v1882 = vadd.f32 0.0, %v1881
    %v1883 = vpop.f32.mrb[0].mxu0
    %1884 = vdwg.mxu0
    %v1885 = vld [vmem:[%s10 + $0x80] sm:$0xff]
    %v1886 = vld [vmem:[%s10 + $0x88] sm:$0xff]
    %v1887 = vld [vmem:[%s10 + $0x90] sm:$0xff]
    %v1888 = vld [vmem:[%s10 + $0x98] sm:$0xff]
    %v1889 = vld [vmem:[%s10 + $0xa0] sm:$0xff]
    %v1890 = vld [vmem:[%s10 + $0xa8] sm:$0xff]
    %v1891 = vld [vmem:[%s10 + $0xb0] sm:$0xff]
    %v1892 = vld [vmem:[%s10 + $0xb8] sm:$0xff]
    %v1894 = vsel %vm110, %v1719, 0
    %v1897 = vsel %vm110, %v1882, 0
    %1899 = vmatprep.subr.mxu0 0.0
    %1900 = vmatpush1.msra.mxu0 %v1885
    %1901 = vmatprep.subr.mxu0 0.0
    %1902 = vmatpush1.msra.mxu0 %v1886
    %1903 = vmatprep.subr.mxu0 0.0
    %1904 = vmatpush1.msra.mxu0 %v1887
    %1905 = vmatprep.subr.mxu0 0.0
    %1906 = vmatpush1.msra.mxu0 %v1888
    %1907 = vmatprep.subr.mxu0 0.0
    %1908 = vmatpush1.msra.mxu0 %v1889
    %1909 = vmatprep.subr.mxu0 0.0
    %1910 = vmatpush1.msra.mxu0 %v1890
    %1911 = vmatprep.subr.mxu0 0.0
    %1912 = vmatpush1.msra.mxu0 %v1891
    %1913 = vmatprep.subr.mxu0 0.0
    %1914 = vmatpush1.msra.mxu0 %v1892
    %1915 = vmatprep.subr.mxu0 0.0
    %1916 = vmatpush1.msra.mxu0 0.0
    %1917 = vmatprep.subr.mxu0 0.0
    %1918 = vmatpush1.msra.mxu0 0.0
    %1919 = vmatprep.subr.mxu0 0.0
    %1920 = vmatpush1.msra.mxu0 0.0
    %1921 = vmatprep.subr.mxu0 0.0
    %1922 = vmatpush1.msra.mxu0 0.0
    %1923 = vmatprep.subr.mxu0 0.0
    %1924 = vmatpush1.msra.mxu0 0.0
    %1925 = vmatprep.subr.mxu0 0.0
    %1926 = vmatpush1.msra.mxu0 0.0
    %1927 = vmatprep.subr.mxu0 0.0
    %1928 = vmatpush1.msra.mxu0 0.0
    %1929 = vmatprep.subr.mxu0 0.0
    %1930 = vmatpush1.msra.mxu0 0.0
    %1931 = vmatprep.subr.mxu0 0.0
    %1932 = vmatpush1.msra.mxu0 0.0
    %1933 = vmatprep.subr.mxu0 0.0
    %1934 = vmatpush1.msra.mxu0 0.0
    %1935 = vmatprep.subr.mxu0 0.0
    %1936 = vmatpush1.msra.mxu0 0.0
    %1937 = vmatprep.subr.mxu0 0.0
    %1938 = vmatpush1.msra.mxu0 0.0
    %1939 = vmatprep.subr.mxu0 0.0
    %1940 = vmatpush1.msra.mxu0 0.0
    %1941 = vmatprep.subr.mxu0 0.0
    %1942 = vmatpush1.msra.mxu0 0.0
    %1943 = vmatprep.subr.mxu0 0.0
    %1944 = vmatpush1.msra.mxu0 0.0
    %1945 = vmatprep.subr.mxu0 0.0
    %1946 = vmatpush1.msra.mxu0 0.0
    %1947 = vmatprep.subr.mxu0 0.0
    %1948 = vmatpush1.msra.mxu0 0.0
    %1949 = vmatprep.subr.mxu0 0.0
    %1950 = vmatpush1.msra.mxu0 0.0
    %1951 = vmatprep.subr.mxu0 0.0
    %1952 = vmatpush1.msra.mxu0 0.0
    %1953 = vmatprep.subr.mxu0 0.0
    %1954 = vmatpush1.msra.mxu0 0.0
    %1955 = vmatprep.subr.mxu0 0.0
    %1956 = vmatpush1.msra.mxu0 0.0
    %1957 = vmatprep.subr.mxu0 0.0
    %1958 = vmatpush1.msra.mxu0 0.0
    %1959 = vmatprep.subr.mxu0 0.0
    %1960 = vmatpush1.msra.mxu0 0.0
    %1961 = vmatprep.subr.mxu0 0.0
    %1962 = vmatpush1.msra.mxu0 0.0
    %1963 = vmatprep.mubr.f32.mxu0 0.0
    %1964 = vmatmul.mubr.f32.gmra.mrb[0].mxu0 %v1894
    %v1965 = vpop.f32.mrb[0].mxu0
    %v1966 = vadd.f32 0.0, %v1965
    %v1967 = vpop.f32.mrb[0].mxu0
    %1968 = vmatprep.mubr.f32.mxu0 0.0
    %1969 = vmatmul.mubr.f32.gmra.mrb[0].mxu0 %v1897
    %v1970 = vpop.f32.mrb[0].mxu0
    %v1971 = vadd.f32 0.0, %v1970
    %v1972 = vpop.f32.mrb[0].mxu0
    %1973 = vdwg.mxu0
    %v1974 = vadd.f32 %v1551, %v1966
    %v1975 = vadd.f32 %v1556, %v1971
    %1976 = vrot.lane.b32.xlu0 %v186, 64
    %v1977 = vpop.permute.xlu0 %1976
    %1978 = vrot.lane.b32.xlu0 %v400, 64
    %v1979 = vpop.permute.xlu0 %1978
    %v1980 = vsel %vm110, %v1977, 0
    %v1982 = vsel %vm110, %v1979, 0
    %1984 = vmatprep.subr.mxu0 0.0
    %1985 = vmatpush1.xpose.msra.mxu0 %v1982
    %1986 = vmatprep.subr.mxu0 0.0
    %1987 = vmatpush1.xpose.msra.mxu0 0.0
    %1988 = vmatprep.subr.mxu0 0.0
    %1989 = vmatpush1.xpose.msra.mxu0 0.0
    %1990 = vmatprep.subr.mxu0 0.0
    %1991 = vmatpush1.xpose.msra.mxu0 0.0
    %1992 = vmatprep.subr.mxu0 0.0
    %1993 = vmatpush1.xpose.msra.mxu0 0.0
    %1994 = vmatprep.subr.mxu0 0.0
    %1995 = vmatpush1.xpose.msra.mxu0 0.0
    %1996 = vmatprep.subr.mxu0 0.0
    %1997 = vmatpush1.xpose.msra.mxu0 0.0
    %1998 = vmatprep.subr.mxu0 0.0
    %1999 = vmatpush1.xpose.msra.mxu0 0.0
    %2000 = vmatprep.subr.mxu0 0.0
    %2001 = vmatpush1.xpose.msra.mxu0 0.0
    %2002 = vmatprep.subr.mxu0 0.0
    %2003 = vmatpush1.xpose.msra.mxu0 0.0
    %2004 = vmatprep.subr.mxu0 0.0
    %2005 = vmatpush1.xpose.msra.mxu0 0.0
    %2006 = vmatprep.subr.mxu0 0.0
    %2007 = vmatpush1.xpose.msra.mxu0 0.0
    %2008 = vmatprep.subr.mxu0 0.0
    %2009 = vmatpush1.xpose.msra.mxu0 0.0
    %2010 = vmatprep.subr.mxu0 0.0
    %2011 = vmatpush1.xpose.msra.mxu0 0.0
    %2012 = vmatprep.subr.mxu0 0.0
    %2013 = vmatpush1.xpose.msra.mxu0 0.0
    %2014 = vmatprep.subr.mxu0 0.0
    %2015 = vmatpush1.xpose.msra.mxu0 0.0
    %2016 = vmatprep.subr.mxu0 0.0
    %2017 = vmatpush1.xpose.msra.mxu0 0.0
    %2018 = vmatprep.subr.mxu0 0.0
    %2019 = vmatpush1.xpose.msra.mxu0 0.0
    %2020 = vmatprep.subr.mxu0 0.0
    %2021 = vmatpush1.xpose.msra.mxu0 0.0
    %2022 = vmatprep.subr.mxu0 0.0
    %2023 = vmatpush1.xpose.msra.mxu0 0.0
    %2024 = vmatprep.subr.mxu0 0.0
    %2025 = vmatpush1.xpose.msra.mxu0 0.0
    %2026 = vmatprep.subr.mxu0 0.0
    %2027 = vmatpush1.xpose.msra.mxu0 0.0
    %2028 = vmatprep.subr.mxu0 0.0
    %2029 = vmatpush1.xpose.msra.mxu0 0.0
    %2030 = vmatprep.subr.mxu0 0.0
    %2031 = vmatpush1.xpose.msra.mxu0 0.0
    %2032 = vmatprep.subr.mxu0 0.0
    %2033 = vmatpush1.xpose.msra.mxu0 0.0
    %2034 = vmatprep.subr.mxu0 0.0
    %2035 = vmatpush1.xpose.msra.mxu0 0.0
    %2036 = vmatprep.subr.mxu0 0.0
    %2037 = vmatpush1.xpose.msra.mxu0 0.0
    %2038 = vmatprep.subr.mxu0 0.0
    %2039 = vmatpush1.xpose.msra.mxu0 0.0
    %2040 = vmatprep.subr.mxu0 0.0
    %2041 = vmatpush1.xpose.msra.mxu0 0.0
    %2042 = vmatprep.subr.mxu0 0.0
    %2043 = vmatpush1.xpose.msra.mxu0 0.0
    %2044 = vmatprep.subr.mxu0 0.0
    %2045 = vmatpush1.xpose.msra.mxu0 0.0
    %2046 = vmatprep.subr.mxu0 0.0
    %2047 = vmatpush1.xpose.msra.mxu0 0.0
    %2048 = vmatprep.mubr.f32.mxu0 0.0
    %2049 = vmatmul.mubr.f32.gmra.mrb[0].mxu0 %v1980
    %v2050 = vpop.f32.mrb[0].mxu0
    %v2051 = vadd.f32 0.0, %v2050
    %v2052 = vpop.f32.mrb[0].mxu0
    %2053 = vdwg.mxu0
    %v2054 = vsub.f32 %v2051, %v785
    %v2055 = vsel %vm788, %v2054, -inf
    %2056 = vmax.xlane.f32.xlu0 %v2055
    %v2057 = vpop.xlane.xlu0 %2056
    %v2058 = vsub.f32 %v2054, %v2057
    %v2059 = vmul.f32 %v2058, 1.442695
    %v2060 = vpow.pop %v2059
    %v2061 = vsel %vm788, %v2060, 0.0
    %2062 = vadd.xlane.f32.xlu0 %v2061
    %v2063 = vpop.xlane.xlu0 %2062
    %v2064 = vrcp.pop %v2063
    %v2065 = vmul.f32 %v2060, %v2064
    %s2066 = scalar_lea.vmem %s15, 24
    %2067 = vst.msk [vmem:[%s2066] sm:$0xff] %vm788, %v2065
    %2069 = vrot.lane.b32.xlu0 %v614, 64
    %v2070 = vpop.permute.xlu0 %2069
    %v2073 = vsel %vm788, %v2065, 0
    %2075 = vmatprep.subr.mxu0 0.0
    %2076 = vmatpush1.msra.mxu0 %v2070
    %2077 = vmatprep.subr.mxu0 0.0
    %2078 = vmatpush1.msra.mxu0 0.0
    %2079 = vmatprep.subr.mxu0 0.0
    %2080 = vmatpush1.msra.mxu0 0.0
    %2081 = vmatprep.subr.mxu0 0.0
    %2082 = vmatpush1.msra.mxu0 0.0
    %2083 = vmatprep.subr.mxu0 0.0
    %2084 = vmatpush1.msra.mxu0 0.0
    %2085 = vmatprep.subr.mxu0 0.0
    %2086 = vmatpush1.msra.mxu0 0.0
    %2087 = vmatprep.subr.mxu0 0.0
    %2088 = vmatpush1.msra.mxu0 0.0
    %2089 = vmatprep.subr.mxu0 0.0
    %2090 = vmatpush1.msra.mxu0 0.0
    %2091 = vmatprep.subr.mxu0 0.0
    %2092 = vmatpush1.msra.mxu0 0.0
    %2093 = vmatprep.subr.mxu0 0.0
    %2094 = vmatpush1.msra.mxu0 0.0
    %2095 = vmatprep.subr.mxu0 0.0
    %2096 = vmatpush1.msra.mxu0 0.0
    %2097 = vmatprep.subr.mxu0 0.0
    %2098 = vmatpush1.msra.mxu0 0.0
    %2099 = vmatprep.subr.mxu0 0.0
    %2100 = vmatpush1.msra.mxu0 0.0
    %2101 = vmatprep.subr.mxu0 0.0
    %2102 = vmatpush1.msra.mxu0 0.0
    %2103 = vmatprep.subr.mxu0 0.0
    %2104 = vmatpush1.msra.mxu0 0.0
    %2105 = vmatprep.subr.mxu0 0.0
    %2106 = vmatpush1.msra.mxu0 0.0
    %2107 = vmatprep.subr.mxu0 0.0
    %2108 = vmatpush1.msra.mxu0 0.0
    %2109 = vmatprep.subr.mxu0 0.0
    %2110 = vmatpush1.msra.mxu0 0.0
    %2111 = vmatprep.subr.mxu0 0.0
    %2112 = vmatpush1.msra.mxu0 0.0
    %2113 = vmatprep.subr.mxu0 0.0
    %2114 = vmatpush1.msra.mxu0 0.0
    %2115 = vmatprep.subr.mxu0 0.0
    %2116 = vmatpush1.msra.mxu0 0.0
    %2117 = vmatprep.subr.mxu0 0.0
    %2118 = vmatpush1.msra.mxu0 0.0
    %2119 = vmatprep.subr.mxu0 0.0
    %2120 = vmatpush1.msra.mxu0 0.0
    %2121 = vmatprep.subr.mxu0 0.0
    %2122 = vmatpush1.msra.mxu0 0.0
    %2123 = vmatprep.subr.mxu0 0.0
    %2124 = vmatpush1.msra.mxu0 0.0
    %2125 = vmatprep.subr.mxu0 0.0
    %2126 = vmatpush1.msra.mxu0 0.0
    %2127 = vmatprep.subr.mxu0 0.0
    %2128 = vmatpush1.msra.mxu0 0.0
    %2129 = vmatprep.subr.mxu0 0.0
    %2130 = vmatpush1.msra.mxu0 0.0
    %2131 = vmatprep.subr.mxu0 0.0
    %2132 = vmatpush1.msra.mxu0 0.0
    %2133 = vmatprep.subr.mxu0 0.0
    %2134 = vmatpush1.msra.mxu0 0.0
    %2135 = vmatprep.subr.mxu0 0.0
    %2136 = vmatpush1.msra.mxu0 0.0
    %2137 = vmatprep.subr.mxu0 0.0
    %2138 = vmatpush1.msra.mxu0 0.0
    %2139 = vmatprep.mubr.f32.mxu0 0.0
    %2140 = vmatmul.mubr.f32.gmra.mrb[0].mxu0 %v2073
    %v2141 = vpop.f32.mrb[0].mxu0
    %v2142 = vadd.f32 0.0, %v2141
    %v2143 = vpop.f32.mrb[0].mxu0
    %2144 = vdwg.mxu0
    %2145 = vrot.lane.b32.xlu0 %v192, 64
    %v2146 = vpop.permute.xlu0 %2145
    %2147 = vrot.lane.b32.xlu0 %v406, 64
    %v2148 = vpop.permute.xlu0 %2147
    %v2149 = vsel %vm110, %v2146, 0
    %v2151 = vsel %vm110, %v2148, 0
    %2153 = vmatprep.subr.mxu0 0.0
    %2154 = vmatpush1.xpose.msra.mxu0 %v2151
    %2155 = vmatprep.subr.mxu0 0.0
    %2156 = vmatpush1.xpose.msra.mxu0 0.0
    %2157 = vmatprep.subr.mxu0 0.0
    %2158 = vmatpush1.xpose.msra.mxu0 0.0
    %2159 = vmatprep.subr.mxu0 0.0
    %2160 = vmatpush1.xpose.msra.mxu0 0.0
    %2161 = vmatprep.subr.mxu0 0.0
    %2162 = vmatpush1.xpose.msra.mxu0 0.0
    %2163 = vmatprep.subr.mxu0 0.0
    %2164 = vmatpush1.xpose.msra.mxu0 0.0
    %2165 = vmatprep.subr.mxu0 0.0
    %2166 = vmatpush1.xpose.msra.mxu0 0.0
    %2167 = vmatprep.subr.mxu0 0.0
    %2168 = vmatpush1.xpose.msra.mxu0 0.0
    %2169 = vmatprep.subr.mxu0 0.0
    %2170 = vmatpush1.xpose.msra.mxu0 0.0
    %2171 = vmatprep.subr.mxu0 0.0
    %2172 = vmatpush1.xpose.msra.mxu0 0.0
    %2173 = vmatprep.subr.mxu0 0.0
    %2174 = vmatpush1.xpose.msra.mxu0 0.0
    %2175 = vmatprep.subr.mxu0 0.0
    %2176 = vmatpush1.xpose.msra.mxu0 0.0
    %2177 = vmatprep.subr.mxu0 0.0
    %2178 = vmatpush1.xpose.msra.mxu0 0.0
    %2179 = vmatprep.subr.mxu0 0.0
    %2180 = vmatpush1.xpose.msra.mxu0 0.0
    %2181 = vmatprep.subr.mxu0 0.0
    %2182 = vmatpush1.xpose.msra.mxu0 0.0
    %2183 = vmatprep.subr.mxu0 0.0
    %2184 = vmatpush1.xpose.msra.mxu0 0.0
    %2185 = vmatprep.subr.mxu0 0.0
    %2186 = vmatpush1.xpose.msra.mxu0 0.0
    %2187 = vmatprep.subr.mxu0 0.0
    %2188 = vmatpush1.xpose.msra.mxu0 0.0
    %2189 = vmatprep.subr.mxu0 0.0
    %2190 = vmatpush1.xpose.msra.mxu0 0.0
    %2191 = vmatprep.subr.mxu0 0.0
    %2192 = vmatpush1.xpose.msra.mxu0 0.0
    %2193 = vmatprep.subr.mxu0 0.0
    %2194 = vmatpush1.xpose.msra.mxu0 0.0
    %2195 = vmatprep.subr.mxu0 0.0
    %2196 = vmatpush1.xpose.msra.mxu0 0.0
    %2197 = vmatprep.subr.mxu0 0.0
    %2198 = vmatpush1.xpose.msra.mxu0 0.0
    %2199 = vmatprep.subr.mxu0 0.0
    %2200 = vmatpush1.xpose.msra.mxu0 0.0
    %2201 = vmatprep.subr.mxu0 0.0
    %2202 = vmatpush1.xpose.msra.mxu0 0.0
    %2203 = vmatprep.subr.mxu0 0.0
    %2204 = vmatpush1.xpose.msra.mxu0 0.0
    %2205 = vmatprep.subr.mxu0 0.0
    %2206 = vmatpush1.xpose.msra.mxu0 0.0
    %2207 = vmatprep.subr.mxu0 0.0
    %2208 = vmatpush1.xpose.msra.mxu0 0.0
    %2209 = vmatprep.subr.mxu0 0.0
    %2210 = vmatpush1.xpose.msra.mxu0 0.0
    %2211 = vmatprep.subr.mxu0 0.0
    %2212 = vmatpush1.xpose.msra.mxu0 0.0
    %2213 = vmatprep.subr.mxu0 0.0
    %2214 = vmatpush1.xpose.msra.mxu0 0.0
    %2215 = vmatprep.subr.mxu0 0.0
    %2216 = vmatpush1.xpose.msra.mxu0 0.0
    %2217 = vmatprep.mubr.f32.mxu0 0.0
    %2218 = vmatmul.mubr.f32.gmra.mrb[0].mxu0 %v2149
    %v2219 = vpop.f32.mrb[0].mxu0
    %v2220 = vadd.f32 0.0, %v2219
    %v2221 = vpop.f32.mrb[0].mxu0
    %2222 = vdwg.mxu0
    %v2223 = vsub.f32 %v2220, %v954
    %v2224 = vsel %vm788, %v2223, -inf
    %2225 = vmax.xlane.f32.xlu0 %v2224
    %v2226 = vpop.xlane.xlu0 %2225
    %v2227 = vsub.f32 %v2223, %v2226
    %v2228 = vmul.f32 %v2227, 1.442695
    %v2229 = vpow.pop %v2228
    %v2230 = vsel %vm788, %v2229, 0.0
    %2231 = vadd.xlane.f32.xlu0 %v2230
    %v2232 = vpop.xlane.xlu0 %2231
    %v2233 = vrcp.pop %v2232
    %v2234 = vmul.f32 %v2229, %v2233
    %s2235 = scalar_lea.vmem %s15, 88
    %2236 = vst.msk [vmem:[%s2235] sm:$0xff] %vm788, %v2234
    %2238 = vrot.lane.b32.xlu0 %v620, 64
    %v2239 = vpop.permute.xlu0 %2238
    %v2242 = vsel %vm788, %v2234, 0
    %2244 = vmatprep.subr.mxu0 0.0
    %2245 = vmatpush1.msra.mxu0 %v2239
    %2246 = vmatprep.subr.mxu0 0.0
    %2247 = vmatpush1.msra.mxu0 0.0
    %2248 = vmatprep.subr.mxu0 0.0
    %2249 = vmatpush1.msra.mxu0 0.0
    %2250 = vmatprep.subr.mxu0 0.0
    %2251 = vmatpush1.msra.mxu0 0.0
    %2252 = vmatprep.subr.mxu0 0.0
    %2253 = vmatpush1.msra.mxu0 0.0
    %2254 = vmatprep.subr.mxu0 0.0
    %2255 = vmatpush1.msra.mxu0 0.0
    %2256 = vmatprep.subr.mxu0 0.0
    %2257 = vmatpush1.msra.mxu0 0.0
    %2258 = vmatprep.subr.mxu0 0.0
    %2259 = vmatpush1.msra.mxu0 0.0
    %2260 = vmatprep.subr.mxu0 0.0
    %2261 = vmatpush1.msra.mxu0 0.0
    %2262 = vmatprep.subr.mxu0 0.0
    %2263 = vmatpush1.msra.mxu0 0.0
    %2264 = vmatprep.subr.mxu0 0.0
    %2265 = vmatpush1.msra.mxu0 0.0
    %2266 = vmatprep.subr.mxu0 0.0
    %2267 = vmatpush1.msra.mxu0 0.0
    %2268 = vmatprep.subr.mxu0 0.0
    %2269 = vmatpush1.msra.mxu0 0.0
    %2270 = vmatprep.subr.mxu0 0.0
    %2271 = vmatpush1.msra.mxu0 0.0
    %2272 = vmatprep.subr.mxu0 0.0
    %2273 = vmatpush1.msra.mxu0 0.0
    %2274 = vmatprep.subr.mxu0 0.0
    %2275 = vmatpush1.msra.mxu0 0.0
    %2276 = vmatprep.subr.mxu0 0.0
    %2277 = vmatpush1.msra.mxu0 0.0
    %2278 = vmatprep.subr.mxu0 0.0
    %2279 = vmatpush1.msra.mxu0 0.0
    %2280 = vmatprep.subr.mxu0 0.0
    %2281 = vmatpush1.msra.mxu0 0.0
    %2282 = vmatprep.subr.mxu0 0.0
    %2283 = vmatpush1.msra.mxu0 0.0
    %2284 = vmatprep.subr.mxu0 0.0
    %2285 = vmatpush1.msra.mxu0 0.0
    %2286 = vmatprep.subr.mxu0 0.0
    %2287 = vmatpush1.msra.mxu0 0.0
    %2288 = vmatprep.subr.mxu0 0.0
    %2289 = vmatpush1.msra.mxu0 0.0
    %2290 = vmatprep.subr.mxu0 0.0
    %2291 = vmatpush1.msra.mxu0 0.0
    %2292 = vmatprep.subr.mxu0 0.0
    %2293 = vmatpush1.msra.mxu0 0.0
    %2294 = vmatprep.subr.mxu0 0.0
    %2295 = vmatpush1.msra.mxu0 0.0
    %2296 = vmatprep.subr.mxu0 0.0
    %2297 = vmatpush1.msra.mxu0 0.0
    %2298 = vmatprep.subr.mxu0 0.0
    %2299 = vmatpush1.msra.mxu0 0.0
    %2300 = vmatprep.subr.mxu0 0.0
    %2301 = vmatpush1.msra.mxu0 0.0
    %2302 = vmatprep.subr.mxu0 0.0
    %2303 = vmatpush1.msra.mxu0 0.0
    %2304 = vmatprep.subr.mxu0 0.0
    %2305 = vmatpush1.msra.mxu0 0.0
    %2306 = vmatprep.subr.mxu0 0.0
    %2307 = vmatpush1.msra.mxu0 0.0
    %2308 = vmatprep.mubr.f32.mxu0 0.0
    %2309 = vmatmul.mubr.f32.gmra.mrb[0].mxu0 %v2242
    %v2310 = vpop.f32.mrb[0].mxu0
    %v2311 = vadd.f32 0.0, %v2310
    %v2312 = vpop.f32.mrb[0].mxu0
    %2313 = vdwg.mxu0
    %v2314 = vld [vmem:[%s10 + $0xc0] sm:$0xff]
    %v2315 = vld [vmem:[%s10 + $0xc8] sm:$0xff]
    %v2316 = vld [vmem:[%s10 + $0xd0] sm:$0xff]
    %v2317 = vld [vmem:[%s10 + $0xd8] sm:$0xff]
    %v2318 = vld [vmem:[%s10 + $0xe0] sm:$0xff]
    %v2319 = vld [vmem:[%s10 + $0xe8] sm:$0xff]
    %v2320 = vld [vmem:[%s10 + $0xf0] sm:$0xff]
    %v2321 = vld [vmem:[%s10 + $0xf8] sm:$0xff]
    %v2323 = vsel %vm110, %v2142, 0
    %v2326 = vsel %vm110, %v2311, 0
    %2328 = vmatprep.subr.mxu0 0.0
    %2329 = vmatpush1.msra.mxu0 %v2314
    %2330 = vmatprep.subr.mxu0 0.0
    %2331 = vmatpush1.msra.mxu0 %v2315
    %2332 = vmatprep.subr.mxu0 0.0
    %2333 = vmatpush1.msra.mxu0 %v2316
    %2334 = vmatprep.subr.mxu0 0.0
    %2335 = vmatpush1.msra.mxu0 %v2317
    %2336 = vmatprep.subr.mxu0 0.0
    %2337 = vmatpush1.msra.mxu0 %v2318
    %2338 = vmatprep.subr.mxu0 0.0
    %2339 = vmatpush1.msra.mxu0 %v2319
    %2340 = vmatprep.subr.mxu0 0.0
    %2341 = vmatpush1.msra.mxu0 %v2320
    %2342 = vmatprep.subr.mxu0 0.0
    %2343 = vmatpush1.msra.mxu0 %v2321
    %2344 = vmatprep.subr.mxu0 0.0
    %2345 = vmatpush1.msra.mxu0 0.0
    %2346 = vmatprep.subr.mxu0 0.0
    %2347 = vmatpush1.msra.mxu0 0.0
    %2348 = vmatprep.subr.mxu0 0.0
    %2349 = vmatpush1.msra.mxu0 0.0
    %2350 = vmatprep.subr.mxu0 0.0
    %2351 = vmatpush1.msra.mxu0 0.0
    %2352 = vmatprep.subr.mxu0 0.0
    %2353 = vmatpush1.msra.mxu0 0.0
    %2354 = vmatprep.subr.mxu0 0.0
    %2355 = vmatpush1.msra.mxu0 0.0
    %2356 = vmatprep.subr.mxu0 0.0
    %2357 = vmatpush1.msra.mxu0 0.0
    %2358 = vmatprep.subr.mxu0 0.0
    %2359 = vmatpush1.msra.mxu0 0.0
    %2360 = vmatprep.subr.mxu0 0.0
    %2361 = vmatpush1.msra.mxu0 0.0
    %2362 = vmatprep.subr.mxu0 0.0
    %2363 = vmatpush1.msra.mxu0 0.0
    %2364 = vmatprep.subr.mxu0 0.0
    %2365 = vmatpush1.msra.mxu0 0.0
    %2366 = vmatprep.subr.mxu0 0.0
    %2367 = vmatpush1.msra.mxu0 0.0
    %2368 = vmatprep.subr.mxu0 0.0
    %2369 = vmatpush1.msra.mxu0 0.0
    %2370 = vmatprep.subr.mxu0 0.0
    %2371 = vmatpush1.msra.mxu0 0.0
    %2372 = vmatprep.subr.mxu0 0.0
    %2373 = vmatpush1.msra.mxu0 0.0
    %2374 = vmatprep.subr.mxu0 0.0
    %2375 = vmatpush1.msra.mxu0 0.0
    %2376 = vmatprep.subr.mxu0 0.0
    %2377 = vmatpush1.msra.mxu0 0.0
    %2378 = vmatprep.subr.mxu0 0.0
    %2379 = vmatpush1.msra.mxu0 0.0
    %2380 = vmatprep.subr.mxu0 0.0
    %2381 = vmatpush1.msra.mxu0 0.0
    %2382 = vmatprep.subr.mxu0 0.0
    %2383 = vmatpush1.msra.mxu0 0.0
    %2384 = vmatprep.subr.mxu0 0.0
    %2385 = vmatpush1.msra.mxu0 0.0
    %2386 = vmatprep.subr.mxu0 0.0
    %2387 = vmatpush1.msra.mxu0 0.0
    %2388 = vmatprep.subr.mxu0 0.0
    %2389 = vmatpush1.msra.mxu0 0.0
    %2390 = vmatprep.subr.mxu0 0.0
    %2391 = vmatpush1.msra.mxu0 0.0
    %2392 = vmatprep.mubr.f32.mxu0 0.0
    %2393 = vmatmul.mubr.f32.gmra.mrb[0].mxu0 %v2323
    %v2394 = vpop.f32.mrb[0].mxu0
    %v2395 = vadd.f32 0.0, %v2394
    %v2396 = vpop.f32.mrb[0].mxu0
    %2397 = vmatprep.mubr.f32.mxu0 0.0
    %2398 = vmatmul.mubr.f32.gmra.mrb[0].mxu0 %v2326
    %v2399 = vpop.f32.mrb[0].mxu0
    %v2400 = vadd.f32 0.0, %v2399
    %v2401 = vpop.f32.mrb[0].mxu0
    %2402 = vdwg.mxu0
    %v2403 = vadd.f32 %v1974, %v2395
    %v2404 = vadd.f32 %v1975, %v2400
    %v2406 = vsel %vm110, %v261, 0
    %v2409 = vsel %vm110, %v475, 0
    %2411 = vmatprep.subr.mxu0 0.0
    %2412 = vmatpush1.xpose.msra.mxu0 %v2409
    %2413 = vmatprep.subr.mxu0 0.0
    %2414 = vmatpush1.xpose.msra.mxu0 0.0
    %2415 = vmatprep.subr.mxu0 0.0
    %2416 = vmatpush1.xpose.msra.mxu0 0.0
    %2417 = vmatprep.subr.mxu0 0.0
    %2418 = vmatpush1.xpose.msra.mxu0 0.0
    %2419 = vmatprep.subr.mxu0 0.0
    %2420 = vmatpush1.xpose.msra.mxu0 0.0
    %2421 = vmatprep.subr.mxu0 0.0
    %2422 = vmatpush1.xpose.msra.mxu0 0.0
    %2423 = vmatprep.subr.mxu0 0.0
    %2424 = vmatpush1.xpose.msra.mxu0 0.0
    %2425 = vmatprep.subr.mxu0 0.0
    %2426 = vmatpush1.xpose.msra.mxu0 0.0
    %2427 = vmatprep.subr.mxu0 0.0
    %2428 = vmatpush1.xpose.msra.mxu0 0.0
    %2429 = vmatprep.subr.mxu0 0.0
    %2430 = vmatpush1.xpose.msra.mxu0 0.0
    %2431 = vmatprep.subr.mxu0 0.0
    %2432 = vmatpush1.xpose.msra.mxu0 0.0
    %2433 = vmatprep.subr.mxu0 0.0
    %2434 = vmatpush1.xpose.msra.mxu0 0.0
    %2435 = vmatprep.subr.mxu0 0.0
    %2436 = vmatpush1.xpose.msra.mxu0 0.0
    %2437 = vmatprep.subr.mxu0 0.0
    %2438 = vmatpush1.xpose.msra.mxu0 0.0
    %2439 = vmatprep.subr.mxu0 0.0
    %2440 = vmatpush1.xpose.msra.mxu0 0.0
    %2441 = vmatprep.subr.mxu0 0.0
    %2442 = vmatpush1.xpose.msra.mxu0 0.0
    %2443 = vmatprep.subr.mxu0 0.0
    %2444 = vmatpush1.xpose.msra.mxu0 0.0
    %2445 = vmatprep.subr.mxu0 0.0
    %2446 = vmatpush1.xpose.msra.mxu0 0.0
    %2447 = vmatprep.subr.mxu0 0.0
    %2448 = vmatpush1.xpose.msra.mxu0 0.0
    %2449 = vmatprep.subr.mxu0 0.0
    %2450 = vmatpush1.xpose.msra.mxu0 0.0
    %2451 = vmatprep.subr.mxu0 0.0
    %2452 = vmatpush1.xpose.msra.mxu0 0.0
    %2453 = vmatprep.subr.mxu0 0.0
    %2454 = vmatpush1.xpose.msra.mxu0 0.0
    %2455 = vmatprep.subr.mxu0 0.0
    %2456 = vmatpush1.xpose.msra.mxu0 0.0
    %2457 = vmatprep.subr.mxu0 0.0
    %2458 = vmatpush1.xpose.msra.mxu0 0.0
    %2459 = vmatprep.subr.mxu0 0.0
    %2460 = vmatpush1.xpose.msra.mxu0 0.0
    %2461 = vmatprep.subr.mxu0 0.0
    %2462 = vmatpush1.xpose.msra.mxu0 0.0
    %2463 = vmatprep.subr.mxu0 0.0
    %2464 = vmatpush1.xpose.msra.mxu0 0.0
    %2465 = vmatprep.subr.mxu0 0.0
    %2466 = vmatpush1.xpose.msra.mxu0 0.0
    %2467 = vmatprep.subr.mxu0 0.0
    %2468 = vmatpush1.xpose.msra.mxu0 0.0
    %2469 = vmatprep.subr.mxu0 0.0
    %2470 = vmatpush1.xpose.msra.mxu0 0.0
    %2471 = vmatprep.subr.mxu0 0.0
    %2472 = vmatpush1.xpose.msra.mxu0 0.0
    %2473 = vmatprep.subr.mxu0 0.0
    %2474 = vmatpush1.xpose.msra.mxu0 0.0
    %2475 = vmatprep.mubr.f32.mxu0 0.0
    %2476 = vmatmul.mubr.f32.gmra.mrb[0].mxu0 %v2406
    %v2477 = vpop.f32.mrb[0].mxu0
    %v2478 = vadd.f32 0.0, %v2477
    %v2479 = vpop.f32.mrb[0].mxu0
    %2480 = vdwg.mxu0
    %v2481 = vsub.f32 %v2478, %v785
    %v2482 = vsel %vm788, %v2481, -inf
    %2483 = vmax.xlane.f32.xlu0 %v2482
    %v2484 = vpop.xlane.xlu0 %2483
    %v2485 = vsub.f32 %v2481, %v2484
    %v2486 = vmul.f32 %v2485, 1.442695
    %v2487 = vpow.pop %v2486
    %v2488 = vsel %vm788, %v2487, 0.0
    %2489 = vadd.xlane.f32.xlu0 %v2488
    %v2490 = vpop.xlane.xlu0 %2489
    %v2491 = vrcp.pop %v2490
    %v2492 = vmul.f32 %v2487, %v2491
    %s2493 = scalar_lea.vmem %s15, 32
    %2494 = vst.msk [vmem:[%s2493] sm:$0xff] %vm788, %v2492
    %v2496 = vsel %vm788, %v2492, 0
    %2498 = vmatprep.subr.mxu0 0.0
    %2499 = vmatpush1.msra.mxu0 %v689
    %2500 = vmatprep.subr.mxu0 0.0
    %2501 = vmatpush1.msra.mxu0 0.0
    %2502 = vmatprep.subr.mxu0 0.0
    %2503 = vmatpush1.msra.mxu0 0.0
    %2504 = vmatprep.subr.mxu0 0.0
    %2505 = vmatpush1.msra.mxu0 0.0
    %2506 = vmatprep.subr.mxu0 0.0
    %2507 = vmatpush1.msra.mxu0 0.0
    %2508 = vmatprep.subr.mxu0 0.0
    %2509 = vmatpush1.msra.mxu0 0.0
    %2510 = vmatprep.subr.mxu0 0.0
    %2511 = vmatpush1.msra.mxu0 0.0
    %2512 = vmatprep.subr.mxu0 0.0
    %2513 = vmatpush1.msra.mxu0 0.0
    %2514 = vmatprep.subr.mxu0 0.0
    %2515 = vmatpush1.msra.mxu0 0.0
    %2516 = vmatprep.subr.mxu0 0.0
    %2517 = vmatpush1.msra.mxu0 0.0
    %2518 = vmatprep.subr.mxu0 0.0
    %2519 = vmatpush1.msra.mxu0 0.0
    %2520 = vmatprep.subr.mxu0 0.0
    %2521 = vmatpush1.msra.mxu0 0.0
    %2522 = vmatprep.subr.mxu0 0.0
    %2523 = vmatpush1.msra.mxu0 0.0
    %2524 = vmatprep.subr.mxu0 0.0
    %2525 = vmatpush1.msra.mxu0 0.0
    %2526 = vmatprep.subr.mxu0 0.0
    %2527 = vmatpush1.msra.mxu0 0.0
    %2528 = vmatprep.subr.mxu0 0.0
    %2529 = vmatpush1.msra.mxu0 0.0
    %2530 = vmatprep.subr.mxu0 0.0
    %2531 = vmatpush1.msra.mxu0 0.0
    %2532 = vmatprep.subr.mxu0 0.0
    %2533 = vmatpush1.msra.mxu0 0.0
    %2534 = vmatprep.subr.mxu0 0.0
    %2535 = vmatpush1.msra.mxu0 0.0
    %2536 = vmatprep.subr.mxu0 0.0
    %2537 = vmatpush1.msra.mxu0 0.0
    %2538 = vmatprep.subr.mxu0 0.0
    %2539 = vmatpush1.msra.mxu0 0.0
    %2540 = vmatprep.subr.mxu0 0.0
    %2541 = vmatpush1.msra.mxu0 0.0
    %2542 = vmatprep.subr.mxu0 0.0
    %2543 = vmatpush1.msra.mxu0 0.0
    %2544 = vmatprep.subr.mxu0 0.0
    %2545 = vmatpush1.msra.mxu0 0.0
    %2546 = vmatprep.subr.mxu0 0.0
    %2547 = vmatpush1.msra.mxu0 0.0
    %2548 = vmatprep.subr.mxu0 0.0
    %2549 = vmatpush1.msra.mxu0 0.0
    %2550 = vmatprep.subr.mxu0 0.0
    %2551 = vmatpush1.msra.mxu0 0.0
    %2552 = vmatprep.subr.mxu0 0.0
    %2553 = vmatpush1.msra.mxu0 0.0
    %2554 = vmatprep.subr.mxu0 0.0
    %2555 = vmatpush1.msra.mxu0 0.0
    %2556 = vmatprep.subr.mxu0 0.0
    %2557 = vmatpush1.msra.mxu0 0.0
    %2558 = vmatprep.subr.mxu0 0.0
    %2559 = vmatpush1.msra.mxu0 0.0
    %2560 = vmatprep.subr.mxu0 0.0
    %2561 = vmatpush1.msra.mxu0 0.0
    %2562 = vmatprep.mubr.f32.mxu0 0.0
    %2563 = vmatmul.mubr.f32.gmra.mrb[0].mxu0 %v2496
    %v2564 = vpop.f32.mrb[0].mxu0
    %v2565 = vadd.f32 0.0, %v2564
    %v2566 = vpop.f32.mrb[0].mxu0
    %2567 = vdwg.mxu0
    %v2569 = vsel %vm110, %v267, 0
    %v2572 = vsel %vm110, %v481, 0
    %2574 = vmatprep.subr.mxu0 0.0
    %2575 = vmatpush1.xpose.msra.mxu0 %v2572
    %2576 = vmatprep.subr.mxu0 0.0
    %2577 = vmatpush1.xpose.msra.mxu0 0.0
    %2578 = vmatprep.subr.mxu0 0.0
    %2579 = vmatpush1.xpose.msra.mxu0 0.0
    %2580 = vmatprep.subr.mxu0 0.0
    %2581 = vmatpush1.xpose.msra.mxu0 0.0
    %2582 = vmatprep.subr.mxu0 0.0
    %2583 = vmatpush1.xpose.msra.mxu0 0.0
    %2584 = vmatprep.subr.mxu0 0.0
    %2585 = vmatpush1.xpose.msra.mxu0 0.0
    %2586 = vmatprep.subr.mxu0 0.0
    %2587 = vmatpush1.xpose.msra.mxu0 0.0
    %2588 = vmatprep.subr.mxu0 0.0
    %2589 = vmatpush1.xpose.msra.mxu0 0.0
    %2590 = vmatprep.subr.mxu0 0.0
    %2591 = vmatpush1.xpose.msra.mxu0 0.0
    %2592 = vmatprep.subr.mxu0 0.0
    %2593 = vmatpush1.xpose.msra.mxu0 0.0
    %2594 = vmatprep.subr.mxu0 0.0
    %2595 = vmatpush1.xpose.msra.mxu0 0.0
    %2596 = vmatprep.subr.mxu0 0.0
    %2597 = vmatpush1.xpose.msra.mxu0 0.0
    %2598 = vmatprep.subr.mxu0 0.0
    %2599 = vmatpush1.xpose.msra.mxu0 0.0
    %2600 = vmatprep.subr.mxu0 0.0
    %2601 = vmatpush1.xpose.msra.mxu0 0.0
    %2602 = vmatprep.subr.mxu0 0.0
    %2603 = vmatpush1.xpose.msra.mxu0 0.0
    %2604 = vmatprep.subr.mxu0 0.0
    %2605 = vmatpush1.xpose.msra.mxu0 0.0
    %2606 = vmatprep.subr.mxu0 0.0
    %2607 = vmatpush1.xpose.msra.mxu0 0.0
    %2608 = vmatprep.subr.mxu0 0.0
    %2609 = vmatpush1.xpose.msra.mxu0 0.0
    %2610 = vmatprep.subr.mxu0 0.0
    %2611 = vmatpush1.xpose.msra.mxu0 0.0
    %2612 = vmatprep.subr.mxu0 0.0
    %2613 = vmatpush1.xpose.msra.mxu0 0.0
    %2614 = vmatprep.subr.mxu0 0.0
    %2615 = vmatpush1.xpose.msra.mxu0 0.0
    %2616 = vmatprep.subr.mxu0 0.0
    %2617 = vmatpush1.xpose.msra.mxu0 0.0
    %2618 = vmatprep.subr.mxu0 0.0
    %2619 = vmatpush1.xpose.msra.mxu0 0.0
    %2620 = vmatprep.subr.mxu0 0.0
    %2621 = vmatpush1.xpose.msra.mxu0 0.0
    %2622 = vmatprep.subr.mxu0 0.0
    %2623 = vmatpush1.xpose.msra.mxu0 0.0
    %2624 = vmatprep.subr.mxu0 0.0
    %2625 = vmatpush1.xpose.msra.mxu0 0.0
    %2626 = vmatprep.subr.mxu0 0.0
    %2627 = vmatpush1.xpose.msra.mxu0 0.0
    %2628 = vmatprep.subr.mxu0 0.0
    %2629 = vmatpush1.xpose.msra.mxu0 0.0
    %2630 = vmatprep.subr.mxu0 0.0
    %2631 = vmatpush1.xpose.msra.mxu0 0.0
    %2632 = vmatprep.subr.mxu0 0.0
    %2633 = vmatpush1.xpose.msra.mxu0 0.0
    %2634 = vmatprep.subr.mxu0 0.0
    %2635 = vmatpush1.xpose.msra.mxu0 0.0
    %2636 = vmatprep.subr.mxu0 0.0
    %2637 = vmatpush1.xpose.msra.mxu0 0.0
    %2638 = vmatprep.mubr.f32.mxu0 0.0
    %2639 = vmatmul.mubr.f32.gmra.mrb[0].mxu0 %v2569
    %v2640 = vpop.f32.mrb[0].mxu0
    %v2641 = vadd.f32 0.0, %v2640
    %v2642 = vpop.f32.mrb[0].mxu0
    %2643 = vdwg.mxu0
    %v2644 = vsub.f32 %v2641, %v954
    %v2645 = vsel %vm788, %v2644, -inf
    %2646 = vmax.xlane.f32.xlu0 %v2645
    %v2647 = vpop.xlane.xlu0 %2646
    %v2648 = vsub.f32 %v2644, %v2647
    %v2649 = vmul.f32 %v2648, 1.442695
    %v2650 = vpow.pop %v2649
    %v2651 = vsel %vm788, %v2650, 0.0
    %2652 = vadd.xlane.f32.xlu0 %v2651
    %v2653 = vpop.xlane.xlu0 %2652
    %v2654 = vrcp.pop %v2653
    %v2655 = vmul.f32 %v2650, %v2654
    %s2656 = scalar_lea.vmem %s15, 96
    %2657 = vst.msk [vmem:[%s2656] sm:$0xff] %vm788, %v2655
    %v2659 = vsel %vm788, %v2655, 0
    %2661 = vmatprep.subr.mxu0 0.0
    %2662 = vmatpush1.msra.mxu0 %v695
    %2663 = vmatprep.subr.mxu0 0.0
    %2664 = vmatpush1.msra.mxu0 0.0
    %2665 = vmatprep.subr.mxu0 0.0
    %2666 = vmatpush1.msra.mxu0 0.0
    %2667 = vmatprep.subr.mxu0 0.0
    %2668 = vmatpush1.msra.mxu0 0.0
    %2669 = vmatprep.subr.mxu0 0.0
    %2670 = vmatpush1.msra.mxu0 0.0
    %2671 = vmatprep.subr.mxu0 0.0
    %2672 = vmatpush1.msra.mxu0 0.0
    %2673 = vmatprep.subr.mxu0 0.0
    %2674 = vmatpush1.msra.mxu0 0.0
    %2675 = vmatprep.subr.mxu0 0.0
    %2676 = vmatpush1.msra.mxu0 0.0
    %2677 = vmatprep.subr.mxu0 0.0
    %2678 = vmatpush1.msra.mxu0 0.0
    %2679 = vmatprep.subr.mxu0 0.0
    %2680 = vmatpush1.msra.mxu0 0.0
    %2681 = vmatprep.subr.mxu0 0.0
    %2682 = vmatpush1.msra.mxu0 0.0
    %2683 = vmatprep.subr.mxu0 0.0
    %2684 = vmatpush1.msra.mxu0 0.0
    %2685 = vmatprep.subr.mxu0 0.0
    %2686 = vmatpush1.msra.mxu0 0.0
    %2687 = vmatprep.subr.mxu0 0.0
    %2688 = vmatpush1.msra.mxu0 0.0
    %2689 = vmatprep.subr.mxu0 0.0
    %2690 = vmatpush1.msra.mxu0 0.0
    %2691 = vmatprep.subr.mxu0 0.0
    %2692 = vmatpush1.msra.mxu0 0.0
    %2693 = vmatprep.subr.mxu0 0.0
    %2694 = vmatpush1.msra.mxu0 0.0
    %2695 = vmatprep.subr.mxu0 0.0
    %2696 = vmatpush1.msra.mxu0 0.0
    %2697 = vmatprep.subr.mxu0 0.0
    %2698 = vmatpush1.msra.mxu0 0.0
    %2699 = vmatprep.subr.mxu0 0.0
    %2700 = vmatpush1.msra.mxu0 0.0
    %2701 = vmatprep.subr.mxu0 0.0
    %2702 = vmatpush1.msra.mxu0 0.0
    %2703 = vmatprep.subr.mxu0 0.0
    %2704 = vmatpush1.msra.mxu0 0.0
    %2705 = vmatprep.subr.mxu0 0.0
    %2706 = vmatpush1.msra.mxu0 0.0
    %2707 = vmatprep.subr.mxu0 0.0
    %2708 = vmatpush1.msra.mxu0 0.0
    %2709 = vmatprep.subr.mxu0 0.0
    %2710 = vmatpush1.msra.mxu0 0.0
    %2711 = vmatprep.subr.mxu0 0.0
    %2712 = vmatpush1.msra.mxu0 0.0
    %2713 = vmatprep.subr.mxu0 0.0
    %2714 = vmatpush1.msra.mxu0 0.0
    %2715 = vmatprep.subr.mxu0 0.0
    %2716 = vmatpush1.msra.mxu0 0.0
    %2717 = vmatprep.subr.mxu0 0.0
    %2718 = vmatpush1.msra.mxu0 0.0
    %2719 = vmatprep.subr.mxu0 0.0
    %2720 = vmatpush1.msra.mxu0 0.0
    %2721 = vmatprep.subr.mxu0 0.0
    %2722 = vmatpush1.msra.mxu0 0.0
    %2723 = vmatprep.subr.mxu0 0.0
    %2724 = vmatpush1.msra.mxu0 0.0
    %2725 = vmatprep.mubr.f32.mxu0 0.0
    %2726 = vmatmul.mubr.f32.gmra.mrb[0].mxu0 %v2659
    %v2727 = vpop.f32.mrb[0].mxu0
    %v2728 = vadd.f32 0.0, %v2727
    %v2729 = vpop.f32.mrb[0].mxu0
    %2730 = vdwg.mxu0
    %v2731 = vld [vmem:[%s10 + $0x100] sm:$0xff]
    %v2732 = vld [vmem:[%s10 + $0x108] sm:$0xff]
    %v2733 = vld [vmem:[%s10 + $0x110] sm:$0xff]
    %v2734 = vld [vmem:[%s10 + $0x118] sm:$0xff]
    %v2735 = vld [vmem:[%s10 + $0x120] sm:$0xff]
    %v2736 = vld [vmem:[%s10 + $0x128] sm:$0xff]
    %v2737 = vld [vmem:[%s10 + $0x130] sm:$0xff]
    %v2738 = vld [vmem:[%s10 + $0x138] sm:$0xff]
    %v2740 = vsel %vm110, %v2565, 0
    %v2743 = vsel %vm110, %v2728, 0
    %2745 = vmatprep.subr.mxu0 0.0
    %2746 = vmatpush1.msra.mxu0 %v2731
    %2747 = vmatprep.subr.mxu0 0.0
    %2748 = vmatpush1.msra.mxu0 %v2732
    %2749 = vmatprep.subr.mxu0 0.0
    %2750 = vmatpush1.msra.mxu0 %v2733
    %2751 = vmatprep.subr.mxu0 0.0
    %2752 = vmatpush1.msra.mxu0 %v2734
    %2753 = vmatprep.subr.mxu0 0.0
    %2754 = vmatpush1.msra.mxu0 %v2735
    %2755 = vmatprep.subr.mxu0 0.0
    %2756 = vmatpush1.msra.mxu0 %v2736
    %2757 = vmatprep.subr.mxu0 0.0
    %2758 = vmatpush1.msra.mxu0 %v2737
    %2759 = vmatprep.subr.mxu0 0.0
    %2760 = vmatpush1.msra.mxu0 %v2738
    %2761 = vmatprep.subr.mxu0 0.0
    %2762 = vmatpush1.msra.mxu0 0.0
    %2763 = vmatprep.subr.mxu0 0.0
    %2764 = vmatpush1.msra.mxu0 0.0
    %2765 = vmatprep.subr.mxu0 0.0
    %2766 = vmatpush1.msra.mxu0 0.0
    %2767 = vmatprep.subr.mxu0 0.0
    %2768 = vmatpush1.msra.mxu0 0.0
    %2769 = vmatprep.subr.mxu0 0.0
    %2770 = vmatpush1.msra.mxu0 0.0
    %2771 = vmatprep.subr.mxu0 0.0
    %2772 = vmatpush1.msra.mxu0 0.0
    %2773 = vmatprep.subr.mxu0 0.0
    %2774 = vmatpush1.msra.mxu0 0.0
    %2775 = vmatprep.subr.mxu0 0.0
    %2776 = vmatpush1.msra.mxu0 0.0
    %2777 = vmatprep.subr.mxu0 0.0
    %2778 = vmatpush1.msra.mxu0 0.0
    %2779 = vmatprep.subr.mxu0 0.0
    %2780 = vmatpush1.msra.mxu0 0.0
    %2781 = vmatprep.subr.mxu0 0.0
    %2782 = vmatpush1.msra.mxu0 0.0
    %2783 = vmatprep.subr.mxu0 0.0
    %2784 = vmatpush1.msra.mxu0 0.0
    %2785 = vmatprep.subr.mxu0 0.0
    %2786 = vmatpush1.msra.mxu0 0.0
    %2787 = vmatprep.subr.mxu0 0.0
    %2788 = vmatpush1.msra.mxu0 0.0
    %2789 = vmatprep.subr.mxu0 0.0
    %2790 = vmatpush1.msra.mxu0 0.0
    %2791 = vmatprep.subr.mxu0 0.0
    %2792 = vmatpush1.msra.mxu0 0.0
    %2793 = vmatprep.subr.mxu0 0.0
    %2794 = vmatpush1.msra.mxu0 0.0
    %2795 = vmatprep.subr.mxu0 0.0
    %2796 = vmatpush1.msra.mxu0 0.0
    %2797 = vmatprep.subr.mxu0 0.0
    %2798 = vmatpush1.msra.mxu0 0.0
    %2799 = vmatprep.subr.mxu0 0.0
    %2800 = vmatpush1.msra.mxu0 0.0
    %2801 = vmatprep.subr.mxu0 0.0
    %2802 = vmatpush1.msra.mxu0 0.0
    %2803 = vmatprep.subr.mxu0 0.0
    %2804 = vmatpush1.msra.mxu0 0.0
    %2805 = vmatprep.subr.mxu0 0.0
    %2806 = vmatpush1.msra.mxu0 0.0
    %2807 = vmatprep.subr.mxu0 0.0
    %2808 = vmatpush1.msra.mxu0 0.0
    %2809 = vmatprep.mubr.f32.mxu0 0.0
    %2810 = vmatmul.mubr.f32.gmra.mrb[0].mxu0 %v2740
    %v2811 = vpop.f32.mrb[0].mxu0
    %v2812 = vadd.f32 0.0, %v2811
    %v2813 = vpop.f32.mrb[0].mxu0
    %2814 = vmatprep.mubr.f32.mxu0 0.0
    %2815 = vmatmul.mubr.f32.gmra.mrb[0].mxu0 %v2743
    %v2816 = vpop.f32.mrb[0].mxu0
    %v2817 = vadd.f32 0.0, %v2816
    %v2818 = vpop.f32.mrb[0].mxu0
    %2819 = vdwg.mxu0
    %v2820 = vadd.f32 %v2403, %v2812
    %v2821 = vadd.f32 %v2404, %v2817
    %2822 = vrot.lane.b32.xlu0 %v261, 64
    %v2823 = vpop.permute.xlu0 %2822
    %2824 = vrot.lane.b32.xlu0 %v475, 64
    %v2825 = vpop.permute.xlu0 %2824
    %v2826 = vsel %vm110, %v2823, 0
    %v2828 = vsel %vm110, %v2825, 0
    %2830 = vmatprep.subr.mxu0 0.0
    %2831 = vmatpush1.xpose.msra.mxu0 %v2828
    %2832 = vmatprep.subr.mxu0 0.0
    %2833 = vmatpush1.xpose.msra.mxu0 0.0
    %2834 = vmatprep.subr.mxu0 0.0
    %2835 = vmatpush1.xpose.msra.mxu0 0.0
    %2836 = vmatprep.subr.mxu0 0.0
    %2837 = vmatpush1.xpose.msra.mxu0 0.0
    %2838 = vmatprep.subr.mxu0 0.0
    %2839 = vmatpush1.xpose.msra.mxu0 0.0
    %2840 = vmatprep.subr.mxu0 0.0
    %2841 = vmatpush1.xpose.msra.mxu0 0.0
    %2842 = vmatprep.subr.mxu0 0.0
    %2843 = vmatpush1.xpose.msra.mxu0 0.0
    %2844 = vmatprep.subr.mxu0 0.0
    %2845 = vmatpush1.xpose.msra.mxu0 0.0
    %2846 = vmatprep.subr.mxu0 0.0
    %2847 = vmatpush1.xpose.msra.mxu0 0.0
    %2848 = vmatprep.subr.mxu0 0.0
    %2849 = vmatpush1.xpose.msra.mxu0 0.0
    %2850 = vmatprep.subr.mxu0 0.0
    %2851 = vmatpush1.xpose.msra.mxu0 0.0
    %2852 = vmatprep.subr.mxu0 0.0
    %2853 = vmatpush1.xpose.msra.mxu0 0.0
    %2854 = vmatprep.subr.mxu0 0.0
    %2855 = vmatpush1.xpose.msra.mxu0 0.0
    %2856 = vmatprep.subr.mxu0 0.0
    %2857 = vmatpush1.xpose.msra.mxu0 0.0
    %2858 = vmatprep.subr.mxu0 0.0
    %2859 = vmatpush1.xpose.msra.mxu0 0.0
    %2860 = vmatprep.subr.mxu0 0.0
    %2861 = vmatpush1.xpose.msra.mxu0 0.0
    %2862 = vmatprep.subr.mxu0 0.0
    %2863 = vmatpush1.xpose.msra.mxu0 0.0
    %2864 = vmatprep.subr.mxu0 0.0
    %2865 = vmatpush1.xpose.msra.mxu0 0.0
    %2866 = vmatprep.subr.mxu0 0.0
    %2867 = vmatpush1.xpose.msra.mxu0 0.0
    %2868 = vmatprep.subr.mxu0 0.0
    %2869 = vmatpush1.xpose.msra.mxu0 0.0
    %2870 = vmatprep.subr.mxu0 0.0
    %2871 = vmatpush1.xpose.msra.mxu0 0.0
    %2872 = vmatprep.subr.mxu0 0.0
    %2873 = vmatpush1.xpose.msra.mxu0 0.0
    %2874 = vmatprep.subr.mxu0 0.0
    %2875 = vmatpush1.xpose.msra.mxu0 0.0
    %2876 = vmatprep.subr.mxu0 0.0
    %2877 = vmatpush1.xpose.msra.mxu0 0.0
    %2878 = vmatprep.subr.mxu0 0.0
    %2879 = vmatpush1.xpose.msra.mxu0 0.0
    %2880 = vmatprep.subr.mxu0 0.0
    %2881 = vmatpush1.xpose.msra.mxu0 0.0
    %2882 = vmatprep.subr.mxu0 0.0
    %2883 = vmatpush1.xpose.msra.mxu0 0.0
    %2884 = vmatprep.subr.mxu0 0.0
    %2885 = vmatpush1.xpose.msra.mxu0 0.0
    %2886 = vmatprep.subr.mxu0 0.0
    %2887 = vmatpush1.xpose.msra.mxu0 0.0
    %2888 = vmatprep.subr.mxu0 0.0
    %2889 = vmatpush1.xpose.msra.mxu0 0.0
    %2890 = vmatprep.subr.mxu0 0.0
    %2891 = vmatpush1.xpose.msra.mxu0 0.0
    %2892 = vmatprep.subr.mxu0 0.0
    %2893 = vmatpush1.xpose.msra.mxu0 0.0
    %2894 = vmatprep.mubr.f32.mxu0 0.0
    %2895 = vmatmul.mubr.f32.gmra.mrb[0].mxu0 %v2826
    %v2896 = vpop.f32.mrb[0].mxu0
    %v2897 = vadd.f32 0.0, %v2896
    %v2898 = vpop.f32.mrb[0].mxu0
    %2899 = vdwg.mxu0
    %v2900 = vsub.f32 %v2897, %v785
    %v2901 = vsel %vm788, %v2900, -inf
    %2902 = vmax.xlane.f32.xlu0 %v2901
    %v2903 = vpop.xlane.xlu0 %2902
    %v2904 = vsub.f32 %v2900, %v2903
    %v2905 = vmul.f32 %v2904, 1.442695
    %v2906 = vpow.pop %v2905
    %v2907 = vsel %vm788, %v2906, 0.0
    %2908 = vadd.xlane.f32.xlu0 %v2907
    %v2909 = vpop.xlane.xlu0 %2908
    %v2910 = vrcp.pop %v2909
    %v2911 = vmul.f32 %v2906, %v2910
    %s2912 = scalar_lea.vmem %s15, 40
    %2913 = vst.msk [vmem:[%s2912] sm:$0xff] %vm788, %v2911
    %2915 = vrot.lane.b32.xlu0 %v689, 64
    %v2916 = vpop.permute.xlu0 %2915
    %v2919 = vsel %vm788, %v2911, 0
    %2921 = vmatprep.subr.mxu0 0.0
    %2922 = vmatpush1.msra.mxu0 %v2916
    %2923 = vmatprep.subr.mxu0 0.0
    %2924 = vmatpush1.msra.mxu0 0.0
    %2925 = vmatprep.subr.mxu0 0.0
    %2926 = vmatpush1.msra.mxu0 0.0
    %2927 = vmatprep.subr.mxu0 0.0
    %2928 = vmatpush1.msra.mxu0 0.0
    %2929 = vmatprep.subr.mxu0 0.0
    %2930 = vmatpush1.msra.mxu0 0.0
    %2931 = vmatprep.subr.mxu0 0.0
    %2932 = vmatpush1.msra.mxu0 0.0
    %2933 = vmatprep.subr.mxu0 0.0
    %2934 = vmatpush1.msra.mxu0 0.0
    %2935 = vmatprep.subr.mxu0 0.0
    %2936 = vmatpush1.msra.mxu0 0.0
    %2937 = vmatprep.subr.mxu0 0.0
    %2938 = vmatpush1.msra.mxu0 0.0
    %2939 = vmatprep.subr.mxu0 0.0
    %2940 = vmatpush1.msra.mxu0 0.0
    %2941 = vmatprep.subr.mxu0 0.0
    %2942 = vmatpush1.msra.mxu0 0.0
    %2943 = vmatprep.subr.mxu0 0.0
    %2944 = vmatpush1.msra.mxu0 0.0
    %2945 = vmatprep.subr.mxu0 0.0
    %2946 = vmatpush1.msra.mxu0 0.0
    %2947 = vmatprep.subr.mxu0 0.0
    %2948 = vmatpush1.msra.mxu0 0.0
    %2949 = vmatprep.subr.mxu0 0.0
    %2950 = vmatpush1.msra.mxu0 0.0
    %2951 = vmatprep.subr.mxu0 0.0
    %2952 = vmatpush1.msra.mxu0 0.0
    %2953 = vmatprep.subr.mxu0 0.0
    %2954 = vmatpush1.msra.mxu0 0.0
    %2955 = vmatprep.subr.mxu0 0.0
    %2956 = vmatpush1.msra.mxu0 0.0
    %2957 = vmatprep.subr.mxu0 0.0
    %2958 = vmatpush1.msra.mxu0 0.0
    %2959 = vmatprep.subr.mxu0 0.0
    %2960 = vmatpush1.msra.mxu0 0.0
    %2961 = vmatprep.subr.mxu0 0.0
    %2962 = vmatpush1.msra.mxu0 0.0
    %2963 = vmatprep.subr.mxu0 0.0
    %2964 = vmatpush1.msra.mxu0 0.0
    %2965 = vmatprep.subr.mxu0 0.0
    %2966 = vmatpush1.msra.mxu0 0.0
    %2967 = vmatprep.subr.mxu0 0.0
    %2968 = vmatpush1.msra.mxu0 0.0
    %2969 = vmatprep.subr.mxu0 0.0
    %2970 = vmatpush1.msra.mxu0 0.0
    %2971 = vmatprep.subr.mxu0 0.0
    %2972 = vmatpush1.msra.mxu0 0.0
    %2973 = vmatprep.subr.mxu0 0.0
    %2974 = vmatpush1.msra.mxu0 0.0
    %2975 = vmatprep.subr.mxu0 0.0
    %2976 = vmatpush1.msra.mxu0 0.0
    %2977 = vmatprep.subr.mxu0 0.0
    %2978 = vmatpush1.msra.mxu0 0.0
    %2979 = vmatprep.subr.mxu0 0.0
    %2980 = vmatpush1.msra.mxu0 0.0
    %2981 = vmatprep.subr.mxu0 0.0
    %2982 = vmatpush1.msra.mxu0 0.0
    %2983 = vmatprep.subr.mxu0 0.0
    %2984 = vmatpush1.msra.mxu0 0.0
    %2985 = vmatprep.mubr.f32.mxu0 0.0
    %2986 = vmatmul.mubr.f32.gmra.mrb[0].mxu0 %v2919
    %v2987 = vpop.f32.mrb[0].mxu0
    %v2988 = vadd.f32 0.0, %v2987
    %v2989 = vpop.f32.mrb[0].mxu0
    %2990 = vdwg.mxu0
    %2991 = vrot.lane.b32.xlu0 %v267, 64
    %v2992 = vpop.permute.xlu0 %2991
    %2993 = vrot.lane.b32.xlu0 %v481, 64
    %v2994 = vpop.permute.xlu0 %2993
    %v2995 = vsel %vm110, %v2992, 0
    %v2997 = vsel %vm110, %v2994, 0
    %2999 = vmatprep.subr.mxu0 0.0
    %3000 = vmatpush1.xpose.msra.mxu0 %v2997
    %3001 = vmatprep.subr.mxu0 0.0
    %3002 = vmatpush1.xpose.msra.mxu0 0.0
    %3003 = vmatprep.subr.mxu0 0.0
    %3004 = vmatpush1.xpose.msra.mxu0 0.0
    %3005 = vmatprep.subr.mxu0 0.0
    %3006 = vmatpush1.xpose.msra.mxu0 0.0
    %3007 = vmatprep.subr.mxu0 0.0
    %3008 = vmatpush1.xpose.msra.mxu0 0.0
    %3009 = vmatprep.subr.mxu0 0.0
    %3010 = vmatpush1.xpose.msra.mxu0 0.0
    %3011 = vmatprep.subr.mxu0 0.0
    %3012 = vmatpush1.xpose.msra.mxu0 0.0
    %3013 = vmatprep.subr.mxu0 0.0
    %3014 = vmatpush1.xpose.msra.mxu0 0.0
    %3015 = vmatprep.subr.mxu0 0.0
    %3016 = vmatpush1.xpose.msra.mxu0 0.0
    %3017 = vmatprep.subr.mxu0 0.0
    %3018 = vmatpush1.xpose.msra.mxu0 0.0
    %3019 = vmatprep.subr.mxu0 0.0
    %3020 = vmatpush1.xpose.msra.mxu0 0.0
    %3021 = vmatprep.subr.mxu0 0.0
    %3022 = vmatpush1.xpose.msra.mxu0 0.0
    %3023 = vmatprep.subr.mxu0 0.0
    %3024 = vmatpush1.xpose.msra.mxu0 0.0
    %3025 = vmatprep.subr.mxu0 0.0
    %3026 = vmatpush1.xpose.msra.mxu0 0.0
    %3027 = vmatprep.subr.mxu0 0.0
    %3028 = vmatpush1.xpose.msra.mxu0 0.0
    %3029 = vmatprep.subr.mxu0 0.0
    %3030 = vmatpush1.xpose.msra.mxu0 0.0
    %3031 = vmatprep.subr.mxu0 0.0
    %3032 = vmatpush1.xpose.msra.mxu0 0.0
    %3033 = vmatprep.subr.mxu0 0.0
    %3034 = vmatpush1.xpose.msra.mxu0 0.0
    %3035 = vmatprep.subr.mxu0 0.0
    %3036 = vmatpush1.xpose.msra.mxu0 0.0
    %3037 = vmatprep.subr.mxu0 0.0
    %3038 = vmatpush1.xpose.msra.mxu0 0.0
    %3039 = vmatprep.subr.mxu0 0.0
    %3040 = vmatpush1.xpose.msra.mxu0 0.0
    %3041 = vmatprep.subr.mxu0 0.0
    %3042 = vmatpush1.xpose.msra.mxu0 0.0
    %3043 = vmatprep.subr.mxu0 0.0
    %3044 = vmatpush1.xpose.msra.mxu0 0.0
    %3045 = vmatprep.subr.mxu0 0.0
    %3046 = vmatpush1.xpose.msra.mxu0 0.0
    %3047 = vmatprep.subr.mxu0 0.0
    %3048 = vmatpush1.xpose.msra.mxu0 0.0
    %3049 = vmatprep.subr.mxu0 0.0
    %3050 = vmatpush1.xpose.msra.mxu0 0.0
    %3051 = vmatprep.subr.mxu0 0.0
    %3052 = vmatpush1.xpose.msra.mxu0 0.0
    %3053 = vmatprep.subr.mxu0 0.0
    %3054 = vmatpush1.xpose.msra.mxu0 0.0
    %3055 = vmatprep.subr.mxu0 0.0
    %3056 = vmatpush1.xpose.msra.mxu0 0.0
    %3057 = vmatprep.subr.mxu0 0.0
    %3058 = vmatpush1.xpose.msra.mxu0 0.0
    %3059 = vmatprep.subr.mxu0 0.0
    %3060 = vmatpush1.xpose.msra.mxu0 0.0
    %3061 = vmatprep.subr.mxu0 0.0
    %3062 = vmatpush1.xpose.msra.mxu0 0.0
    %3063 = vmatprep.mubr.f32.mxu0 0.0
    %3064 = vmatmul.mubr.f32.gmra.mrb[0].mxu0 %v2995
    %v3065 = vpop.f32.mrb[0].mxu0
    %v3066 = vadd.f32 0.0, %v3065
    %v3067 = vpop.f32.mrb[0].mxu0
    %3068 = vdwg.mxu0
    %v3069 = vsub.f32 %v3066, %v954
    %v3070 = vsel %vm788, %v3069, -inf
    %3071 = vmax.xlane.f32.xlu0 %v3070
    %v3072 = vpop.xlane.xlu0 %3071
    %v3073 = vsub.f32 %v3069, %v3072
    %v3074 = vmul.f32 %v3073, 1.442695
    %v3075 = vpow.pop %v3074
    %v3076 = vsel %vm788, %v3075, 0.0
    %3077 = vadd.xlane.f32.xlu0 %v3076
    %v3078 = vpop.xlane.xlu0 %3077
    %v3079 = vrcp.pop %v3078
    %v3080 = vmul.f32 %v3075, %v3079
    %s3081 = scalar_lea.vmem %s15, 104
    %3082 = vst.msk [vmem:[%s3081] sm:$0xff] %vm788, %v3080
    %3084 = vrot.lane.b32.xlu0 %v695, 64
    %v3085 = vpop.permute.xlu0 %3084
    %v3088 = vsel %vm788, %v3080, 0
    %3090 = vmatprep.subr.mxu0 0.0
    %3091 = vmatpush1.msra.mxu0 %v3085
    %3092 = vmatprep.subr.mxu0 0.0
    %3093 = vmatpush1.msra.mxu0 0.0
    %3094 = vmatprep.subr.mxu0 0.0
    %3095 = vmatpush1.msra.mxu0 0.0
    %3096 = vmatprep.subr.mxu0 0.0
    %3097 = vmatpush1.msra.mxu0 0.0
    %3098 = vmatprep.subr.mxu0 0.0
    %3099 = vmatpush1.msra.mxu0 0.0
    %3100 = vmatprep.subr.mxu0 0.0
    %3101 = vmatpush1.msra.mxu0 0.0
    %3102 = vmatprep.subr.mxu0 0.0
    %3103 = vmatpush1.msra.mxu0 0.0
    %3104 = vmatprep.subr.mxu0 0.0
    %3105 = vmatpush1.msra.mxu0 0.0
    %3106 = vmatprep.subr.mxu0 0.0
    %3107 = vmatpush1.msra.mxu0 0.0
    %3108 = vmatprep.subr.mxu0 0.0
    %3109 = vmatpush1.msra.mxu0 0.0
    %3110 = vmatprep.subr.mxu0 0.0
    %3111 = vmatpush1.msra.mxu0 0.0
    %3112 = vmatprep.subr.mxu0 0.0
    %3113 = vmatpush1.msra.mxu0 0.0
    %3114 = vmatprep.subr.mxu0 0.0
    %3115 = vmatpush1.msra.mxu0 0.0
    %3116 = vmatprep.subr.mxu0 0.0
    %3117 = vmatpush1.msra.mxu0 0.0
    %3118 = vmatprep.subr.mxu0 0.0
    %3119 = vmatpush1.msra.mxu0 0.0
    %3120 = vmatprep.subr.mxu0 0.0
    %3121 = vmatpush1.msra.mxu0 0.0
    %3122 = vmatprep.subr.mxu0 0.0
    %3123 = vmatpush1.msra.mxu0 0.0
    %3124 = vmatprep.subr.mxu0 0.0
    %3125 = vmatpush1.msra.mxu0 0.0
    %3126 = vmatprep.subr.mxu0 0.0
    %3127 = vmatpush1.msra.mxu0 0.0
    %3128 = vmatprep.subr.mxu0 0.0
    %3129 = vmatpush1.msra.mxu0 0.0
    %3130 = vmatprep.subr.mxu0 0.0
    %3131 = vmatpush1.msra.mxu0 0.0
    %3132 = vmatprep.subr.mxu0 0.0
    %3133 = vmatpush1.msra.mxu0 0.0
    %3134 = vmatprep.subr.mxu0 0.0
    %3135 = vmatpush1.msra.mxu0 0.0
    %3136 = vmatprep.subr.mxu0 0.0
    %3137 = vmatpush1.msra.mxu0 0.0
    %3138 = vmatprep.subr.mxu0 0.0
    %3139 = vmatpush1.msra.mxu0 0.0
    %3140 = vmatprep.subr.mxu0 0.0
    %3141 = vmatpush1.msra.mxu0 0.0
    %3142 = vmatprep.subr.mxu0 0.0
    %3143 = vmatpush1.msra.mxu0 0.0
    %3144 = vmatprep.subr.mxu0 0.0
    %3145 = vmatpush1.msra.mxu0 0.0
    %3146 = vmatprep.subr.mxu0 0.0
    %3147 = vmatpush1.msra.mxu0 0.0
    %3148 = vmatprep.subr.mxu0 0.0
    %3149 = vmatpush1.msra.mxu0 0.0
    %3150 = vmatprep.subr.mxu0 0.0
    %3151 = vmatpush1.msra.mxu0 0.0
    %3152 = vmatprep.subr.mxu0 0.0
    %3153 = vmatpush1.msra.mxu0 0.0
    %3154 = vmatprep.mubr.f32.mxu0 0.0
    %3155 = vmatmul.mubr.f32.gmra.mrb[0].mxu0 %v3088
    %v3156 = vpop.f32.mrb[0].mxu0
    %v3157 = vadd.f32 0.0, %v3156
    %v3158 = vpop.f32.mrb[0].mxu0
    %3159 = vdwg.mxu0
    %v3160 = vld [vmem:[%s10 + $0x140] sm:$0xff]
    %v3161 = vld [vmem:[%s10 + $0x148] sm:$0xff]
    %v3162 = vld [vmem:[%s10 + $0x150] sm:$0xff]
    %v3163 = vld [vmem:[%s10 + $0x158] sm:$0xff]
    %v3164 = vld [vmem:[%s10 + $0x160] sm:$0xff]
    %v3165 = vld [vmem:[%s10 + $0x168] sm:$0xff]
    %v3166 = vld [vmem:[%s10 + $0x170] sm:$0xff]
    %v3167 = vld [vmem:[%s10 + $0x178] sm:$0xff]
    %v3169 = vsel %vm110, %v2988, 0
    %v3172 = vsel %vm110, %v3157, 0
    %3174 = vmatprep.subr.mxu0 0.0
    %3175 = vmatpush1.msra.mxu0 %v3160
    %3176 = vmatprep.subr.mxu0 0.0
    %3177 = vmatpush1.msra.mxu0 %v3161
    %3178 = vmatprep.subr.mxu0 0.0
    %3179 = vmatpush1.msra.mxu0 %v3162
    %3180 = vmatprep.subr.mxu0 0.0
    %3181 = vmatpush1.msra.mxu0 %v3163
    %3182 = vmatprep.subr.mxu0 0.0
    %3183 = vmatpush1.msra.mxu0 %v3164
    %3184 = vmatprep.subr.mxu0 0.0
    %3185 = vmatpush1.msra.mxu0 %v3165
    %3186 = vmatprep.subr.mxu0 0.0
    %3187 = vmatpush1.msra.mxu0 %v3166
    %3188 = vmatprep.subr.mxu0 0.0
    %3189 = vmatpush1.msra.mxu0 %v3167
    %3190 = vmatprep.subr.mxu0 0.0
    %3191 = vmatpush1.msra.mxu0 0.0
    %3192 = vmatprep.subr.mxu0 0.0
    %3193 = vmatpush1.msra.mxu0 0.0
    %3194 = vmatprep.subr.mxu0 0.0
    %3195 = vmatpush1.msra.mxu0 0.0
    %3196 = vmatprep.subr.mxu0 0.0
    %3197 = vmatpush1.msra.mxu0 0.0
    %3198 = vmatprep.subr.mxu0 0.0
    %3199 = vmatpush1.msra.mxu0 0.0
    %3200 = vmatprep.subr.mxu0 0.0
    %3201 = vmatpush1.msra.mxu0 0.0
    %3202 = vmatprep.subr.mxu0 0.0
    %3203 = vmatpush1.msra.mxu0 0.0
    %3204 = vmatprep.subr.mxu0 0.0
    %3205 = vmatpush1.msra.mxu0 0.0
    %3206 = vmatprep.subr.mxu0 0.0
    %3207 = vmatpush1.msra.mxu0 0.0
    %3208 = vmatprep.subr.mxu0 0.0
    %3209 = vmatpush1.msra.mxu0 0.0
    %3210 = vmatprep.subr.mxu0 0.0
    %3211 = vmatpush1.msra.mxu0 0.0
    %3212 = vmatprep.subr.mxu0 0.0
    %3213 = vmatpush1.msra.mxu0 0.0
    %3214 = vmatprep.subr.mxu0 0.0
    %3215 = vmatpush1.msra.mxu0 0.0
    %3216 = vmatprep.subr.mxu0 0.0
    %3217 = vmatpush1.msra.mxu0 0.0
    %3218 = vmatprep.subr.mxu0 0.0
    %3219 = vmatpush1.msra.mxu0 0.0
    %3220 = vmatprep.subr.mxu0 0.0
    %3221 = vmatpush1.msra.mxu0 0.0
    %3222 = vmatprep.subr.mxu0 0.0
    %3223 = vmatpush1.msra.mxu0 0.0
    %3224 = vmatprep.subr.mxu0 0.0
    %3225 = vmatpush1.msra.mxu0 0.0
    %3226 = vmatprep.subr.mxu0 0.0
    %3227 = vmatpush1.msra.mxu0 0.0
    %3228 = vmatprep.subr.mxu0 0.0
    %3229 = vmatpush1.msra.mxu0 0.0
    %3230 = vmatprep.subr.mxu0 0.0
    %3231 = vmatpush1.msra.mxu0 0.0
    %3232 = vmatprep.subr.mxu0 0.0
    %3233 = vmatpush1.msra.mxu0 0.0
    %3234 = vmatprep.subr.mxu0 0.0
    %3235 = vmatpush1.msra.mxu0 0.0
    %3236 = vmatprep.subr.mxu0 0.0
    %3237 = vmatpush1.msra.mxu0 0.0
    %3238 = vmatprep.mubr.f32.mxu0 0.0
    %3239 = vmatmul.mubr.f32.gmra.mrb[0].mxu0 %v3169
    %v3240 = vpop.f32.mrb[0].mxu0
    %v3241 = vadd.f32 0.0, %v3240
    %v3242 = vpop.f32.mrb[0].mxu0
    %3243 = vmatprep.mubr.f32.mxu0 0.0
    %3244 = vmatmul.mubr.f32.gmra.mrb[0].mxu0 %v3172
    %v3245 = vpop.f32.mrb[0].mxu0
    %v3246 = vadd.f32 0.0, %v3245
    %v3247 = vpop.f32.mrb[0].mxu0
    %3248 = vdwg.mxu0
    %v3249 = vadd.f32 %v2820, %v3241
    %v3250 = vadd.f32 %v2821, %v3246
    %v3252 = vsel %vm110, %v263, 0
    %v3255 = vsel %vm110, %v477, 0
    %3257 = vmatprep.subr.mxu0 0.0
    %3258 = vmatpush1.xpose.msra.mxu0 %v3255
    %3259 = vmatprep.subr.mxu0 0.0
    %3260 = vmatpush1.xpose.msra.mxu0 0.0
    %3261 = vmatprep.subr.mxu0 0.0
    %3262 = vmatpush1.xpose.msra.mxu0 0.0
    %3263 = vmatprep.subr.mxu0 0.0
    %3264 = vmatpush1.xpose.msra.mxu0 0.0
    %3265 = vmatprep.subr.mxu0 0.0
    %3266 = vmatpush1.xpose.msra.mxu0 0.0
    %3267 = vmatprep.subr.mxu0 0.0
    %3268 = vmatpush1.xpose.msra.mxu0 0.0
    %3269 = vmatprep.subr.mxu0 0.0
    %3270 = vmatpush1.xpose.msra.mxu0 0.0
    %3271 = vmatprep.subr.mxu0 0.0
    %3272 = vmatpush1.xpose.msra.mxu0 0.0
    %3273 = vmatprep.subr.mxu0 0.0
    %3274 = vmatpush1.xpose.msra.mxu0 0.0
    %3275 = vmatprep.subr.mxu0 0.0
    %3276 = vmatpush1.xpose.msra.mxu0 0.0
    %3277 = vmatprep.subr.mxu0 0.0
    %3278 = vmatpush1.xpose.msra.mxu0 0.0
    %3279 = vmatprep.subr.mxu0 0.0
    %3280 = vmatpush1.xpose.msra.mxu0 0.0
    %3281 = vmatprep.subr.mxu0 0.0
    %3282 = vmatpush1.xpose.msra.mxu0 0.0
    %3283 = vmatprep.subr.mxu0 0.0
    %3284 = vmatpush1.xpose.msra.mxu0 0.0
    %3285 = vmatprep.subr.mxu0 0.0
    %3286 = vmatpush1.xpose.msra.mxu0 0.0
    %3287 = vmatprep.subr.mxu0 0.0
    %3288 = vmatpush1.xpose.msra.mxu0 0.0
    %3289 = vmatprep.subr.mxu0 0.0
    %3290 = vmatpush1.xpose.msra.mxu0 0.0
    %3291 = vmatprep.subr.mxu0 0.0
    %3292 = vmatpush1.xpose.msra.mxu0 0.0
    %3293 = vmatprep.subr.mxu0 0.0
    %3294 = vmatpush1.xpose.msra.mxu0 0.0
    %3295 = vmatprep.subr.mxu0 0.0
    %3296 = vmatpush1.xpose.msra.mxu0 0.0
    %3297 = vmatprep.subr.mxu0 0.0
    %3298 = vmatpush1.xpose.msra.mxu0 0.0
    %3299 = vmatprep.subr.mxu0 0.0
    %3300 = vmatpush1.xpose.msra.mxu0 0.0
    %3301 = vmatprep.subr.mxu0 0.0
    %3302 = vmatpush1.xpose.msra.mxu0 0.0
    %3303 = vmatprep.subr.mxu0 0.0
    %3304 = vmatpush1.xpose.msra.mxu0 0.0
    %3305 = vmatprep.subr.mxu0 0.0
    %3306 = vmatpush1.xpose.msra.mxu0 0.0
    %3307 = vmatprep.subr.mxu0 0.0
    %3308 = vmatpush1.xpose.msra.mxu0 0.0
    %3309 = vmatprep.subr.mxu0 0.0
    %3310 = vmatpush1.xpose.msra.mxu0 0.0
    %3311 = vmatprep.subr.mxu0 0.0
    %3312 = vmatpush1.xpose.msra.mxu0 0.0
    %3313 = vmatprep.subr.mxu0 0.0
    %3314 = vmatpush1.xpose.msra.mxu0 0.0
    %3315 = vmatprep.subr.mxu0 0.0
    %3316 = vmatpush1.xpose.msra.mxu0 0.0
    %3317 = vmatprep.subr.mxu0 0.0
    %3318 = vmatpush1.xpose.msra.mxu0 0.0
    %3319 = vmatprep.subr.mxu0 0.0
    %3320 = vmatpush1.xpose.msra.mxu0 0.0
    %3321 = vmatprep.mubr.f32.mxu0 0.0
    %3322 = vmatmul.mubr.f32.gmra.mrb[0].mxu0 %v3252
    %v3323 = vpop.f32.mrb[0].mxu0
    %v3324 = vadd.f32 0.0, %v3323
    %v3325 = vpop.f32.mrb[0].mxu0
    %3326 = vdwg.mxu0
    %v3327 = vsub.f32 %v3324, %v785
    %v3328 = vsel %vm788, %v3327, -inf
    %3329 = vmax.xlane.f32.xlu0 %v3328
    %v3330 = vpop.xlane.xlu0 %3329
    %v3331 = vsub.f32 %v3327, %v3330
    %v3332 = vmul.f32 %v3331, 1.442695
    %v3333 = vpow.pop %v3332
    %v3334 = vsel %vm788, %v3333, 0.0
    %3335 = vadd.xlane.f32.xlu0 %v3334
    %v3336 = vpop.xlane.xlu0 %3335
    %v3337 = vrcp.pop %v3336
    %v3338 = vmul.f32 %v3333, %v3337
    %s3339 = scalar_lea.vmem %s15, 48
    %3340 = vst.msk [vmem:[%s3339] sm:$0xff] %vm788, %v3338
    %v3342 = vsel %vm788, %v3338, 0
    %3344 = vmatprep.subr.mxu0 0.0
    %3345 = vmatpush1.msra.mxu0 %v691
    %3346 = vmatprep.subr.mxu0 0.0
    %3347 = vmatpush1.msra.mxu0 0.0
    %3348 = vmatprep.subr.mxu0 0.0
    %3349 = vmatpush1.msra.mxu0 0.0
    %3350 = vmatprep.subr.mxu0 0.0
    %3351 = vmatpush1.msra.mxu0 0.0
    %3352 = vmatprep.subr.mxu0 0.0
    %3353 = vmatpush1.msra.mxu0 0.0
    %3354 = vmatprep.subr.mxu0 0.0
    %3355 = vmatpush1.msra.mxu0 0.0
    %3356 = vmatprep.subr.mxu0 0.0
    %3357 = vmatpush1.msra.mxu0 0.0
    %3358 = vmatprep.subr.mxu0 0.0
    %3359 = vmatpush1.msra.mxu0 0.0
    %3360 = vmatprep.subr.mxu0 0.0
    %3361 = vmatpush1.msra.mxu0 0.0
    %3362 = vmatprep.subr.mxu0 0.0
    %3363 = vmatpush1.msra.mxu0 0.0
    %3364 = vmatprep.subr.mxu0 0.0
    %3365 = vmatpush1.msra.mxu0 0.0
    %3366 = vmatprep.subr.mxu0 0.0
    %3367 = vmatpush1.msra.mxu0 0.0
    %3368 = vmatprep.subr.mxu0 0.0
    %3369 = vmatpush1.msra.mxu0 0.0
    %3370 = vmatprep.subr.mxu0 0.0
    %3371 = vmatpush1.msra.mxu0 0.0
    %3372 = vmatprep.subr.mxu0 0.0
    %3373 = vmatpush1.msra.mxu0 0.0
    %3374 = vmatprep.subr.mxu0 0.0
    %3375 = vmatpush1.msra.mxu0 0.0
    %3376 = vmatprep.subr.mxu0 0.0
    %3377 = vmatpush1.msra.mxu0 0.0
    %3378 = vmatprep.subr.mxu0 0.0
    %3379 = vmatpush1.msra.mxu0 0.0
    %3380 = vmatprep.subr.mxu0 0.0
    %3381 = vmatpush1.msra.mxu0 0.0
    %3382 = vmatprep.subr.mxu0 0.0
    %3383 = vmatpush1.msra.mxu0 0.0
    %3384 = vmatprep.subr.mxu0 0.0
    %3385 = vmatpush1.msra.mxu0 0.0
    %3386 = vmatprep.subr.mxu0 0.0
    %3387 = vmatpush1.msra.mxu0 0.0
    %3388 = vmatprep.subr.mxu0 0.0
    %3389 = vmatpush1.msra.mxu0 0.0
    %3390 = vmatprep.subr.mxu0 0.0
    %3391 = vmatpush1.msra.mxu0 0.0
    %3392 = vmatprep.subr.mxu0 0.0
    %3393 = vmatpush1.msra.mxu0 0.0
    %3394 = vmatprep.subr.mxu0 0.0
    %3395 = vmatpush1.msra.mxu0 0.0
    %3396 = vmatprep.subr.mxu0 0.0
    %3397 = vmatpush1.msra.mxu0 0.0
    %3398 = vmatprep.subr.mxu0 0.0
    %3399 = vmatpush1.msra.mxu0 0.0
    %3400 = vmatprep.subr.mxu0 0.0
    %3401 = vmatpush1.msra.mxu0 0.0
    %3402 = vmatprep.subr.mxu0 0.0
    %3403 = vmatpush1.msra.mxu0 0.0
    %3404 = vmatprep.subr.mxu0 0.0
    %3405 = vmatpush1.msra.mxu0 0.0
    %3406 = vmatprep.subr.mxu0 0.0
    %3407 = vmatpush1.msra.mxu0 0.0
    %3408 = vmatprep.mubr.f32.mxu0 0.0
    %3409 = vmatmul.mubr.f32.gmra.mrb[0].mxu0 %v3342
    %v3410 = vpop.f32.mrb[0].mxu0
    %v3411 = vadd.f32 0.0, %v3410
    %v3412 = vpop.f32.mrb[0].mxu0
    %3413 = vdwg.mxu0
    %v3415 = vsel %vm110, %v269, 0
    %v3418 = vsel %vm110, %v483, 0
    %3420 = vmatprep.subr.mxu0 0.0
    %3421 = vmatpush1.xpose.msra.mxu0 %v3418
    %3422 = vmatprep.subr.mxu0 0.0
    %3423 = vmatpush1.xpose.msra.mxu0 0.0
    %3424 = vmatprep.subr.mxu0 0.0
    %3425 = vmatpush1.xpose.msra.mxu0 0.0
    %3426 = vmatprep.subr.mxu0 0.0
    %3427 = vmatpush1.xpose.msra.mxu0 0.0
    %3428 = vmatprep.subr.mxu0 0.0
    %3429 = vmatpush1.xpose.msra.mxu0 0.0
    %3430 = vmatprep.subr.mxu0 0.0
    %3431 = vmatpush1.xpose.msra.mxu0 0.0
    %3432 = vmatprep.subr.mxu0 0.0
    %3433 = vmatpush1.xpose.msra.mxu0 0.0
    %3434 = vmatprep.subr.mxu0 0.0
    %3435 = vmatpush1.xpose.msra.mxu0 0.0
    %3436 = vmatprep.subr.mxu0 0.0
    %3437 = vmatpush1.xpose.msra.mxu0 0.0
    %3438 = vmatprep.subr.mxu0 0.0
    %3439 = vmatpush1.xpose.msra.mxu0 0.0
    %3440 = vmatprep.subr.mxu0 0.0
    %3441 = vmatpush1.xpose.msra.mxu0 0.0
    %3442 = vmatprep.subr.mxu0 0.0
    %3443 = vmatpush1.xpose.msra.mxu0 0.0
    %3444 = vmatprep.subr.mxu0 0.0
    %3445 = vmatpush1.xpose.msra.mxu0 0.0
    %3446 = vmatprep.subr.mxu0 0.0
    %3447 = vmatpush1.xpose.msra.mxu0 0.0
    %3448 = vmatprep.subr.mxu0 0.0
    %3449 = vmatpush1.xpose.msra.mxu0 0.0
    %3450 = vmatprep.subr.mxu0 0.0
    %3451 = vmatpush1.xpose.msra.mxu0 0.0
    %3452 = vmatprep.subr.mxu0 0.0
    %3453 = vmatpush1.xpose.msra.mxu0 0.0
    %3454 = vmatprep.subr.mxu0 0.0
    %3455 = vmatpush1.xpose.msra.mxu0 0.0
    %3456 = vmatprep.subr.mxu0 0.0
    %3457 = vmatpush1.xpose.msra.mxu0 0.0
    %3458 = vmatprep.subr.mxu0 0.0
    %3459 = vmatpush1.xpose.msra.mxu0 0.0
    %3460 = vmatprep.subr.mxu0 0.0
    %3461 = vmatpush1.xpose.msra.mxu0 0.0
    %3462 = vmatprep.subr.mxu0 0.0
    %3463 = vmatpush1.xpose.msra.mxu0 0.0
    %3464 = vmatprep.subr.mxu0 0.0
    %3465 = vmatpush1.xpose.msra.mxu0 0.0
    %3466 = vmatprep.subr.mxu0 0.0
    %3467 = vmatpush1.xpose.msra.mxu0 0.0
    %3468 = vmatprep.subr.mxu0 0.0
    %3469 = vmatpush1.xpose.msra.mxu0 0.0
    %3470 = vmatprep.subr.mxu0 0.0
    %3471 = vmatpush1.xpose.msra.mxu0 0.0
    %3472 = vmatprep.subr.mxu0 0.0
    %3473 = vmatpush1.xpose.msra.mxu0 0.0
    %3474 = vmatprep.subr.mxu0 0.0
    %3475 = vmatpush1.xpose.msra.mxu0 0.0
    %3476 = vmatprep.subr.mxu0 0.0
    %3477 = vmatpush1.xpose.msra.mxu0 0.0
    %3478 = vmatprep.subr.mxu0 0.0
    %3479 = vmatpush1.xpose.msra.mxu0 0.0
    %3480 = vmatprep.subr.mxu0 0.0
    %3481 = vmatpush1.xpose.msra.mxu0 0.0
    %3482 = vmatprep.subr.mxu0 0.0
    %3483 = vmatpush1.xpose.msra.mxu0 0.0
    %3484 = vmatprep.mubr.f32.mxu0 0.0
    %3485 = vmatmul.mubr.f32.gmra.mrb[0].mxu0 %v3415
    %v3486 = vpop.f32.mrb[0].mxu0
    %v3487 = vadd.f32 0.0, %v3486
    %v3488 = vpop.f32.mrb[0].mxu0
    %3489 = vdwg.mxu0
    %v3490 = vsub.f32 %v3487, %v954
    %v3491 = vsel %vm788, %v3490, -inf
    %3492 = vmax.xlane.f32.xlu0 %v3491
    %v3493 = vpop.xlane.xlu0 %3492
    %v3494 = vsub.f32 %v3490, %v3493
    %v3495 = vmul.f32 %v3494, 1.442695
    %v3496 = vpow.pop %v3495
    %v3497 = vsel %vm788, %v3496, 0.0
    %3498 = vadd.xlane.f32.xlu0 %v3497
    %v3499 = vpop.xlane.xlu0 %3498
    %v3500 = vrcp.pop %v3499
    %v3501 = vmul.f32 %v3496, %v3500
    %s3502 = scalar_lea.vmem %s15, 112
    %3503 = vst.msk [vmem:[%s3502] sm:$0xff] %vm788, %v3501
    %v3505 = vsel %vm788, %v3501, 0
    %3507 = vmatprep.subr.mxu0 0.0
    %3508 = vmatpush1.msra.mxu0 %v697
    %3509 = vmatprep.subr.mxu0 0.0
    %3510 = vmatpush1.msra.mxu0 0.0
    %3511 = vmatprep.subr.mxu0 0.0
    %3512 = vmatpush1.msra.mxu0 0.0
    %3513 = vmatprep.subr.mxu0 0.0
    %3514 = vmatpush1.msra.mxu0 0.0
    %3515 = vmatprep.subr.mxu0 0.0
    %3516 = vmatpush1.msra.mxu0 0.0
    %3517 = vmatprep.subr.mxu0 0.0
    %3518 = vmatpush1.msra.mxu0 0.0
    %3519 = vmatprep.subr.mxu0 0.0
    %3520 = vmatpush1.msra.mxu0 0.0
    %3521 = vmatprep.subr.mxu0 0.0
    %3522 = vmatpush1.msra.mxu0 0.0
    %3523 = vmatprep.subr.mxu0 0.0
    %3524 = vmatpush1.msra.mxu0 0.0
    %3525 = vmatprep.subr.mxu0 0.0
    %3526 = vmatpush1.msra.mxu0 0.0
    %3527 = vmatprep.subr.mxu0 0.0
    %3528 = vmatpush1.msra.mxu0 0.0
    %3529 = vmatprep.subr.mxu0 0.0
    %3530 = vmatpush1.msra.mxu0 0.0
    %3531 = vmatprep.subr.mxu0 0.0
    %3532 = vmatpush1.msra.mxu0 0.0
    %3533 = vmatprep.subr.mxu0 0.0
    %3534 = vmatpush1.msra.mxu0 0.0
    %3535 = vmatprep.subr.mxu0 0.0
    %3536 = vmatpush1.msra.mxu0 0.0
    %3537 = vmatprep.subr.mxu0 0.0
    %3538 = vmatpush1.msra.mxu0 0.0
    %3539 = vmatprep.subr.mxu0 0.0
    %3540 = vmatpush1.msra.mxu0 0.0
    %3541 = vmatprep.subr.mxu0 0.0
    %3542 = vmatpush1.msra.mxu0 0.0
    %3543 = vmatprep.subr.mxu0 0.0
    %3544 = vmatpush1.msra.mxu0 0.0
    %3545 = vmatprep.subr.mxu0 0.0
    %3546 = vmatpush1.msra.mxu0 0.0
    %3547 = vmatprep.subr.mxu0 0.0
    %3548 = vmatpush1.msra.mxu0 0.0
    %3549 = vmatprep.subr.mxu0 0.0
    %3550 = vmatpush1.msra.mxu0 0.0
    %3551 = vmatprep.subr.mxu0 0.0
    %3552 = vmatpush1.msra.mxu0 0.0
    %3553 = vmatprep.subr.mxu0 0.0
    %3554 = vmatpush1.msra.mxu0 0.0
    %3555 = vmatprep.subr.mxu0 0.0
    %3556 = vmatpush1.msra.mxu0 0.0
    %3557 = vmatprep.subr.mxu0 0.0
    %3558 = vmatpush1.msra.mxu0 0.0
    %3559 = vmatprep.subr.mxu0 0.0
    %3560 = vmatpush1.msra.mxu0 0.0
    %3561 = vmatprep.subr.mxu0 0.0
    %3562 = vmatpush1.msra.mxu0 0.0
    %3563 = vmatprep.subr.mxu0 0.0
    %3564 = vmatpush1.msra.mxu0 0.0
    %3565 = vmatprep.subr.mxu0 0.0
    %3566 = vmatpush1.msra.mxu0 0.0
    %3567 = vmatprep.subr.mxu0 0.0
    %3568 = vmatpush1.msra.mxu0 0.0
    %3569 = vmatprep.subr.mxu0 0.0
    %3570 = vmatpush1.msra.mxu0 0.0
    %3571 = vmatprep.mubr.f32.mxu0 0.0
    %3572 = vmatmul.mubr.f32.gmra.mrb[0].mxu0 %v3505
    %v3573 = vpop.f32.mrb[0].mxu0
    %v3574 = vadd.f32 0.0, %v3573
    %v3575 = vpop.f32.mrb[0].mxu0
    %3576 = vdwg.mxu0
    %v3577 = vld [vmem:[%s10 + $0x180] sm:$0xff]
    %v3578 = vld [vmem:[%s10 + $0x188] sm:$0xff]
    %v3579 = vld [vmem:[%s10 + $0x190] sm:$0xff]
    %v3580 = vld [vmem:[%s10 + $0x198] sm:$0xff]
    %v3581 = vld [vmem:[%s10 + $0x1a0] sm:$0xff]
    %v3582 = vld [vmem:[%s10 + $0x1a8] sm:$0xff]
    %v3583 = vld [vmem:[%s10 + $0x1b0] sm:$0xff]
    %v3584 = vld [vmem:[%s10 + $0x1b8] sm:$0xff]
    %v3586 = vsel %vm110, %v3411, 0
    %v3589 = vsel %vm110, %v3574, 0
    %3591 = vmatprep.subr.mxu0 0.0
    %3592 = vmatpush1.msra.mxu0 %v3577
    %3593 = vmatprep.subr.mxu0 0.0
    %3594 = vmatpush1.msra.mxu0 %v3578
    %3595 = vmatprep.subr.mxu0 0.0
    %3596 = vmatpush1.msra.mxu0 %v3579
    %3597 = vmatprep.subr.mxu0 0.0
    %3598 = vmatpush1.msra.mxu0 %v3580
    %3599 = vmatprep.subr.mxu0 0.0
    %3600 = vmatpush1.msra.mxu0 %v3581
    %3601 = vmatprep.subr.mxu0 0.0
    %3602 = vmatpush1.msra.mxu0 %v3582
    %3603 = vmatprep.subr.mxu0 0.0
    %3604 = vmatpush1.msra.mxu0 %v3583
    %3605 = vmatprep.subr.mxu0 0.0
    %3606 = vmatpush1.msra.mxu0 %v3584
    %3607 = vmatprep.subr.mxu0 0.0
    %3608 = vmatpush1.msra.mxu0 0.0
    %3609 = vmatprep.subr.mxu0 0.0
    %3610 = vmatpush1.msra.mxu0 0.0
    %3611 = vmatprep.subr.mxu0 0.0
    %3612 = vmatpush1.msra.mxu0 0.0
    %3613 = vmatprep.subr.mxu0 0.0
    %3614 = vmatpush1.msra.mxu0 0.0
    %3615 = vmatprep.subr.mxu0 0.0
    %3616 = vmatpush1.msra.mxu0 0.0
    %3617 = vmatprep.subr.mxu0 0.0
    %3618 = vmatpush1.msra.mxu0 0.0
    %3619 = vmatprep.subr.mxu0 0.0
    %3620 = vmatpush1.msra.mxu0 0.0
    %3621 = vmatprep.subr.mxu0 0.0
    %3622 = vmatpush1.msra.mxu0 0.0
    %3623 = vmatprep.subr.mxu0 0.0
    %3624 = vmatpush1.msra.mxu0 0.0
    %3625 = vmatprep.subr.mxu0 0.0
    %3626 = vmatpush1.msra.mxu0 0.0
    %3627 = vmatprep.subr.mxu0 0.0
    %3628 = vmatpush1.msra.mxu0 0.0
    %3629 = vmatprep.subr.mxu0 0.0
    %3630 = vmatpush1.msra.mxu0 0.0
    %3631 = vmatprep.subr.mxu0 0.0
    %3632 = vmatpush1.msra.mxu0 0.0
    %3633 = vmatprep.subr.mxu0 0.0
    %3634 = vmatpush1.msra.mxu0 0.0
    %3635 = vmatprep.subr.mxu0 0.0
    %3636 = vmatpush1.msra.mxu0 0.0
    %3637 = vmatprep.subr.mxu0 0.0
    %3638 = vmatpush1.msra.mxu0 0.0
    %3639 = vmatprep.subr.mxu0 0.0
    %3640 = vmatpush1.msra.mxu0 0.0
    %3641 = vmatprep.subr.mxu0 0.0
    %3642 = vmatpush1.msra.mxu0 0.0
    %3643 = vmatprep.subr.mxu0 0.0
    %3644 = vmatpush1.msra.mxu0 0.0
    %3645 = vmatprep.subr.mxu0 0.0
    %3646 = vmatpush1.msra.mxu0 0.0
    %3647 = vmatprep.subr.mxu0 0.0
    %3648 = vmatpush1.msra.mxu0 0.0
    %3649 = vmatprep.subr.mxu0 0.0
    %3650 = vmatpush1.msra.mxu0 0.0
    %3651 = vmatprep.subr.mxu0 0.0
    %3652 = vmatpush1.msra.mxu0 0.0
    %3653 = vmatprep.subr.mxu0 0.0
    %3654 = vmatpush1.msra.mxu0 0.0
    %3655 = vmatprep.mubr.f32.mxu0 0.0
    %3656 = vmatmul.mubr.f32.gmra.mrb[0].mxu0 %v3586
    %v3657 = vpop.f32.mrb[0].mxu0
    %v3658 = vadd.f32 0.0, %v3657
    %v3659 = vpop.f32.mrb[0].mxu0
    %3660 = vmatprep.mubr.f32.mxu0 0.0
    %3661 = vmatmul.mubr.f32.gmra.mrb[0].mxu0 %v3589
    %v3662 = vpop.f32.mrb[0].mxu0
    %v3663 = vadd.f32 0.0, %v3662
    %v3664 = vpop.f32.mrb[0].mxu0
    %3665 = vdwg.mxu0
    %v3666 = vadd.f32 %v3249, %v3658
    %v3667 = vadd.f32 %v3250, %v3663
    %3668 = vrot.lane.b32.xlu0 %v263, 64
    %v3669 = vpop.permute.xlu0 %3668
    %3670 = vrot.lane.b32.xlu0 %v477, 64
    %v3671 = vpop.permute.xlu0 %3670
    %v3672 = vsel %vm110, %v3669, 0
    %v3674 = vsel %vm110, %v3671, 0
    %3676 = vmatprep.subr.mxu0 0.0
    %3677 = vmatpush1.xpose.msra.mxu0 %v3674
    %3678 = vmatprep.subr.mxu0 0.0
    %3679 = vmatpush1.xpose.msra.mxu0 0.0
    %3680 = vmatprep.subr.mxu0 0.0
    %3681 = vmatpush1.xpose.msra.mxu0 0.0
    %3682 = vmatprep.subr.mxu0 0.0
    %3683 = vmatpush1.xpose.msra.mxu0 0.0
    %3684 = vmatprep.subr.mxu0 0.0
    %3685 = vmatpush1.xpose.msra.mxu0 0.0
    %3686 = vmatprep.subr.mxu0 0.0
    %3687 = vmatpush1.xpose.msra.mxu0 0.0
    %3688 = vmatprep.subr.mxu0 0.0
    %3689 = vmatpush1.xpose.msra.mxu0 0.0
    %3690 = vmatprep.subr.mxu0 0.0
    %3691 = vmatpush1.xpose.msra.mxu0 0.0
    %3692 = vmatprep.subr.mxu0 0.0
    %3693 = vmatpush1.xpose.msra.mxu0 0.0
    %3694 = vmatprep.subr.mxu0 0.0
    %3695 = vmatpush1.xpose.msra.mxu0 0.0
    %3696 = vmatprep.subr.mxu0 0.0
    %3697 = vmatpush1.xpose.msra.mxu0 0.0
    %3698 = vmatprep.subr.mxu0 0.0
    %3699 = vmatpush1.xpose.msra.mxu0 0.0
    %3700 = vmatprep.subr.mxu0 0.0
    %3701 = vmatpush1.xpose.msra.mxu0 0.0
    %3702 = vmatprep.subr.mxu0 0.0
    %3703 = vmatpush1.xpose.msra.mxu0 0.0
    %3704 = vmatprep.subr.mxu0 0.0
    %3705 = vmatpush1.xpose.msra.mxu0 0.0
    %3706 = vmatprep.subr.mxu0 0.0
    %3707 = vmatpush1.xpose.msra.mxu0 0.0
    %3708 = vmatprep.subr.mxu0 0.0
    %3709 = vmatpush1.xpose.msra.mxu0 0.0
    %3710 = vmatprep.subr.mxu0 0.0
    %3711 = vmatpush1.xpose.msra.mxu0 0.0
    %3712 = vmatprep.subr.mxu0 0.0
    %3713 = vmatpush1.xpose.msra.mxu0 0.0
    %3714 = vmatprep.subr.mxu0 0.0
    %3715 = vmatpush1.xpose.msra.mxu0 0.0
    %3716 = vmatprep.subr.mxu0 0.0
    %3717 = vmatpush1.xpose.msra.mxu0 0.0
    %3718 = vmatprep.subr.mxu0 0.0
    %3719 = vmatpush1.xpose.msra.mxu0 0.0
    %3720 = vmatprep.subr.mxu0 0.0
    %3721 = vmatpush1.xpose.msra.mxu0 0.0
    %3722 = vmatprep.subr.mxu0 0.0
    %3723 = vmatpush1.xpose.msra.mxu0 0.0
    %3724 = vmatprep.subr.mxu0 0.0
    %3725 = vmatpush1.xpose.msra.mxu0 0.0
    %3726 = vmatprep.subr.mxu0 0.0
    %3727 = vmatpush1.xpose.msra.mxu0 0.0
    %3728 = vmatprep.subr.mxu0 0.0
    %3729 = vmatpush1.xpose.msra.mxu0 0.0
    %3730 = vmatprep.subr.mxu0 0.0
    %3731 = vmatpush1.xpose.msra.mxu0 0.0
    %3732 = vmatprep.subr.mxu0 0.0
    %3733 = vmatpush1.xpose.msra.mxu0 0.0
    %3734 = vmatprep.subr.mxu0 0.0
    %3735 = vmatpush1.xpose.msra.mxu0 0.0
    %3736 = vmatprep.subr.mxu0 0.0
    %3737 = vmatpush1.xpose.msra.mxu0 0.0
    %3738 = vmatprep.subr.mxu0 0.0
    %3739 = vmatpush1.xpose.msra.mxu0 0.0
    %3740 = vmatprep.mubr.f32.mxu0 0.0
    %3741 = vmatmul.mubr.f32.gmra.mrb[0].mxu0 %v3672
    %v3742 = vpop.f32.mrb[0].mxu0
    %v3743 = vadd.f32 0.0, %v3742
    %v3744 = vpop.f32.mrb[0].mxu0
    %3745 = vdwg.mxu0
    %v3746 = vsub.f32 %v3743, %v785
    %v3747 = vsel %vm788, %v3746, -inf
    %3748 = vmax.xlane.f32.xlu0 %v3747
    %v3749 = vpop.xlane.xlu0 %3748
    %v3750 = vsub.f32 %v3746, %v3749
    %v3751 = vmul.f32 %v3750, 1.442695
    %v3752 = vpow.pop %v3751
    %v3753 = vsel %vm788, %v3752, 0.0
    %3754 = vadd.xlane.f32.xlu0 %v3753
    %v3755 = vpop.xlane.xlu0 %3754
    %v3756 = vrcp.pop %v3755
    %v3757 = vmul.f32 %v3752, %v3756
    %s3758 = scalar_lea.vmem %s15, 56
    %3759 = vst.msk [vmem:[%s3758] sm:$0xff] %vm788, %v3757
    %3761 = vrot.lane.b32.xlu0 %v691, 64
    %v3762 = vpop.permute.xlu0 %3761
    %v3765 = vsel %vm788, %v3757, 0
    %3767 = vmatprep.subr.mxu0 0.0
    %3768 = vmatpush1.msra.mxu0 %v3762
    %3769 = vmatprep.subr.mxu0 0.0
    %3770 = vmatpush1.msra.mxu0 0.0
    %3771 = vmatprep.subr.mxu0 0.0
    %3772 = vmatpush1.msra.mxu0 0.0
    %3773 = vmatprep.subr.mxu0 0.0
    %3774 = vmatpush1.msra.mxu0 0.0
    %3775 = vmatprep.subr.mxu0 0.0
    %3776 = vmatpush1.msra.mxu0 0.0
    %3777 = vmatprep.subr.mxu0 0.0
    %3778 = vmatpush1.msra.mxu0 0.0
    %3779 = vmatprep.subr.mxu0 0.0
    %3780 = vmatpush1.msra.mxu0 0.0
    %3781 = vmatprep.subr.mxu0 0.0
    %3782 = vmatpush1.msra.mxu0 0.0
    %3783 = vmatprep.subr.mxu0 0.0
    %3784 = vmatpush1.msra.mxu0 0.0
    %3785 = vmatprep.subr.mxu0 0.0
    %3786 = vmatpush1.msra.mxu0 0.0
    %3787 = vmatprep.subr.mxu0 0.0
    %3788 = vmatpush1.msra.mxu0 0.0
    %3789 = vmatprep.subr.mxu0 0.0
    %3790 = vmatpush1.msra.mxu0 0.0
    %3791 = vmatprep.subr.mxu0 0.0
    %3792 = vmatpush1.msra.mxu0 0.0
    %3793 = vmatprep.subr.mxu0 0.0
    %3794 = vmatpush1.msra.mxu0 0.0
    %3795 = vmatprep.subr.mxu0 0.0
    %3796 = vmatpush1.msra.mxu0 0.0
    %3797 = vmatprep.subr.mxu0 0.0
    %3798 = vmatpush1.msra.mxu0 0.0
    %3799 = vmatprep.subr.mxu0 0.0
    %3800 = vmatpush1.msra.mxu0 0.0
    %3801 = vmatprep.subr.mxu0 0.0
    %3802 = vmatpush1.msra.mxu0 0.0
    %3803 = vmatprep.subr.mxu0 0.0
    %3804 = vmatpush1.msra.mxu0 0.0
    %3805 = vmatprep.subr.mxu0 0.0
    %3806 = vmatpush1.msra.mxu0 0.0
    %3807 = vmatprep.subr.mxu0 0.0
    %3808 = vmatpush1.msra.mxu0 0.0
    %3809 = vmatprep.subr.mxu0 0.0
    %3810 = vmatpush1.msra.mxu0 0.0
    %3811 = vmatprep.subr.mxu0 0.0
    %3812 = vmatpush1.msra.mxu0 0.0
    %3813 = vmatprep.subr.mxu0 0.0
    %3814 = vmatpush1.msra.mxu0 0.0
    %3815 = vmatprep.subr.mxu0 0.0
    %3816 = vmatpush1.msra.mxu0 0.0
    %3817 = vmatprep.subr.mxu0 0.0
    %3818 = vmatpush1.msra.mxu0 0.0
    %3819 = vmatprep.subr.mxu0 0.0
    %3820 = vmatpush1.msra.mxu0 0.0
    %3821 = vmatprep.subr.mxu0 0.0
    %3822 = vmatpush1.msra.mxu0 0.0
    %3823 = vmatprep.subr.mxu0 0.0
    %3824 = vmatpush1.msra.mxu0 0.0
    %3825 = vmatprep.subr.mxu0 0.0
    %3826 = vmatpush1.msra.mxu0 0.0
    %3827 = vmatprep.subr.mxu0 0.0
    %3828 = vmatpush1.msra.mxu0 0.0
    %3829 = vmatprep.subr.mxu0 0.0
    %3830 = vmatpush1.msra.mxu0 0.0
    %3831 = vmatprep.mubr.f32.mxu0 0.0
    %3832 = vmatmul.mubr.f32.gmra.mrb[0].mxu0 %v3765
    %v3833 = vpop.f32.mrb[0].mxu0
    %v3834 = vadd.f32 0.0, %v3833
    %v3835 = vpop.f32.mrb[0].mxu0
    %3836 = vdwg.mxu0
    %3837 = vrot.lane.b32.xlu0 %v269, 64
    %v3838 = vpop.permute.xlu0 %3837
    %3839 = vrot.lane.b32.xlu0 %v483, 64
    %v3840 = vpop.permute.xlu0 %3839
    %v3841 = vsel %vm110, %v3838, 0
    %v3843 = vsel %vm110, %v3840, 0
    %3845 = vmatprep.subr.mxu0 0.0
    %3846 = vmatpush1.xpose.msra.mxu0 %v3843
    %3847 = vmatprep.subr.mxu0 0.0
    %3848 = vmatpush1.xpose.msra.mxu0 0.0
    %3849 = vmatprep.subr.mxu0 0.0
    %3850 = vmatpush1.xpose.msra.mxu0 0.0
    %3851 = vmatprep.subr.mxu0 0.0
    %3852 = vmatpush1.xpose.msra.mxu0 0.0
    %3853 = vmatprep.subr.mxu0 0.0
    %3854 = vmatpush1.xpose.msra.mxu0 0.0
    %3855 = vmatprep.subr.mxu0 0.0
    %3856 = vmatpush1.xpose.msra.mxu0 0.0
    %3857 = vmatprep.subr.mxu0 0.0
    %3858 = vmatpush1.xpose.msra.mxu0 0.0
    %3859 = vmatprep.subr.mxu0 0.0
    %3860 = vmatpush1.xpose.msra.mxu0 0.0
    %3861 = vmatprep.subr.mxu0 0.0
    %3862 = vmatpush1.xpose.msra.mxu0 0.0
    %3863 = vmatprep.subr.mxu0 0.0
    %3864 = vmatpush1.xpose.msra.mxu0 0.0
    %3865 = vmatprep.subr.mxu0 0.0
    %3866 = vmatpush1.xpose.msra.mxu0 0.0
    %3867 = vmatprep.subr.mxu0 0.0
    %3868 = vmatpush1.xpose.msra.mxu0 0.0
    %3869 = vmatprep.subr.mxu0 0.0
    %3870 = vmatpush1.xpose.msra.mxu0 0.0
    %3871 = vmatprep.subr.mxu0 0.0
    %3872 = vmatpush1.xpose.msra.mxu0 0.0
    %3873 = vmatprep.subr.mxu0 0.0
    %3874 = vmatpush1.xpose.msra.mxu0 0.0
    %3875 = vmatprep.subr.mxu0 0.0
    %3876 = vmatpush1.xpose.msra.mxu0 0.0
    %3877 = vmatprep.subr.mxu0 0.0
    %3878 = vmatpush1.xpose.msra.mxu0 0.0
    %3879 = vmatprep.subr.mxu0 0.0
    %3880 = vmatpush1.xpose.msra.mxu0 0.0
    %3881 = vmatprep.subr.mxu0 0.0
    %3882 = vmatpush1.xpose.msra.mxu0 0.0
    %3883 = vmatprep.subr.mxu0 0.0
    %3884 = vmatpush1.xpose.msra.mxu0 0.0
    %3885 = vmatprep.subr.mxu0 0.0
    %3886 = vmatpush1.xpose.msra.mxu0 0.0
    %3887 = vmatprep.subr.mxu0 0.0
    %3888 = vmatpush1.xpose.msra.mxu0 0.0
    %3889 = vmatprep.subr.mxu0 0.0
    %3890 = vmatpush1.xpose.msra.mxu0 0.0
    %3891 = vmatprep.subr.mxu0 0.0
    %3892 = vmatpush1.xpose.msra.mxu0 0.0
    %3893 = vmatprep.subr.mxu0 0.0
    %3894 = vmatpush1.xpose.msra.mxu0 0.0
    %3895 = vmatprep.subr.mxu0 0.0
    %3896 = vmatpush1.xpose.msra.mxu0 0.0
    %3897 = vmatprep.subr.mxu0 0.0
    %3898 = vmatpush1.xpose.msra.mxu0 0.0
    %3899 = vmatprep.subr.mxu0 0.0
    %3900 = vmatpush1.xpose.msra.mxu0 0.0
    %3901 = vmatprep.subr.mxu0 0.0
    %3902 = vmatpush1.xpose.msra.mxu0 0.0
    %3903 = vmatprep.subr.mxu0 0.0
    %3904 = vmatpush1.xpose.msra.mxu0 0.0
    %3905 = vmatprep.subr.mxu0 0.0
    %3906 = vmatpush1.xpose.msra.mxu0 0.0
    %3907 = vmatprep.subr.mxu0 0.0
    %3908 = vmatpush1.xpose.msra.mxu0 0.0
    %3909 = vmatprep.mubr.f32.mxu0 0.0
    %3910 = vmatmul.mubr.f32.gmra.mrb[0].mxu0 %v3841
    %v3911 = vpop.f32.mrb[0].mxu0
    %v3912 = vadd.f32 0.0, %v3911
    %v3913 = vpop.f32.mrb[0].mxu0
    %3914 = vdwg.mxu0
    %v3915 = vsub.f32 %v3912, %v954
    %v3916 = vsel %vm788, %v3915, -inf
    %3917 = vmax.xlane.f32.xlu0 %v3916
    %v3918 = vpop.xlane.xlu0 %3917
    %v3919 = vsub.f32 %v3915, %v3918
    %v3920 = vmul.f32 %v3919, 1.442695
    %v3921 = vpow.pop %v3920
    %v3922 = vsel %vm788, %v3921, 0.0
    %3923 = vadd.xlane.f32.xlu0 %v3922
    %v3924 = vpop.xlane.xlu0 %3923
    %v3925 = vrcp.pop %v3924
    %v3926 = vmul.f32 %v3921, %v3925
    %s3927 = scalar_lea.vmem %s15, 120
    %3928 = vst.msk [vmem:[%s3927] sm:$0xff] %vm788, %v3926
    %3930 = vrot.lane.b32.xlu0 %v697, 64
    %v3931 = vpop.permute.xlu0 %3930
    %v3934 = vsel %vm788, %v3926, 0
    %3936 = vmatprep.subr.mxu0 0.0
    %3937 = vmatpush1.msra.mxu0 %v3931
    %3938 = vmatprep.subr.mxu0 0.0
    %3939 = vmatpush1.msra.mxu0 0.0
    %3940 = vmatprep.subr.mxu0 0.0
    %3941 = vmatpush1.msra.mxu0 0.0
    %3942 = vmatprep.subr.mxu0 0.0
    %3943 = vmatpush1.msra.mxu0 0.0
    %3944 = vmatprep.subr.mxu0 0.0
    %3945 = vmatpush1.msra.mxu0 0.0
    %3946 = vmatprep.subr.mxu0 0.0
    %3947 = vmatpush1.msra.mxu0 0.0
    %3948 = vmatprep.subr.mxu0 0.0
    %3949 = vmatpush1.msra.mxu0 0.0
    %3950 = vmatprep.subr.mxu0 0.0
    %3951 = vmatpush1.msra.mxu0 0.0
    %3952 = vmatprep.subr.mxu0 0.0
    %3953 = vmatpush1.msra.mxu0 0.0
    %3954 = vmatprep.subr.mxu0 0.0
    %3955 = vmatpush1.msra.mxu0 0.0
    %3956 = vmatprep.subr.mxu0 0.0
    %3957 = vmatpush1.msra.mxu0 0.0
    %3958 = vmatprep.subr.mxu0 0.0
    %3959 = vmatpush1.msra.mxu0 0.0
    %3960 = vmatprep.subr.mxu0 0.0
    %3961 = vmatpush1.msra.mxu0 0.0
    %3962 = vmatprep.subr.mxu0 0.0
    %3963 = vmatpush1.msra.mxu0 0.0
    %3964 = vmatprep.subr.mxu0 0.0
    %3965 = vmatpush1.msra.mxu0 0.0
    %3966 = vmatprep.subr.mxu0 0.0
    %3967 = vmatpush1.msra.mxu0 0.0
    %3968 = vmatprep.subr.mxu0 0.0
    %3969 = vmatpush1.msra.mxu0 0.0
    %3970 = vmatprep.subr.mxu0 0.0
    %3971 = vmatpush1.msra.mxu0 0.0
    %3972 = vmatprep.subr.mxu0 0.0
    %3973 = vmatpush1.msra.mxu0 0.0
    %3974 = vmatprep.subr.mxu0 0.0
    %3975 = vmatpush1.msra.mxu0 0.0
    %3976 = vmatprep.subr.mxu0 0.0
    %3977 = vmatpush1.msra.mxu0 0.0
    %3978 = vmatprep.subr.mxu0 0.0
    %3979 = vmatpush1.msra.mxu0 0.0
    %3980 = vmatprep.subr.mxu0 0.0
    %3981 = vmatpush1.msra.mxu0 0.0
    %3982 = vmatprep.subr.mxu0 0.0
    %3983 = vmatpush1.msra.mxu0 0.0
    %3984 = vmatprep.subr.mxu0 0.0
    %3985 = vmatpush1.msra.mxu0 0.0
    %3986 = vmatprep.subr.mxu0 0.0
    %3987 = vmatpush1.msra.mxu0 0.0
    %3988 = vmatprep.subr.mxu0 0.0
    %3989 = vmatpush1.msra.mxu0 0.0
    %3990 = vmatprep.subr.mxu0 0.0
    %3991 = vmatpush1.msra.mxu0 0.0
    %3992 = vmatprep.subr.mxu0 0.0
    %3993 = vmatpush1.msra.mxu0 0.0
    %3994 = vmatprep.subr.mxu0 0.0
    %3995 = vmatpush1.msra.mxu0 0.0
    %3996 = vmatprep.subr.mxu0 0.0
    %3997 = vmatpush1.msra.mxu0 0.0
    %3998 = vmatprep.subr.mxu0 0.0
    %3999 = vmatpush1.msra.mxu0 0.0
    %4000 = vmatprep.mubr.f32.mxu0 0.0
    %4001 = vmatmul.mubr.f32.gmra.mrb[0].mxu0 %v3934
    %v4002 = vpop.f32.mrb[0].mxu0
    %v4003 = vadd.f32 0.0, %v4002
    %v4004 = vpop.f32.mrb[0].mxu0
    %4005 = vdwg.mxu0
    %v4006 = vld [vmem:[%s10 + $0x1c0] sm:$0xff]
    %v4007 = vld [vmem:[%s10 + $0x1c8] sm:$0xff]
    %v4008 = vld [vmem:[%s10 + $0x1d0] sm:$0xff]
    %v4009 = vld [vmem:[%s10 + $0x1d8] sm:$0xff]
    %v4010 = vld [vmem:[%s10 + $0x1e0] sm:$0xff]
    %v4011 = vld [vmem:[%s10 + $0x1e8] sm:$0xff]
    %v4012 = vld [vmem:[%s10 + $0x1f0] sm:$0xff]
    %v4013 = vld [vmem:[%s10 + $0x1f8] sm:$0xff]
    %v4015 = vsel %vm110, %v3834, 0
    %v4018 = vsel %vm110, %v4003, 0
    %4020 = vmatprep.subr.mxu0 0.0
    %4021 = vmatpush1.msra.mxu0 %v4006
    %4022 = vmatprep.subr.mxu0 0.0
    %4023 = vmatpush1.msra.mxu0 %v4007
    %4024 = vmatprep.subr.mxu0 0.0
    %4025 = vmatpush1.msra.mxu0 %v4008
    %4026 = vmatprep.subr.mxu0 0.0
    %4027 = vmatpush1.msra.mxu0 %v4009
    %4028 = vmatprep.subr.mxu0 0.0
    %4029 = vmatpush1.msra.mxu0 %v4010
    %4030 = vmatprep.subr.mxu0 0.0
    %4031 = vmatpush1.msra.mxu0 %v4011
    %4032 = vmatprep.subr.mxu0 0.0
    %4033 = vmatpush1.msra.mxu0 %v4012
    %4034 = vmatprep.subr.mxu0 0.0
    %4035 = vmatpush1.msra.mxu0 %v4013
    %4036 = vmatprep.subr.mxu0 0.0
    %4037 = vmatpush1.msra.mxu0 0.0
    %4038 = vmatprep.subr.mxu0 0.0
    %4039 = vmatpush1.msra.mxu0 0.0
    %4040 = vmatprep.subr.mxu0 0.0
    %4041 = vmatpush1.msra.mxu0 0.0
    %4042 = vmatprep.subr.mxu0 0.0
    %4043 = vmatpush1.msra.mxu0 0.0
    %4044 = vmatprep.subr.mxu0 0.0
    %4045 = vmatpush1.msra.mxu0 0.0
    %4046 = vmatprep.subr.mxu0 0.0
    %4047 = vmatpush1.msra.mxu0 0.0
    %4048 = vmatprep.subr.mxu0 0.0
    %4049 = vmatpush1.msra.mxu0 0.0
    %4050 = vmatprep.subr.mxu0 0.0
    %4051 = vmatpush1.msra.mxu0 0.0
    %4052 = vmatprep.subr.mxu0 0.0
    %4053 = vmatpush1.msra.mxu0 0.0
    %4054 = vmatprep.subr.mxu0 0.0
    %4055 = vmatpush1.msra.mxu0 0.0
    %4056 = vmatprep.subr.mxu0 0.0
    %4057 = vmatpush1.msra.mxu0 0.0
    %4058 = vmatprep.subr.mxu0 0.0
    %4059 = vmatpush1.msra.mxu0 0.0
    %4060 = vmatprep.subr.mxu0 0.0
    %4061 = vmatpush1.msra.mxu0 0.0
    %4062 = vmatprep.subr.mxu0 0.0
    %4063 = vmatpush1.msra.mxu0 0.0
    %4064 = vmatprep.subr.mxu0 0.0
    %4065 = vmatpush1.msra.mxu0 0.0
    %4066 = vmatprep.subr.mxu0 0.0
    %4067 = vmatpush1.msra.mxu0 0.0
    %4068 = vmatprep.subr.mxu0 0.0
    %4069 = vmatpush1.msra.mxu0 0.0
    %4070 = vmatprep.subr.mxu0 0.0
    %4071 = vmatpush1.msra.mxu0 0.0
    %4072 = vmatprep.subr.mxu0 0.0
    %4073 = vmatpush1.msra.mxu0 0.0
    %4074 = vmatprep.subr.mxu0 0.0
    %4075 = vmatpush1.msra.mxu0 0.0
    %4076 = vmatprep.subr.mxu0 0.0
    %4077 = vmatpush1.msra.mxu0 0.0
    %4078 = vmatprep.subr.mxu0 0.0
    %4079 = vmatpush1.msra.mxu0 0.0
    %4080 = vmatprep.subr.mxu0 0.0
    %4081 = vmatpush1.msra.mxu0 0.0
    %4082 = vmatprep.subr.mxu0 0.0
    %4083 = vmatpush1.msra.mxu0 0.0
    %4084 = vmatprep.mubr.f32.mxu0 0.0
    %4085 = vmatmul.mubr.f32.gmra.mrb[0].mxu0 %v4015
    %v4086 = vpop.f32.mrb[0].mxu0
    %v4087 = vadd.f32 0.0, %v4086
    %v4088 = vpop.f32.mrb[0].mxu0
    %4089 = vmatprep.mubr.f32.mxu0 0.0
    %4090 = vmatmul.mubr.f32.gmra.mrb[0].mxu0 %v4018
    %v4091 = vpop.f32.mrb[0].mxu0
    %v4092 = vadd.f32 0.0, %v4091
    %v4093 = vpop.f32.mrb[0].mxu0
    %4094 = vdwg.mxu0
    %v4095 = vadd.f32 %v3666, %v4087
    %v4096 = vadd.f32 %v3667, %v4092
    %v4097 = vld [vmem:[%s11] sm:$0x1]
    %v4099 = vlaneseq
    %v4100 = vshrl.u32 %v4099, 7
    %v4101 = vsub.s32 0, %v4100
    %v4102 = vrot.slane %v4097, %v4101
    %v4104 = vadd.f32 %v4095, %v4102
    %v4105 = vadd.f32 %v4096, %v4102
    %v4106 = vadd.f32 %v4104, %v50
    %v4107 = vadd.f32 %v4105, %v51
    %v4108 = vsel %vm110, %v4106, 0.0
    %4109 = vadd.xlane.f32.xlu0 %v4108
    %v4110 = vpop.xlane.xlu0 %4109
    %v4111 = vsel %vm110, %v4107, 0.0
    %4112 = vadd.xlane.f32.xlu0 %v4111
    %v4113 = vpop.xlane.xlu0 %4112
    %v4114 = vrcp.pop 64.0
    %v4115 = vmul.f32 %v4110, %v4114
    %v4116 = vmul.f32 %v4113, %v4114
    %v4117 = vsub.f32 %v4106, %v4115
    %v4118 = vsub.f32 %v4107, %v4116
    %v4119 = vmul.f32 %v4117, %v4117
    %v4120 = vmul.f32 %v4118, %v4118
    %v4121 = vsel %vm110, %v4119, 0.0
    %4122 = vadd.xlane.f32.xlu0 %v4121
    %v4123 = vpop.xlane.xlu0 %4122
    %v4124 = vsel %vm110, %v4120, 0.0
    %4125 = vadd.xlane.f32.xlu0 %v4124
    %v4126 = vpop.xlane.xlu0 %4125
    %v4127 = vmul.f32 %v4123, %v4114
    %v4128 = vmul.f32 %v4126, %v4114
    %v4129 = vadd.f32 %v4127, 1e-05
    %v4130 = vadd.f32 %v4128, 1e-05
    %v4131 = vrsqrt.pop %v4129
    %v4132 = vrsqrt.pop %v4130
    %v4133 = vmul.f32 %v4117, %v4131
    %v4134 = vmul.f32 %v4118, %v4132
    %v4135 = vld [vmem:[%s12] sm:$0x1]
    %v4137 = vlaneseq
    %v4138 = vshrl.u32 %v4137, 7
    %v4139 = vsub.s32 0, %v4138
    %v4140 = vrot.slane %v4135, %v4139
    %v4142 = vmul.f32 %v4133, %v4140
    %v4143 = vmul.f32 %v4134, %v4140
    %v4144 = vld [vmem:[%s13] sm:$0x1]
    %v4146 = vlaneseq
    %v4147 = vshrl.u32 %v4146, 7
    %v4148 = vsub.s32 0, %v4147
    %v4149 = vrot.slane %v4144, %v4148
    %v4151 = vadd.f32 %v4142, %v4149
    %v4152 = vadd.f32 %v4143, %v4149
    %4153 = vst.msk [vmem:[#allocation2] sm:$0xff] %vm110, %v4151
    %4154 = vst.msk [vmem:[#allocation2 + $0x8] sm:$0xff] %vm110, %v4152
    // Predicated region
    $region58: #{mha_pallas.1} parent=1 // pred_check
      _
    $region59: #{mha_pallas.1} parent=1 // pred_check_branch
      %4156 = sbr.rel (0) target = $region61
    $region60: #{mha_pallas.1} parent=1 // pred_region
      %s4158 = ssub.s32 256, 256
      %4159 = vsyncadd [#allocation3], %s4158
      %s4160 = sshll.u32 [#allocation2], 4
      %s4161 = int_to_ptr.vmem [resolvable:$true] %s4160
      %4166 = dma.vmem_to_hbm [thread:$0]  %s4161, 256, %s14, [#allocation3], 128, 128, 8
    $region61: #{mha_pallas.1} parent=1 // pred_fallthru
      _
    // Predicated region
    $region62: #{mha_pallas.1} parent=1 // pred_check
      _
    $region63: #{mha_pallas.1} parent=1 // pred_check_branch
      %4168 = sbr.rel (0) target = $region65
    $region64: #{mha_pallas.1} parent=1 // pred_region
      _
    $region65: #{mha_pallas.1} parent=1 // pred_fallthru
      _
    // Predicated region
    $region66: #{mha_pallas.1} parent=1 // pred_check
      _
    $region67: #{mha_pallas.1} parent=1 // pred_check_branch
      %4170 = sbr.rel (0) target = $region69
    $region68: #{mha_pallas.1} parent=1 // pred_region
      %4171 = dma.done [#allocation3], 256
    $region69: #{mha_pallas.1} parent=1 // pred_fallthru
      _
    // Predicated region
    $region70: #{mha_pallas.1} parent=1 // pred_check
      _
    $region71: #{mha_pallas.1} parent=1 // pred_check_branch
      %4173 = sbr.rel (0) target = $region73
    $region72: #{mha_pallas.1} parent=1 // pred_region
      _
    $region73: #{mha_pallas.1} parent=1 // pred_fallthru
      _
    %4174 = vsyncpa [#allocation3], 1

</llo_original>
